<compile_context>
chip_gen: v7x
topology: tpu7x:2x2x1
jax: 0.10.0
libtpu: 0.0.40
codegen_flags: <defaults>
</compile_context>

<pallas_src>
import jax
import jax.numpy as jnp
from jax.experimental import pallas as pl
from jax.experimental.pallas import tpu as pltpu


_VMEM_LIMIT = 64 * 1024 * 1024


def _round_up(v, m):
    return (v + m - 1) // m * m


# --------------------------------------------------------------------------------------
# Kernel 1: hoisted input projection  gin = relu(x @ W_in + b_in) @ W_ih + (b_ih + b_hh)
# --------------------------------------------------------------------------------------
def _input_proj_kernel(x_ref, w_in_ref, b_in_ref, w_ih_ref, b_g_ref, gin_ref):
    # linearIn (+relu): nx is tiny, keep this first GEMM in f32.
    x0 = jnp.dot(x_ref[...], w_in_ref[...], preferred_element_type=jnp.float32)
    x0 = jnp.maximum(x0 + b_in_ref[...], 0.0)
    # Dominant GEMM: bf16 operands (MXU native rate), f32 accumulate, bf16 output stream.
    gin = jnp.dot(x0.astype(w_ih_ref.dtype), w_ih_ref[...],
                  preferred_element_type=jnp.float32) + b_g_ref[...]
    gin_ref[...] = gin.astype(gin_ref.dtype)


# --------------------------------------------------------------------------------------
# Kernel 2: sequential LSTM recurrence — h @ W_hh + gates per step, linearOut fused
# --------------------------------------------------------------------------------------
def _lstm_recurrence_kernel(gin_ref, w_hh_ref, w_out_ref, b_out_ref, out_ref,
                            h_ref, c_ref):
    # gin_ref:   (Tc, Bc, 4*Hp)  precomputed x0 @ W_ih + (b_ih + b_hh)   (compute dtype)
    # w_hh_ref:  (Hp, 4*Hp)      recurrent weights (compute dtype)
    # w_out_ref: (Hp, ny), b_out_ref: (1, ny)   fused linearOut (f32)
    # out_ref:   (Tc, Bc, ny)    final model output for this chunk
    # h_ref, c_ref: (Bc, Hp) f32 VMEM carries across time chunks
    Hp = h_ref.shape[-1]
    Tc = gin_ref.shape[0]

    @pl.when(pl.program_id(1) == 0)          # first time chunk of this batch chunk
    def _():
        h_ref[...] = jnp.zeros_like(h_ref)
        c_ref[...] = jnp.zeros_like(c_ref)

    def sigmoid_t(z):
        # sigmoid(x) == 0.5*(tanh(0.5x)+1): one EUP transcendental instead of exp+recip.
        return 0.5 * jnp.tanh(0.5 * z) + 0.5

    def step(s, carry):
        gates = (gin_ref[s].astype(jnp.float32)
                 + jnp.dot(h_ref[...].astype(w_hh_ref.dtype), w_hh_ref[...],
                           preferred_element_type=jnp.float32))
        # cuDNN / PyTorch gate order: i, f, g, o  (Hp-aligned lane slices)
        i_g = sigmoid_t(gates[:, 0 * Hp:1 * Hp])
        f_g = sigmoid_t(gates[:, 1 * Hp:2 * Hp])
        g_g = jnp.tanh(gates[:, 2 * Hp:3 * Hp])
        o_g = sigmoid_t(gates[:, 3 * Hp:4 * Hp])
        c_new = f_g * c_ref[...] + i_g * g_g
        h_new = o_g * jnp.tanh(c_new)
        c_ref[...] = c_new
        h_ref[...] = h_new
        # Fused linearOut: ny is tiny so this matmul is negligible, but it removes the
        # (T, B, Hp) hidden-state HBM round trip and a whole extra kernel launch.
        out_ref[s] = (jnp.dot(h_new, w_out_ref[...],
                              preferred_element_type=jnp.float32)
                      + b_out_ref[...]).astype(out_ref.dtype)
        return carry

    # Modest unroll: full unroll with (Bc, 4Hp) gate intermediates spills vregs.
    jax.lax.fori_loop(0, Tc, step, 0, unroll=min(Tc, 4))


def cudnn_lstm_model_forward(x, params, *, time_chunk=16, batch_chunk=None,
                             compute_dtype=jnp.bfloat16, single_buffer_weights=True,
                             row_block=512):
    """x: (T, B, nx) float32, time-major.  Returns (T, B, ny) in x.dtype.

    compute_dtype: operand dtype for the two big GEMMs and the gin stream
      (bfloat16 recommended; f32 carries / accumulators are kept either way).
    batch_chunk:   on v7x pass ~Bp/2 so both TensorCores get a batch shard.
    time_chunk:    raise (16-32) on v6e to amortize per-grid-step overhead.
    """
    T, B, nx = x.shape
    H = params["w_hh"].shape[0]                 # weights stored transposed: (in, out)
    ny = params["w_out"].shape[1]
    f32 = jnp.float32
    cd = compute_dtype

    # ---- lane/sublane-friendly padded sizes -------------------------------------------
    Hp = _round_up(H, 128)                      # lane-aligned hidden -> free gate slices
    Bp = _round_up(B, 8)                        # sublane-aligned batch
    Tc = max(1, min(time_chunk, T))             # timesteps per recurrence grid step
    Tp = _round_up(T, Tc)
    n_tc = Tp // Tc
    if batch_chunk is None:
        # default: whole batch per core; auto-split in two when large (v7x megacore)
        Bc = Bp // 2 if (Bp >= 512 and (Bp // 2) % 8 == 0) else Bp
    else:
        Bc = min(_round_up(batch_chunk, 8), Bp)
    if Bp % Bc:
        Bc = Bp
    n_bc = Bp // Bc

    def const(shape):
        # Constant-index weight block: single-buffer it (double-buffering a block whose
        # index never changes only wastes VMEM).
        idx = lambda *_: (0,) * len(shape)
        if single_buffer_weights:
            return pl.BlockSpec(shape, idx, pipeline_mode=pl.Buffered(1))
        return pl.BlockSpec(shape, idx)

    def pad_gate_cols(w):                       # (K, 4H) -> (K, 4Hp), per-gate zero pad
        K = w.shape[0]
        return jnp.pad(w.reshape(K, 4, H),
                       ((0, 0), (0, 0), (0, Hp - H))).reshape(K, 4 * Hp)

    w_in = jnp.pad(params["w_in"].astype(f32), ((0, 0), (0, Hp - H)))                 # (nx, Hp)
    b_in = jnp.pad(params["b_in"].astype(f32), (0, Hp - H)).reshape(1, Hp)            # (1, Hp)
    w_ih = pad_gate_cols(jnp.pad(params["w_ih"].astype(f32),
                                 ((0, Hp - H), (0, 0)))).astype(cd)                   # (Hp, 4Hp)
    w_hh = pad_gate_cols(jnp.pad(params["w_hh"].astype(f32),
                                 ((0, Hp - H), (0, 0)))).astype(cd)                   # (Hp, 4Hp)
    b_g = pad_gate_cols((params["b_ih"] + params["b_hh"]).astype(f32)
                        .reshape(1, 4 * H))                                           # (1, 4Hp)
    w_out = jnp.pad(params["w_out"].astype(f32), ((0, Hp - H), (0, 0)))               # (Hp, ny)
    b_out = params["b_out"].astype(f32).reshape(1, ny)                                # (1, ny)

    xp = jnp.pad(x.astype(f32), ((0, Tp - T), (0, Bp - B), (0, 0)))                   # (Tp, Bp, nx)

    # ---- kernel 1: input projection — flat row grid, decoupled from time_chunk ---------
    rows_total = Tp * Bp
    R = min(_round_up(row_block, 8), rows_total)          # >=512 rows/block when possible
    rows_pad = _round_up(rows_total, R)
    x_flat = jnp.pad(xp.reshape(rows_total, nx), ((0, rows_pad - rows_total), (0, 0)))
    n_rb = rows_pad // R

    gin_flat = pl.pallas_call(
        _input_proj_kernel,
        out_shape=jax.ShapeDtypeStruct((rows_pad, 4 * Hp), cd),
        grid_spec=pltpu.PrefetchScalarGridSpec(
            num_scalar_prefetch=0,
            grid=(n_rb,),
            in_specs=[
                pl.BlockSpec((R, nx), lambda i: (i, 0)),
                const((nx, Hp)), const((1, Hp)),
                const((Hp, 4 * Hp)), const((1, 4 * Hp)),
            ],
            out_specs=pl.BlockSpec((R, 4 * Hp), lambda i: (i, 0)),
        ),
        compiler_params=pltpu.CompilerParams(
            dimension_semantics=("parallel",),
            vmem_limit_bytes=_VMEM_LIMIT),
    )(x_flat, w_in, b_in, w_ih, b_g)
    gin = gin_flat[:rows_total].reshape(Tp, Bp, 4 * Hp)

    # ---- kernel 2: sequential recurrence with fused linearOut --------------------------
    out_pad = pl.pallas_call(
        _lstm_recurrence_kernel,
        out_shape=jax.ShapeDtypeStruct((Tp, Bp, ny), x.dtype),
        grid_spec=pltpu.PrefetchScalarGridSpec(
            num_scalar_prefetch=0,
            grid=(n_bc, n_tc),
            in_specs=[
                pl.BlockSpec((Tc, Bc, 4 * Hp), lambda b, t: (t, b, 0)),
                const((Hp, 4 * Hp)),
                const((Hp, ny)),
                const((1, ny)),
            ],
            out_specs=pl.BlockSpec((Tc, Bc, ny), lambda b, t: (t, b, 0)),
            scratch_shapes=[
                pltpu.VMEM((Bc, Hp), f32),      # h carry (kept f32)
                pltpu.VMEM((Bc, Hp), f32),      # c carry (kept f32)
            ],
        ),
        compiler_params=pltpu.CompilerParams(
            dimension_semantics=("parallel", "arbitrary"),   # batch shardable, time serial
            vmem_limit_bytes=_VMEM_LIMIT),
    )(gin, w_hh, w_out, b_out)

    return out_pad[:T, :B, :]


def _reference_forward(x, params):
    """Pure-JAX reference matching the PyTorch forward (eval mode, no dropout)."""
    H = params["w_hh"].shape[0]
    x0 = jax.nn.relu(jnp.einsum("tbi,ih->tbh", x, params["w_in"]) + params["b_in"])

    def step(carry, xt):
        h, c = carry
        gates = xt @ params["w_ih"] + params["b_ih"] + h @ params["w_hh"] + params["b_hh"]
        i, f, g, o = jnp.split(gates, 4, axis=-1)
        c = jax.nn.sigmoid(f) * c + jax.nn.sigmoid(i) * jnp.tanh(g)
        h = jax.nn.sigmoid(o) * jnp.tanh(c)
        return (h, c), h

    B = x.shape[1]
    h0 = jnp.zeros((B, H), jnp.float32)
    c0 = jnp.zeros((B, H), jnp.float32)
    _, hs = jax.lax.scan(step, (h0, c0), x0)
    return jnp.einsum("tbh,ho->tbo", hs, params["w_out"]) + params["b_out"]


def init_params(key, nx, ny, hidden):
    """Deterministic synthetic init (PyTorch-style uniform ranges, not a checkpoint)."""
    ks = jax.random.split(key, 8)
    u = lambda k, shape, s: jax.random.uniform(k, shape, jnp.float32, -s, s)
    s_in = 1.0 / jnp.sqrt(nx)
    s_h = 1.0 / jnp.sqrt(hidden)
    return {
        # stored already transposed for the kernels: (in, out)
        "w_in": u(ks[0], (nx, hidden), s_in),
        "b_in": u(ks[1], (hidden,), s_in),
        "w_ih": u(ks[2], (hidden, 4 * hidden), s_h),
        "b_ih": u(ks[3], (4 * hidden,), s_h),
        "w_hh": u(ks[4], (hidden, 4 * hidden), s_h),
        "b_hh": u(ks[5], (4 * hidden,), s_h),
        "w_out": u(ks[6], (hidden, ny), s_h),
        "b_out": u(ks[7], (ny,), s_h),
    }


if __name__ == "__main__":
    T, B, NX, H, NY = 8, 2, 4, 32, 2
    key = jax.random.PRNGKey(0)
    kx, kp = jax.random.split(key)
    x = jax.random.normal(kx, (T, B, NX), jnp.float32)   # time-major [seq, batch, nx]
    params = init_params(kp, NX, NY, H)

    ref = jax.block_until_ready(_reference_forward(x, params))

    def run(compute_dtype, single_buffer):
        # time_chunk=4 -> 2 time chunks, exercising the h/c VMEM carry across grid steps
        fwd = jax.jit(lambda xx, pp: cudnn_lstm_model_forward(
            xx, pp, time_chunk=4, compute_dtype=compute_dtype,
            single_buffer_weights=single_buffer))
        return jax.block_until_ready(fwd(x, params))

    single_buf = True
    try:
        out_f32 = run(jnp.float32, True)
    except Exception:
        # pl.Buffered(1) pipeline_mode not supported by this jax build -> default buffering
        single_buf = False
        out_f32 = run(jnp.float32, False)

    assert out_f32.shape == (T, B, NY)
    err32 = float(jnp.max(jnp.abs(out_f32 - ref)))
    assert err32 < 5e-3, f"f32 path mismatch vs reference (max |err| = {err32})"

    out_bf16 = run(jnp.bfloat16, single_buf)
    assert out_bf16.shape == (T, B, NY)
    err16 = float(jnp.max(jnp.abs(out_bf16 - ref)))
    assert err16 < 5e-2, f"bf16 path mismatch vs reference (max |err| = {err16})"

    print("KERNEL_OK")
</pallas_src>

<mosaic_0001>
module attributes {stable_mosaic.version = 11 : i64} {
  func.func @_input_proj_kernel(%arg0: i32, %arg1: memref<64x4xf32, #tpu.memory_space<vmem>>, %arg2: memref<4x128xf32, #tpu.memory_space<vmem>>, %arg3: memref<1x128xf32, #tpu.memory_space<vmem>>, %arg4: memref<128x512xf32, #tpu.memory_space<vmem>>, %arg5: memref<1x512xf32, #tpu.memory_space<vmem>>, %arg6: memref<64x512xf32, #tpu.memory_space<vmem>>) attributes {dimension_semantics = [#tpu.dimension_semantics<parallel>], iteration_bounds = array<i64: 1>, scalar_prefetch = 0 : i64, scratch_operands = 0 : i64, tpu.core_type = #tpu.core_type<tc>, window_params = [{transform_indices = @transform_0, window_bounds = array<i64: 64, 4>}, {pipeline_mode = #tpu.pipeline_mode<synchronous>, transform_indices = @transform_1, window_bounds = array<i64: 4, 128>}, {pipeline_mode = #tpu.pipeline_mode<synchronous>, transform_indices = @transform_2, window_bounds = array<i64: 1, 128>}, {pipeline_mode = #tpu.pipeline_mode<synchronous>, transform_indices = @transform_3, window_bounds = array<i64: 128, 512>}, {pipeline_mode = #tpu.pipeline_mode<synchronous>, transform_indices = @transform_4, window_bounds = array<i64: 1, 512>}, {transform_indices = @transform_5, window_bounds = array<i64: 64, 512>}]} {
    %c0 = arith.constant 0 : index
    %c0_0 = arith.constant 0 : index
    %0 = vector.load %arg1[%c0, %c0_0] : memref<64x4xf32, #tpu.memory_space<vmem>>, vector<64x4xf32>
    %c0_1 = arith.constant 0 : index
    %c0_2 = arith.constant 0 : index
    %1 = vector.load %arg2[%c0_1, %c0_2] : memref<4x128xf32, #tpu.memory_space<vmem>>, vector<4x128xf32>
    %cst = arith.constant dense<0.000000e+00> : vector<64x128xf32>
    %2 = tpu.matmul %0, %1, %cst {dimension_numbers = #tpu.dot_dimension_numbers<[1], [0], [0], [1], [0, 0, 1, 1], [], []>} : vector<64x4xf32>, vector<4x128xf32>, vector<64x128xf32> -> vector<64x128xf32>
    %c0_3 = arith.constant 0 : index
    %c0_4 = arith.constant 0 : index
    %3 = vector.load %arg3[%c0_3, %c0_4] : memref<1x128xf32, #tpu.memory_space<vmem>>, vector<1x128xf32>
    %4 = vector.broadcast %3 : vector<1x128xf32> to vector<64x128xf32>
    %5 = arith.addf %2, %4 : vector<64x128xf32>
    %cst_5 = arith.constant 0.000000e+00 : f32
    %6 = vector.broadcast %cst_5 : f32 to vector<64x128xf32>
    %7 = arith.maximumf %5, %6 : vector<64x128xf32>
    %c0_6 = arith.constant 0 : index
    %c0_7 = arith.constant 0 : index
    %8 = vector.load %arg4[%c0_6, %c0_7] : memref<128x512xf32, #tpu.memory_space<vmem>>, vector<128x512xf32>
    %cst_8 = arith.constant dense<0.000000e+00> : vector<64x512xf32>
    %9 = tpu.matmul %7, %8, %cst_8 {dimension_numbers = #tpu.dot_dimension_numbers<[1], [0], [0], [1], [0, 0, 1, 1], [], []>} : vector<64x128xf32>, vector<128x512xf32>, vector<64x512xf32> -> vector<64x512xf32>
    %c0_9 = arith.constant 0 : index
    %c0_10 = arith.constant 0 : index
    %10 = vector.load %arg5[%c0_9, %c0_10] : memref<1x512xf32, #tpu.memory_space<vmem>>, vector<1x512xf32>
    %11 = vector.broadcast %10 : vector<1x512xf32> to vector<64x512xf32>
    %12 = arith.addf %9, %11 : vector<64x512xf32>
    %c0_11 = arith.constant 0 : index
    %c0_12 = arith.constant 0 : index
    %13 = vector.load %arg6[%c0_11, %c0_12] : memref<64x512xf32, #tpu.memory_space<vmem>>, vector<64x512xf32>
    tpu.vector_store %arg6[%c0_11, %c0_12], %12 {strides = array<i32>} : memref<64x512xf32, #tpu.memory_space<vmem>>, vector<64x512xf32>,
    return
  }
  func.func @transform_0(%arg0: i32) -> (i32, i32) {
    %c0_i32 = arith.constant 0 : i32
    %c0_i32_0 = arith.constant 0 : i32
    return %arg0, %c0_i32 : i32, i32
  }
  func.func @transform_1(%arg0: i32) -> (i32, i32) {
    %c0_i32 = arith.constant 0 : i32
    %c0_i32_0 = arith.constant 0 : i32
    %c0_i32_1 = arith.constant 0 : i32
    return %c0_i32, %c0_i32_0 : i32, i32
  }
  func.func @transform_2(%arg0: i32) -> (i32, i32) {
    %c0_i32 = arith.constant 0 : i32
    %c0_i32_0 = arith.constant 0 : i32
    %c0_i32_1 = arith.constant 0 : i32
    return %c0_i32, %c0_i32_0 : i32, i32
  }
  func.func @transform_3(%arg0: i32) -> (i32, i32) {
    %c0_i32 = arith.constant 0 : i32
    %c0_i32_0 = arith.constant 0 : i32
    %c0_i32_1 = arith.constant 0 : i32
    return %c0_i32, %c0_i32_0 : i32, i32
  }
  func.func @transform_4(%arg0: i32) -> (i32, i32) {
    %c0_i32 = arith.constant 0 : i32
    %c0_i32_0 = arith.constant 0 : i32
    %c0_i32_1 = arith.constant 0 : i32
    return %c0_i32, %c0_i32_0 : i32, i32
  }
  func.func @transform_5(%arg0: i32) -> (i32, i32) {
    %c0_i32 = arith.constant 0 : i32
    %c0_i32_0 = arith.constant 0 : i32
    return %arg0, %c0_i32 : i32, i32
  }
}

module attributes {stable_mosaic.version = 11 : i64} {
  func.func @_lstm_recurrence_kernel(%arg0: i32, %arg1: i32, %arg2: memref<4x8x512xf32, #tpu.memory_space<vmem>>, %arg3: memref<128x512xf32, #tpu.memory_space<vmem>>, %arg4: memref<128x2xf32, #tpu.memory_space<vmem>>, %arg5: memref<1x2xf32, #tpu.memory_space<vmem>>, %arg6: memref<4x8x2xf32, #tpu.memory_space<vmem>>, %arg7: memref<8x128xf32, #tpu.memory_space<vmem>>, %arg8: memref<8x128xf32, #tpu.memory_space<vmem>>) attributes {dimension_semantics = [#tpu.dimension_semantics<parallel>, #tpu.dimension_semantics<arbitrary>], iteration_bounds = array<i64: 1, 2>, scalar_prefetch = 0 : i64, scratch_operands = 2 : i64, tpu.core_type = #tpu.core_type<tc>, window_params = [{transform_indices = @transform_0, window_bounds = array<i64: 4, 8, 512>}, {pipeline_mode = #tpu.pipeline_mode<synchronous>, transform_indices = @transform_1, window_bounds = array<i64: 128, 512>}, {pipeline_mode = #tpu.pipeline_mode<synchronous>, transform_indices = @transform_2, window_bounds = array<i64: 128, 2>}, {pipeline_mode = #tpu.pipeline_mode<synchronous>, transform_indices = @transform_3, window_bounds = array<i64: 1, 2>}, {transform_indices = @transform_4, window_bounds = array<i64: 4, 8, 2>}]} {
    %c0_i32 = arith.constant 0 : i32
    %0 = arith.cmpi eq, %arg1, %c0_i32 : i32
    %1 = arith.extui %0 : i1 to i32
    %c0_i32_0 = arith.constant 0 : i32
    %2 = arith.cmpi ne, %1, %c0_i32_0 : i32
    scf.if %2 {
      %cst_116 = arith.constant 0.000000e+00 : f32
      %203 = vector.broadcast %cst_116 : f32 to vector<8x128xf32>
      %c0_117 = arith.constant 0 : index
      %c0_118 = arith.constant 0 : index
      %204 = vector.load %arg7[%c0_117, %c0_118] : memref<8x128xf32, #tpu.memory_space<vmem>>, vector<8x128xf32>
      tpu.vector_store %arg7[%c0_117, %c0_118], %203 {strides = array<i32>} : memref<8x128xf32, #tpu.memory_space<vmem>>, vector<8x128xf32>,
      %cst_119 = arith.constant 0.000000e+00 : f32
      %205 = vector.broadcast %cst_119 : f32 to vector<8x128xf32>
      %c0_120 = arith.constant 0 : index
      %c0_121 = arith.constant 0 : index
      %206 = vector.load %arg8[%c0_120, %c0_121] : memref<8x128xf32, #tpu.memory_space<vmem>>, vector<8x128xf32>
      tpu.vector_store %arg8[%c0_120, %c0_121], %205 {strides = array<i32>} : memref<8x128xf32, #tpu.memory_space<vmem>>, vector<8x128xf32>,
    } else {
    }
    %c0_i32_1 = arith.constant 0 : i32
    %3 = arith.index_cast %c0_i32_1 : i32 to index
    %c0 = arith.constant 0 : index
    %c0_2 = arith.constant 0 : index
    %4 = vector.load %arg2[%3, %c0, %c0_2] : memref<4x8x512xf32, #tpu.memory_space<vmem>>, vector<1x8x512xf32>
    %5 = vector.shape_cast %4 : vector<1x8x512xf32> to vector<8x512xf32>
    %c0_3 = arith.constant 0 : index
    %c0_4 = arith.constant 0 : index
    %6 = vector.load %arg7[%c0_3, %c0_4] : memref<8x128xf32, #tpu.memory_space<vmem>>, vector<8x128xf32>
    %c0_5 = arith.constant 0 : index
    %c0_6 = arith.constant 0 : index
    %7 = vector.load %arg3[%c0_5, %c0_6] : memref<128x512xf32, #tpu.memory_space<vmem>>, vector<128x512xf32>
    %cst = arith.constant dense<0.000000e+00> : vector<8x512xf32>
    %8 = tpu.matmul %6, %7, %cst {dimension_numbers = #tpu.dot_dimension_numbers<[1], [0], [0], [1], [0, 0, 1, 1], [], []>} : vector<8x128xf32>, vector<128x512xf32>, vector<8x512xf32> -> vector<8x512xf32>
    %9 = arith.addf %5, %8 : vector<8x512xf32>
    %10 = vector.extract_strided_slice %9 {offsets = [0, 0], sizes = [8, 128], strides = [1, 1]} : vector<8x512xf32> to vector<8x128xf32>
    %cst_7 = arith.constant 5.000000e-01 : f32
    %11 = vector.broadcast %cst_7 : f32 to vector<8x128xf32>
    %12 = arith.mulf %11, %10 : vector<8x128xf32>
    %13 = math.tanh %12 : vector<8x128xf32>
    %cst_8 = arith.constant 5.000000e-01 : f32
    %14 = vector.broadcast %cst_8 : f32 to vector<8x128xf32>
    %15 = arith.mulf %14, %13 : vector<8x128xf32>
    %cst_9 = arith.constant 5.000000e-01 : f32
    %16 = vector.broadcast %cst_9 : f32 to vector<8x128xf32>
    %17 = arith.addf %15, %16 : vector<8x128xf32>
    %18 = vector.extract_strided_slice %9 {offsets = [0, 128], sizes = [8, 128], strides = [1, 1]} : vector<8x512xf32> to vector<8x128xf32>
    %cst_10 = arith.constant 5.000000e-01 : f32
    %19 = vector.broadcast %cst_10 : f32 to vector<8x128xf32>
    %20 = arith.mulf %19, %18 : vector<8x128xf32>
    %21 = math.tanh %20 : vector<8x128xf32>
    %cst_11 = arith.constant 5.000000e-01 : f32
    %22 = vector.broadcast %cst_11 : f32 to vector<8x128xf32>
    %23 = arith.mulf %22, %21 : vector<8x128xf32>
    %cst_12 = arith.constant 5.000000e-01 : f32
    %24 = vector.broadcast %cst_12 : f32 to vector<8x128xf32>
    %25 = arith.addf %23, %24 : vector<8x128xf32>
    %26 = vector.extract_strided_slice %9 {offsets = [0, 256], sizes = [8, 128], strides = [1, 1]} : vector<8x512xf32> to vector<8x128xf32>
    %27 = math.tanh %26 : vector<8x128xf32>
    %28 = vector.extract_strided_slice %9 {offsets = [0, 384], sizes = [8, 128], strides = [1, 1]} : vector<8x512xf32> to vector<8x128xf32>
    %cst_13 = arith.constant 5.000000e-01 : f32
    %29 = vector.broadcast %cst_13 : f32 to vector<8x128xf32>
    %30 = arith.mulf %29, %28 : vector<8x128xf32>
    %31 = math.tanh %30 : vector<8x128xf32>
    %cst_14 = arith.constant 5.000000e-01 : f32
    %32 = vector.broadcast %cst_14 : f32 to vector<8x128xf32>
    %33 = arith.mulf %32, %31 : vector<8x128xf32>
    %cst_15 = arith.constant 5.000000e-01 : f32
    %34 = vector.broadcast %cst_15 : f32 to vector<8x128xf32>
    %35 = arith.addf %33, %34 : vector<8x128xf32>
    %c0_16 = arith.constant 0 : index
    %c0_17 = arith.constant 0 : index
    %36 = vector.load %arg8[%c0_16, %c0_17] : memref<8x128xf32, #tpu.memory_space<vmem>>, vector<8x128xf32>
    %37 = arith.mulf %25, %36 : vector<8x128xf32>
    %38 = arith.mulf %17, %27 : vector<8x128xf32>
    %39 = arith.addf %37, %38 : vector<8x128xf32>
    %40 = math.tanh %39 : vector<8x128xf32>
    %41 = arith.mulf %35, %40 : vector<8x128xf32>
    %c0_18 = arith.constant 0 : index
    %c0_19 = arith.constant 0 : index
    %42 = vector.load %arg8[%c0_18, %c0_19] : memref<8x128xf32, #tpu.memory_space<vmem>>, vector<8x128xf32>
    tpu.vector_store %arg8[%c0_18, %c0_19], %39 {strides = array<i32>} : memref<8x128xf32, #tpu.memory_space<vmem>>, vector<8x128xf32>,
    %c0_20 = arith.constant 0 : index
    %c0_21 = arith.constant 0 : index
    %43 = vector.load %arg7[%c0_20, %c0_21] : memref<8x128xf32, #tpu.memory_space<vmem>>, vector<8x128xf32>
    tpu.vector_store %arg7[%c0_20, %c0_21], %41 {strides = array<i32>} : memref<8x128xf32, #tpu.memory_space<vmem>>, vector<8x128xf32>,
    %c0_22 = arith.constant 0 : index
    %c0_23 = arith.constant 0 : index
    %44 = vector.load %arg4[%c0_22, %c0_23] : memref<128x2xf32, #tpu.memory_space<vmem>>, vector<128x2xf32>
    %cst_24 = arith.constant dense<0.000000e+00> : vector<8x2xf32>
    %45 = tpu.matmul %41, %44, %cst_24 {dimension_numbers = #tpu.dot_dimension_numbers<[1], [0], [0], [1], [0, 0, 1, 1], [], []>} : vector<8x128xf32>, vector<128x2xf32>, vector<8x2xf32> -> vector<8x2xf32>
    %c0_25 = arith.constant 0 : index
    %c0_26 = arith.constant 0 : index
    %46 = vector.load %arg5[%c0_25, %c0_26] : memref<1x2xf32, #tpu.memory_space<vmem>>, vector<1x2xf32>
    %47 = vector.broadcast %46 : vector<1x2xf32> to vector<8x2xf32>
    %48 = arith.addf %45, %47 : vector<8x2xf32>
    %49 = arith.index_cast %c0_i32_1 : i32 to index
    %c0_27 = arith.constant 0 : index
    %c0_28 = arith.constant 0 : index
    %50 = vector.load %arg6[%49, %c0_27, %c0_28] : memref<4x8x2xf32, #tpu.memory_space<vmem>>, vector<1x8x2xf32>
    %51 = vector.shape_cast %50 : vector<1x8x2xf32> to vector<8x2xf32>
    %52 = vector.shape_cast %48 : vector<8x2xf32> to vector<1x8x2xf32>
    tpu.vector_store %arg6[%49, %c0_27, %c0_28], %52 {strides = array<i32>} : memref<4x8x2xf32, #tpu.memory_space<vmem>>, vector<1x8x2xf32>,
    %c1_i32 = arith.constant 1 : i32
    %53 = arith.index_cast %c1_i32 : i32 to index
    %c0_29 = arith.constant 0 : index
    %c0_30 = arith.constant 0 : index
    %54 = vector.load %arg2[%53, %c0_29, %c0_30] : memref<4x8x512xf32, #tpu.memory_space<vmem>>, vector<1x8x512xf32>
    %55 = vector.shape_cast %54 : vector<1x8x512xf32> to vector<8x512xf32>
    %c0_31 = arith.constant 0 : index
    %c0_32 = arith.constant 0 : index
    %56 = vector.load %arg7[%c0_31, %c0_32] : memref<8x128xf32, #tpu.memory_space<vmem>>, vector<8x128xf32>
    %c0_33 = arith.constant 0 : index
    %c0_34 = arith.constant 0 : index
    %57 = vector.load %arg3[%c0_33, %c0_34] : memref<128x512xf32, #tpu.memory_space<vmem>>, vector<128x512xf32>
    %cst_35 = arith.constant dense<0.000000e+00> : vector<8x512xf32>
    %58 = tpu.matmul %56, %57, %cst_35 {dimension_numbers = #tpu.dot_dimension_numbers<[1], [0], [0], [1], [0, 0, 1, 1], [], []>} : vector<8x128xf32>, vector<128x512xf32>, vector<8x512xf32> -> vector<8x512xf32>
    %59 = arith.addf %55, %58 : vector<8x512xf32>
    %60 = vector.extract_strided_slice %59 {offsets = [0, 0], sizes = [8, 128], strides = [1, 1]} : vector<8x512xf32> to vector<8x128xf32>
    %cst_36 = arith.constant 5.000000e-01 : f32
    %61 = vector.broadcast %cst_36 : f32 to vector<8x128xf32>
    %62 = arith.mulf %61, %60 : vector<8x128xf32>
    %63 = math.tanh %62 : vector<8x128xf32>
    %cst_37 = arith.constant 5.000000e-01 : f32
    %64 = vector.broadcast %cst_37 : f32 to vector<8x128xf32>
    %65 = arith.mulf %64, %63 : vector<8x128xf32>
    %cst_38 = arith.constant 5.000000e-01 : f32
    %66 = vector.broadcast %cst_38 : f32 to vector<8x128xf32>
    %67 = arith.addf %65, %66 : vector<8x128xf32>
    %68 = vector.extract_strided_slice %59 {offsets = [0, 128], sizes = [8, 128], strides = [1, 1]} : vector<8x512xf32> to vector<8x128xf32>
    %cst_39 = arith.constant 5.000000e-01 : f32
    %69 = vector.broadcast %cst_39 : f32 to vector<8x128xf32>
    %70 = arith.mulf %69, %68 : vector<8x128xf32>
    %71 = math.tanh %70 : vector<8x128xf32>
    %cst_40 = arith.constant 5.000000e-01 : f32
    %72 = vector.broadcast %cst_40 : f32 to vector<8x128xf32>
    %73 = arith.mulf %72, %71 : vector<8x128xf32>
    %cst_41 = arith.constant 5.000000e-01 : f32
    %74 = vector.broadcast %cst_41 : f32 to vector<8x128xf32>
    %75 = arith.addf %73, %74 : vector<8x128xf32>
    %76 = vector.extract_strided_slice %59 {offsets = [0, 256], sizes = [8, 128], strides = [1, 1]} : vector<8x512xf32> to vector<8x128xf32>
    %77 = math.tanh %76 : vector<8x128xf32>
    %78 = vector.extract_strided_slice %59 {offsets = [0, 384], sizes = [8, 128], strides = [1, 1]} : vector<8x512xf32> to vector<8x128xf32>
    %cst_42 = arith.constant 5.000000e-01 : f32
    %79 = vector.broadcast %cst_42 : f32 to vector<8x128xf32>
    %80 = arith.mulf %79, %78 : vector<8x128xf32>
    %81 = math.tanh %80 : vector<8x128xf32>
    %cst_43 = arith.constant 5.000000e-01 : f32
    %82 = vector.broadcast %cst_43 : f32 to vector<8x128xf32>
    %83 = arith.mulf %82, %81 : vector<8x128xf32>
    %cst_44 = arith.constant 5.000000e-01 : f32
    %84 = vector.broadcast %cst_44 : f32 to vector<8x128xf32>
    %85 = arith.addf %83, %84 : vector<8x128xf32>
    %c0_45 = arith.constant 0 : index
    %c0_46 = arith.constant 0 : index
    %86 = vector.load %arg8[%c0_45, %c0_46] : memref<8x128xf32, #tpu.memory_space<vmem>>, vector<8x128xf32>
    %87 = arith.mulf %75, %86 : vector<8x128xf32>
    %88 = arith.mulf %67, %77 : vector<8x128xf32>
    %89 = arith.addf %87, %88 : vector<8x128xf32>
    %90 = math.tanh %89 : vector<8x128xf32>
    %91 = arith.mulf %85, %90 : vector<8x128xf32>
    %c0_47 = arith.constant 0 : index
    %c0_48 = arith.constant 0 : index
    %92 = vector.load %arg8[%c0_47, %c0_48] : memref<8x128xf32, #tpu.memory_space<vmem>>, vector<8x128xf32>
    tpu.vector_store %arg8[%c0_47, %c0_48], %89 {strides = array<i32>} : memref<8x128xf32, #tpu.memory_space<vmem>>, vector<8x128xf32>,
    %c0_49 = arith.constant 0 : index
    %c0_50 = arith.constant 0 : index
    %93 = vector.load %arg7[%c0_49, %c0_50] : memref<8x128xf32, #tpu.memory_space<vmem>>, vector<8x128xf32>
    tpu.vector_store %arg7[%c0_49, %c0_50], %91 {strides = array<i32>} : memref<8x128xf32, #tpu.memory_space<vmem>>, vector<8x128xf32>,
    %c0_51 = arith.constant 0 : index
    %c0_52 = arith.constant 0 : index
    %94 = vector.load %arg4[%c0_51, %c0_52] : memref<128x2xf32, #tpu.memory_space<vmem>>, vector<128x2xf32>
    %cst_53 = arith.constant dense<0.000000e+00> : vector<8x2xf32>
    %95 = tpu.matmul %91, %94, %cst_53 {dimension_numbers = #tpu.dot_dimension_numbers<[1], [0], [0], [1], [0, 0, 1, 1], [], []>} : vector<8x128xf32>, vector<128x2xf32>, vector<8x2xf32> -> vector<8x2xf32>
    %c0_54 = arith.constant 0 : index
    %c0_55 = arith.constant 0 : index
    %96 = vector.load %arg5[%c0_54, %c0_55] : memref<1x2xf32, #tpu.memory_space<vmem>>, vector<1x2xf32>
    %97 = vector.broadcast %96 : vector<1x2xf32> to vector<8x2xf32>
    %98 = arith.addf %95, %97 : vector<8x2xf32>
    %99 = arith.index_cast %c1_i32 : i32 to index
    %c0_56 = arith.constant 0 : index
    %c0_57 = arith.constant 0 : index
    %100 = vector.load %arg6[%99, %c0_56, %c0_57] : memref<4x8x2xf32, #tpu.memory_space<vmem>>, vector<1x8x2xf32>
    %101 = vector.shape_cast %100 : vector<1x8x2xf32> to vector<8x2xf32>
    %102 = vector.shape_cast %98 : vector<8x2xf32> to vector<1x8x2xf32>
    tpu.vector_store %arg6[%99, %c0_56, %c0_57], %102 {strides = array<i32>} : memref<4x8x2xf32, #tpu.memory_space<vmem>>, vector<1x8x2xf32>,
    %c2_i32 = arith.constant 2 : i32
    %103 = arith.index_cast %c2_i32 : i32 to index
    %c0_58 = arith.constant 0 : index
    %c0_59 = arith.constant 0 : index
    %104 = vector.load %arg2[%103, %c0_58, %c0_59] : memref<4x8x512xf32, #tpu.memory_space<vmem>>, vector<1x8x512xf32>
    %105 = vector.shape_cast %104 : vector<1x8x512xf32> to vector<8x512xf32>
    %c0_60 = arith.constant 0 : index
    %c0_61 = arith.constant 0 : index
    %106 = vector.load %arg7[%c0_60, %c0_61] : memref<8x128xf32, #tpu.memory_space<vmem>>, vector<8x128xf32>
    %c0_62 = arith.constant 0 : index
    %c0_63 = arith.constant 0 : index
    %107 = vector.load %arg3[%c0_62, %c0_63] : memref<128x512xf32, #tpu.memory_space<vmem>>, vector<128x512xf32>
    %cst_64 = arith.constant dense<0.000000e+00> : vector<8x512xf32>
    %108 = tpu.matmul %106, %107, %cst_64 {dimension_numbers = #tpu.dot_dimension_numbers<[1], [0], [0], [1], [0, 0, 1, 1], [], []>} : vector<8x128xf32>, vector<128x512xf32>, vector<8x512xf32> -> vector<8x512xf32>
    %109 = arith.addf %105, %108 : vector<8x512xf32>
    %110 = vector.extract_strided_slice %109 {offsets = [0, 0], sizes = [8, 128], strides = [1, 1]} : vector<8x512xf32> to vector<8x128xf32>
    %cst_65 = arith.constant 5.000000e-01 : f32
    %111 = vector.broadcast %cst_65 : f32 to vector<8x128xf32>
    %112 = arith.mulf %111, %110 : vector<8x128xf32>
    %113 = math.tanh %112 : vector<8x128xf32>
    %cst_66 = arith.constant 5.000000e-01 : f32
    %114 = vector.broadcast %cst_66 : f32 to vector<8x128xf32>
    %115 = arith.mulf %114, %113 : vector<8x128xf32>
    %cst_67 = arith.constant 5.000000e-01 : f32
    %116 = vector.broadcast %cst_67 : f32 to vector<8x128xf32>
    %117 = arith.addf %115, %116 : vector<8x128xf32>
    %118 = vector.extract_strided_slice %109 {offsets = [0, 128], sizes = [8, 128], strides = [1, 1]} : vector<8x512xf32> to vector<8x128xf32>
    %cst_68 = arith.constant 5.000000e-01 : f32
    %119 = vector.broadcast %cst_68 : f32 to vector<8x128xf32>
    %120 = arith.mulf %119, %118 : vector<8x128xf32>
    %121 = math.tanh %120 : vector<8x128xf32>
    %cst_69 = arith.constant 5.000000e-01 : f32
    %122 = vector.broadcast %cst_69 : f32 to vector<8x128xf32>
    %123 = arith.mulf %122, %121 : vector<8x128xf32>
    %cst_70 = arith.constant 5.000000e-01 : f32
    %124 = vector.broadcast %cst_70 : f32 to vector<8x128xf32>
    %125 = arith.addf %123, %124 : vector<8x128xf32>
    %126 = vector.extract_strided_slice %109 {offsets = [0, 256], sizes = [8, 128], strides = [1, 1]} : vector<8x512xf32> to vector<8x128xf32>
    %127 = math.tanh %126 : vector<8x128xf32>
    %128 = vector.extract_strided_slice %109 {offsets = [0, 384], sizes = [8, 128], strides = [1, 1]} : vector<8x512xf32> to vector<8x128xf32>
    %cst_71 = arith.constant 5.000000e-01 : f32
    %129 = vector.broadcast %cst_71 : f32 to vector<8x128xf32>
    %130 = arith.mulf %129, %128 : vector<8x128xf32>
    %131 = math.tanh %130 : vector<8x128xf32>
    %cst_72 = arith.constant 5.000000e-01 : f32
    %132 = vector.broadcast %cst_72 : f32 to vector<8x128xf32>
    %133 = arith.mulf %132, %131 : vector<8x128xf32>
    %cst_73 = arith.constant 5.000000e-01 : f32
    %134 = vector.broadcast %cst_73 : f32 to vector<8x128xf32>
    %135 = arith.addf %133, %134 : vector<8x128xf32>
    %c0_74 = arith.constant 0 : index
    %c0_75 = arith.constant 0 : index
    %136 = vector.load %arg8[%c0_74, %c0_75] : memref<8x128xf32, #tpu.memory_space<vmem>>, vector<8x128xf32>
    %137 = arith.mulf %125, %136 : vector<8x128xf32>
    %138 = arith.mulf %117, %127 : vector<8x128xf32>
    %139 = arith.addf %137, %138 : vector<8x128xf32>
    %140 = math.tanh %139 : vector<8x128xf32>
    %141 = arith.mulf %135, %140 : vector<8x128xf32>
    %c0_76 = arith.constant 0 : index
    %c0_77 = arith.constant 0 : index
    %142 = vector.load %arg8[%c0_76, %c0_77] : memref<8x128xf32, #tpu.memory_space<vmem>>, vector<8x128xf32>
    tpu.vector_store %arg8[%c0_76, %c0_77], %139 {strides = array<i32>} : memref<8x128xf32, #tpu.memory_space<vmem>>, vector<8x128xf32>,
    %c0_78 = arith.constant 0 : index
    %c0_79 = arith.constant 0 : index
    %143 = vector.load %arg7[%c0_78, %c0_79] : memref<8x128xf32, #tpu.memory_space<vmem>>, vector<8x128xf32>
    tpu.vector_store %arg7[%c0_78, %c0_79], %141 {strides = array<i32>} : memref<8x128xf32, #tpu.memory_space<vmem>>, vector<8x128xf32>,
    %c0_80 = arith.constant 0 : index
    %c0_81 = arith.constant 0 : index
    %144 = vector.load %arg4[%c0_80, %c0_81] : memref<128x2xf32, #tpu.memory_space<vmem>>, vector<128x2xf32>
    %cst_82 = arith.constant dense<0.000000e+00> : vector<8x2xf32>
    %145 = tpu.matmul %141, %144, %cst_82 {dimension_numbers = #tpu.dot_dimension_numbers<[1], [0], [0], [1], [0, 0, 1, 1], [], []>} : vector<8x128xf32>, vector<128x2xf32>, vector<8x2xf32> -> vector<8x2xf32>
    %c0_83 = arith.constant 0 : index
    %c0_84 = arith.constant 0 : index
    %146 = vector.load %arg5[%c0_83, %c0_84] : memref<1x2xf32, #tpu.memory_space<vmem>>, vector<1x2xf32>
    %147 = vector.broadcast %146 : vector<1x2xf32> to vector<8x2xf32>
    %148 = arith.addf %145, %147 : vector<8x2xf32>
    %149 = arith.index_cast %c2_i32 : i32 to index
    %c0_85 = arith.constant 0 : index
    %c0_86 = arith.constant 0 : index
    %150 = vector.load %arg6[%149, %c0_85, %c0_86] : memref<4x8x2xf32, #tpu.memory_space<vmem>>, vector<1x8x2xf32>
    %151 = vector.shape_cast %150 : vector<1x8x2xf32> to vector<8x2xf32>
    %152 = vector.shape_cast %148 : vector<8x2xf32> to vector<1x8x2xf32>
    tpu.vector_store %arg6[%149, %c0_85, %c0_86], %152 {strides = array<i32>} : memref<4x8x2xf32, #tpu.memory_space<vmem>>, vector<1x8x2xf32>,
    %c3_i32 = arith.constant 3 : i32
    %153 = arith.index_cast %c3_i32 : i32 to index
    %c0_87 = arith.constant 0 : index
    %c0_88 = arith.constant 0 : index
    %154 = vector.load %arg2[%153, %c0_87, %c0_88] : memref<4x8x512xf32, #tpu.memory_space<vmem>>, vector<1x8x512xf32>
    %155 = vector.shape_cast %154 : vector<1x8x512xf32> to vector<8x512xf32>
    %c0_89 = arith.constant 0 : index
    %c0_90 = arith.constant 0 : index
    %156 = vector.load %arg7[%c0_89, %c0_90] : memref<8x128xf32, #tpu.memory_space<vmem>>, vector<8x128xf32>
    %c0_91 = arith.constant 0 : index
    %c0_92 = arith.constant 0 : index
    %157 = vector.load %arg3[%c0_91, %c0_92] : memref<128x512xf32, #tpu.memory_space<vmem>>, vector<128x512xf32>
    %cst_93 = arith.constant dense<0.000000e+00> : vector<8x512xf32>
    %158 = tpu.matmul %156, %157, %cst_93 {dimension_numbers = #tpu.dot_dimension_numbers<[1], [0], [0], [1], [0, 0, 1, 1], [], []>} : vector<8x128xf32>, vector<128x512xf32>, vector<8x512xf32> -> vector<8x512xf32>
    %159 = arith.addf %155, %158 : vector<8x512xf32>
    %160 = vector.extract_strided_slice %159 {offsets = [0, 0], sizes = [8, 128], strides = [1, 1]} : vector<8x512xf32> to vector<8x128xf32>
    %cst_94 = arith.constant 5.000000e-01 : f32
    %161 = vector.broadcast %cst_94 : f32 to vector<8x128xf32>
    %162 = arith.mulf %161, %160 : vector<8x128xf32>
    %163 = math.tanh %162 : vector<8x128xf32>
    %cst_95 = arith.constant 5.000000e-01 : f32
    %164 = vector.broadcast %cst_95 : f32 to vector<8x128xf32>
    %165 = arith.mulf %164, %163 : vector<8x128xf32>
    %cst_96 = arith.constant 5.000000e-01 : f32
    %166 = vector.broadcast %cst_96 : f32 to vector<8x128xf32>
    %167 = arith.addf %165, %166 : vector<8x128xf32>
    %168 = vector.extract_strided_slice %159 {offsets = [0, 128], sizes = [8, 128], strides = [1, 1]} : vector<8x512xf32> to vector<8x128xf32>
    %cst_97 = arith.constant 5.000000e-01 : f32
    %169 = vector.broadcast %cst_97 : f32 to vector<8x128xf32>
    %170 = arith.mulf %169, %168 : vector<8x128xf32>
    %171 = math.tanh %170 : vector<8x128xf32>
    %cst_98 = arith.constant 5.000000e-01 : f32
    %172 = vector.broadcast %cst_98 : f32 to vector<8x128xf32>
    %173 = arith.mulf %172, %171 : vector<8x128xf32>
    %cst_99 = arith.constant 5.000000e-01 : f32
    %174 = vector.broadcast %cst_99 : f32 to vector<8x128xf32>
    %175 = arith.addf %173, %174 : vector<8x128xf32>
    %176 = vector.extract_strided_slice %159 {offsets = [0, 256], sizes = [8, 128], strides = [1, 1]} : vector<8x512xf32> to vector<8x128xf32>
    %177 = math.tanh %176 : vector<8x128xf32>
    %178 = vector.extract_strided_slice %159 {offsets = [0, 384], sizes = [8, 128], strides = [1, 1]} : vector<8x512xf32> to vector<8x128xf32>
    %cst_100 = arith.constant 5.000000e-01 : f32
    %179 = vector.broadcast %cst_100 : f32 to vector<8x128xf32>
    %180 = arith.mulf %179, %178 : vector<8x128xf32>
    %181 = math.tanh %180 : vector<8x128xf32>
    %cst_101 = arith.constant 5.000000e-01 : f32
    %182 = vector.broadcast %cst_101 : f32 to vector<8x128xf32>
    %183 = arith.mulf %182, %181 : vector<8x128xf32>
    %cst_102 = arith.constant 5.000000e-01 : f32
    %184 = vector.broadcast %cst_102 : f32 to vector<8x128xf32>
    %185 = arith.addf %183, %184 : vector<8x128xf32>
    %c0_103 = arith.constant 0 : index
    %c0_104 = arith.constant 0 : index
    %186 = vector.load %arg8[%c0_103, %c0_104] : memref<8x128xf32, #tpu.memory_space<vmem>>, vector<8x128xf32>
    %187 = arith.mulf %175, %186 : vector<8x128xf32>
    %188 = arith.mulf %167, %177 : vector<8x128xf32>
    %189 = arith.addf %187, %188 : vector<8x128xf32>
    %190 = math.tanh %189 : vector<8x128xf32>
    %191 = arith.mulf %185, %190 : vector<8x128xf32>
    %c0_105 = arith.constant 0 : index
    %c0_106 = arith.constant 0 : index
    %192 = vector.load %arg8[%c0_105, %c0_106] : memref<8x128xf32, #tpu.memory_space<vmem>>, vector<8x128xf32>
    tpu.vector_store %arg8[%c0_105, %c0_106], %189 {strides = array<i32>} : memref<8x128xf32, #tpu.memory_space<vmem>>, vector<8x128xf32>,
    %c0_107 = arith.constant 0 : index
    %c0_108 = arith.constant 0 : index
    %193 = vector.load %arg7[%c0_107, %c0_108] : memref<8x128xf32, #tpu.memory_space<vmem>>, vector<8x128xf32>
    tpu.vector_store %arg7[%c0_107, %c0_108], %191 {strides = array<i32>} : memref<8x128xf32, #tpu.memory_space<vmem>>, vector<8x128xf32>,
    %c0_109 = arith.constant 0 : index
    %c0_110 = arith.constant 0 : index
    %194 = vector.load %arg4[%c0_109, %c0_110] : memref<128x2xf32, #tpu.memory_space<vmem>>, vector<128x2xf32>
    %cst_111 = arith.constant dense<0.000000e+00> : vector<8x2xf32>
    %195 = tpu.matmul %191, %194, %cst_111 {dimension_numbers = #tpu.dot_dimension_numbers<[1], [0], [0], [1], [0, 0, 1, 1], [], []>} : vector<8x128xf32>, vector<128x2xf32>, vector<8x2xf32> -> vector<8x2xf32>
    %c0_112 = arith.constant 0 : index
    %c0_113 = arith.constant 0 : index
    %196 = vector.load %arg5[%c0_112, %c0_113] : memref<1x2xf32, #tpu.memory_space<vmem>>, vector<1x2xf32>
    %197 = vector.broadcast %196 : vector<1x2xf32> to vector<8x2xf32>
    %198 = arith.addf %195, %197 : vector<8x2xf32>
    %199 = arith.index_cast %c3_i32 : i32 to index
    %c0_114 = arith.constant 0 : index
    %c0_115 = arith.constant 0 : index
    %200 = vector.load %arg6[%199, %c0_114, %c0_115] : memref<4x8x2xf32, #tpu.memory_space<vmem>>, vector<1x8x2xf32>
    %201 = vector.shape_cast %200 : vector<1x8x2xf32> to vector<8x2xf32>
    %202 = vector.shape_cast %198 : vector<8x2xf32> to vector<1x8x2xf32>
    tpu.vector_store %arg6[%199, %c0_114, %c0_115], %202 {strides = array<i32>} : memref<4x8x2xf32, #tpu.memory_space<vmem>>, vector<1x8x2xf32>,
    %c4_i32 = arith.constant 4 : i32
    return
  }
  func.func @transform_0(%arg0: i32, %arg1: i32) -> (i32, i32, i32) {
    %c0_i32 = arith.constant 0 : i32
    %c0_i32_0 = arith.constant 0 : i32
    return %arg1, %arg0, %c0_i32 : i32, i32, i32
  }
  func.func @transform_1(%arg0: i32, %arg1: i32) -> (i32, i32) {
    %c0_i32 = arith.constant 0 : i32
    %c0_i32_0 = arith.constant 0 : i32
    %c0_i32_1 = arith.constant 0 : i32
    return %c0_i32, %c0_i32_0 : i32, i32
  }
  func.func @transform_2(%arg0: i32, %arg1: i32) -> (i32, i32) {
    %c0_i32 = arith.constant 0 : i32
    %c0_i32_0 = arith.constant 0 : i32
    %c0_i32_1 = arith.constant 0 : i32
    return %c0_i32, %c0_i32_0 : i32, i32
  }
  func.func @transform_3(%arg0: i32, %arg1: i32) -> (i32, i32) {
    %c0_i32 = arith.constant 0 : i32
    %c0_i32_0 = arith.constant 0 : i32
    %c0_i32_1 = arith.constant 0 : i32
    return %c0_i32, %c0_i32_0 : i32, i32
  }
  func.func @transform_4(%arg0: i32, %arg1: i32) -> (i32, i32, i32) {
    %c0_i32 = arith.constant 0 : i32
    %c0_i32_0 = arith.constant 0 : i32
    return %arg1, %arg0, %c0_i32 : i32, i32, i32
  }
}

module attributes {stable_mosaic.version = 11 : i64} {
  func.func @_input_proj_kernel(%arg0: i32, %arg1: memref<64x4xf32, #tpu.memory_space<vmem>>, %arg2: memref<4x128xf32, #tpu.memory_space<vmem>>, %arg3: memref<1x128xf32, #tpu.memory_space<vmem>>, %arg4: memref<128x512xf32, #tpu.memory_space<vmem>>, %arg5: memref<1x512xf32, #tpu.memory_space<vmem>>, %arg6: memref<64x512xf32, #tpu.memory_space<vmem>>) attributes {dimension_semantics = [#tpu.dimension_semantics<parallel>], iteration_bounds = array<i64: 1>, scalar_prefetch = 0 : i64, scratch_operands = 0 : i64, tpu.core_type = #tpu.core_type<tc>, window_params = [{transform_indices = @transform_0, window_bounds = array<i64: 64, 4>}, {pipeline_mode = #tpu.pipeline_mode<synchronous>, transform_indices = @transform_1, window_bounds = array<i64: 4, 128>}, {pipeline_mode = #tpu.pipeline_mode<synchronous>, transform_indices = @transform_2, window_bounds = array<i64: 1, 128>}, {pipeline_mode = #tpu.pipeline_mode<synchronous>, transform_indices = @transform_3, window_bounds = array<i64: 128, 512>}, {pipeline_mode = #tpu.pipeline_mode<synchronous>, transform_indices = @transform_4, window_bounds = array<i64: 1, 512>}, {transform_indices = @transform_5, window_bounds = array<i64: 64, 512>}]} {
    %c0 = arith.constant 0 : index
    %c0_0 = arith.constant 0 : index
    %0 = vector.load %arg1[%c0, %c0_0] : memref<64x4xf32, #tpu.memory_space<vmem>>, vector<64x4xf32>
    %c0_1 = arith.constant 0 : index
    %c0_2 = arith.constant 0 : index
    %1 = vector.load %arg2[%c0_1, %c0_2] : memref<4x128xf32, #tpu.memory_space<vmem>>, vector<4x128xf32>
    %cst = arith.constant dense<0.000000e+00> : vector<64x128xf32>
    %2 = tpu.matmul %0, %1, %cst {dimension_numbers = #tpu.dot_dimension_numbers<[1], [0], [0], [1], [0, 0, 1, 1], [], []>} : vector<64x4xf32>, vector<4x128xf32>, vector<64x128xf32> -> vector<64x128xf32>
    %c0_3 = arith.constant 0 : index
    %c0_4 = arith.constant 0 : index
    %3 = vector.load %arg3[%c0_3, %c0_4] : memref<1x128xf32, #tpu.memory_space<vmem>>, vector<1x128xf32>
    %4 = vector.broadcast %3 : vector<1x128xf32> to vector<64x128xf32>
    %5 = arith.addf %2, %4 : vector<64x128xf32>
    %cst_5 = arith.constant 0.000000e+00 : f32
    %6 = vector.broadcast %cst_5 : f32 to vector<64x128xf32>
    %7 = arith.maximumf %5, %6 : vector<64x128xf32>
    %c0_6 = arith.constant 0 : index
    %c0_7 = arith.constant 0 : index
    %8 = vector.load %arg4[%c0_6, %c0_7] : memref<128x512xf32, #tpu.memory_space<vmem>>, vector<128x512xf32>
    %cst_8 = arith.constant dense<0.000000e+00> : vector<64x512xf32>
    %9 = tpu.matmul %7, %8, %cst_8 {dimension_numbers = #tpu.dot_dimension_numbers<[1], [0], [0], [1], [0, 0, 1, 1], [], []>} : vector<64x128xf32>, vector<128x512xf32>, vector<64x512xf32> -> vector<64x512xf32>
    %c0_9 = arith.constant 0 : index
    %c0_10 = arith.constant 0 : index
    %10 = vector.load %arg5[%c0_9, %c0_10] : memref<1x512xf32, #tpu.memory_space<vmem>>, vector<1x512xf32>
    %11 = vector.broadcast %10 : vector<1x512xf32> to vector<64x512xf32>
    %12 = arith.addf %9, %11 : vector<64x512xf32>
    %c0_11 = arith.constant 0 : index
    %c0_12 = arith.constant 0 : index
    %13 = vector.load %arg6[%c0_11, %c0_12] : memref<64x512xf32, #tpu.memory_space<vmem>>, vector<64x512xf32>
    tpu.vector_store %arg6[%c0_11, %c0_12], %12 {strides = array<i32>} : memref<64x512xf32, #tpu.memory_space<vmem>>, vector<64x512xf32>,
    return
  }
  func.func @transform_0(%arg0: i32) -> (i32, i32) {
    %c0_i32 = arith.constant 0 : i32
    %c0_i32_0 = arith.constant 0 : i32
    return %arg0, %c0_i32 : i32, i32
  }
  func.func @transform_1(%arg0: i32) -> (i32, i32) {
    %c0_i32 = arith.constant 0 : i32
    %c0_i32_0 = arith.constant 0 : i32
    %c0_i32_1 = arith.constant 0 : i32
    return %c0_i32, %c0_i32_0 : i32, i32
  }
  func.func @transform_2(%arg0: i32) -> (i32, i32) {
    %c0_i32 = arith.constant 0 : i32
    %c0_i32_0 = arith.constant 0 : i32
    %c0_i32_1 = arith.constant 0 : i32
    return %c0_i32, %c0_i32_0 : i32, i32
  }
  func.func @transform_3(%arg0: i32) -> (i32, i32) {
    %c0_i32 = arith.constant 0 : i32
    %c0_i32_0 = arith.constant 0 : i32
    %c0_i32_1 = arith.constant 0 : i32
    return %c0_i32, %c0_i32_0 : i32, i32
  }
  func.func @transform_4(%arg0: i32) -> (i32, i32) {
    %c0_i32 = arith.constant 0 : i32
    %c0_i32_0 = arith.constant 0 : i32
    %c0_i32_1 = arith.constant 0 : i32
    return %c0_i32, %c0_i32_0 : i32, i32
  }
  func.func @transform_5(%arg0: i32) -> (i32, i32) {
    %c0_i32 = arith.constant 0 : i32
    %c0_i32_0 = arith.constant 0 : i32
    return %arg0, %c0_i32 : i32, i32
  }
}

module attributes {stable_mosaic.version = 11 : i64} {
  func.func @_lstm_recurrence_kernel(%arg0: i32, %arg1: i32, %arg2: memref<4x8x512xf32, #tpu.memory_space<vmem>>, %arg3: memref<128x512xf32, #tpu.memory_space<vmem>>, %arg4: memref<128x2xf32, #tpu.memory_space<vmem>>, %arg5: memref<1x2xf32, #tpu.memory_space<vmem>>, %arg6: memref<4x8x2xf32, #tpu.memory_space<vmem>>, %arg7: memref<8x128xf32, #tpu.memory_space<vmem>>, %arg8: memref<8x128xf32, #tpu.memory_space<vmem>>) attributes {dimension_semantics = [#tpu.dimension_semantics<parallel>, #tpu.dimension_semantics<arbitrary>], iteration_bounds = array<i64: 1, 2>, scalar_prefetch = 0 : i64, scratch_operands = 2 : i64, tpu.core_type = #tpu.core_type<tc>, window_params = [{transform_indices = @transform_0, window_bounds = array<i64: 4, 8, 512>}, {pipeline_mode = #tpu.pipeline_mode<synchronous>, transform_indices = @transform_1, window_bounds = array<i64: 128, 512>}, {pipeline_mode = #tpu.pipeline_mode<synchronous>, transform_indices = @transform_2, window_bounds = array<i64: 128, 2>}, {pipeline_mode = #tpu.pipeline_mode<synchronous>, transform_indices = @transform_3, window_bounds = array<i64: 1, 2>}, {transform_indices = @transform_4, window_bounds = array<i64: 4, 8, 2>}]} {
    %c0_i32 = arith.constant 0 : i32
    %0 = arith.cmpi eq, %arg1, %c0_i32 : i32
    %1 = arith.extui %0 : i1 to i32
    %c0_i32_0 = arith.constant 0 : i32
    %2 = arith.cmpi ne, %1, %c0_i32_0 : i32
    scf.if %2 {
      %cst_116 = arith.constant 0.000000e+00 : f32
      %203 = vector.broadcast %cst_116 : f32 to vector<8x128xf32>
      %c0_117 = arith.constant 0 : index
      %c0_118 = arith.constant 0 : index
      %204 = vector.load %arg7[%c0_117, %c0_118] : memref<8x128xf32, #tpu.memory_space<vmem>>, vector<8x128xf32>
      tpu.vector_store %arg7[%c0_117, %c0_118], %203 {strides = array<i32>} : memref<8x128xf32, #tpu.memory_space<vmem>>, vector<8x128xf32>,
      %cst_119 = arith.constant 0.000000e+00 : f32
      %205 = vector.broadcast %cst_119 : f32 to vector<8x128xf32>
      %c0_120 = arith.constant 0 : index
      %c0_121 = arith.constant 0 : index
      %206 = vector.load %arg8[%c0_120, %c0_121] : memref<8x128xf32, #tpu.memory_space<vmem>>, vector<8x128xf32>
      tpu.vector_store %arg8[%c0_120, %c0_121], %205 {strides = array<i32>} : memref<8x128xf32, #tpu.memory_space<vmem>>, vector<8x128xf32>,
    } else {
    }
    %c0_i32_1 = arith.constant 0 : i32
    %3 = arith.index_cast %c0_i32_1 : i32 to index
    %c0 = arith.constant 0 : index
    %c0_2 = arith.constant 0 : index
    %4 = vector.load %arg2[%3, %c0, %c0_2] : memref<4x8x512xf32, #tpu.memory_space<vmem>>, vector<1x8x512xf32>
    %5 = vector.shape_cast %4 : vector<1x8x512xf32> to vector<8x512xf32>
    %c0_3 = arith.constant 0 : index
    %c0_4 = arith.constant 0 : index
    %6 = vector.load %arg7[%c0_3, %c0_4] : memref<8x128xf32, #tpu.memory_space<vmem>>, vector<8x128xf32>
    %c0_5 = arith.constant 0 : index
    %c0_6 = arith.constant 0 : index
    %7 = vector.load %arg3[%c0_5, %c0_6] : memref<128x512xf32, #tpu.memory_space<vmem>>, vector<128x512xf32>
    %cst = arith.constant dense<0.000000e+00> : vector<8x512xf32>
    %8 = tpu.matmul %6, %7, %cst {dimension_numbers = #tpu.dot_dimension_numbers<[1], [0], [0], [1], [0, 0, 1, 1], [], []>} : vector<8x128xf32>, vector<128x512xf32>, vector<8x512xf32> -> vector<8x512xf32>
    %9 = arith.addf %5, %8 : vector<8x512xf32>
    %10 = vector.extract_strided_slice %9 {offsets = [0, 0], sizes = [8, 128], strides = [1, 1]} : vector<8x512xf32> to vector<8x128xf32>
    %cst_7 = arith.constant 5.000000e-01 : f32
    %11 = vector.broadcast %cst_7 : f32 to vector<8x128xf32>
    %12 = arith.mulf %11, %10 : vector<8x128xf32>
    %13 = math.tanh %12 : vector<8x128xf32>
    %cst_8 = arith.constant 5.000000e-01 : f32
    %14 = vector.broadcast %cst_8 : f32 to vector<8x128xf32>
    %15 = arith.mulf %14, %13 : vector<8x128xf32>
    %cst_9 = arith.constant 5.000000e-01 : f32
    %16 = vector.broadcast %cst_9 : f32 to vector<8x128xf32>
    %17 = arith.addf %15, %16 : vector<8x128xf32>
    %18 = vector.extract_strided_slice %9 {offsets = [0, 128], sizes = [8, 128], strides = [1, 1]} : vector<8x512xf32> to vector<8x128xf32>
    %cst_10 = arith.constant 5.000000e-01 : f32
    %19 = vector.broadcast %cst_10 : f32 to vector<8x128xf32>
    %20 = arith.mulf %19, %18 : vector<8x128xf32>
    %21 = math.tanh %20 : vector<8x128xf32>
    %cst_11 = arith.constant 5.000000e-01 : f32
    %22 = vector.broadcast %cst_11 : f32 to vector<8x128xf32>
    %23 = arith.mulf %22, %21 : vector<8x128xf32>
    %cst_12 = arith.constant 5.000000e-01 : f32
    %24 = vector.broadcast %cst_12 : f32 to vector<8x128xf32>
    %25 = arith.addf %23, %24 : vector<8x128xf32>
    %26 = vector.extract_strided_slice %9 {offsets = [0, 256], sizes = [8, 128], strides = [1, 1]} : vector<8x512xf32> to vector<8x128xf32>
    %27 = math.tanh %26 : vector<8x128xf32>
    %28 = vector.extract_strided_slice %9 {offsets = [0, 384], sizes = [8, 128], strides = [1, 1]} : vector<8x512xf32> to vector<8x128xf32>
    %cst_13 = arith.constant 5.000000e-01 : f32
    %29 = vector.broadcast %cst_13 : f32 to vector<8x128xf32>
    %30 = arith.mulf %29, %28 : vector<8x128xf32>
    %31 = math.tanh %30 : vector<8x128xf32>
    %cst_14 = arith.constant 5.000000e-01 : f32
    %32 = vector.broadcast %cst_14 : f32 to vector<8x128xf32>
    %33 = arith.mulf %32, %31 : vector<8x128xf32>
    %cst_15 = arith.constant 5.000000e-01 : f32
    %34 = vector.broadcast %cst_15 : f32 to vector<8x128xf32>
    %35 = arith.addf %33, %34 : vector<8x128xf32>
    %c0_16 = arith.constant 0 : index
    %c0_17 = arith.constant 0 : index
    %36 = vector.load %arg8[%c0_16, %c0_17] : memref<8x128xf32, #tpu.memory_space<vmem>>, vector<8x128xf32>
    %37 = arith.mulf %25, %36 : vector<8x128xf32>
    %38 = arith.mulf %17, %27 : vector<8x128xf32>
    %39 = arith.addf %37, %38 : vector<8x128xf32>
    %40 = math.tanh %39 : vector<8x128xf32>
    %41 = arith.mulf %35, %40 : vector<8x128xf32>
    %c0_18 = arith.constant 0 : index
    %c0_19 = arith.constant 0 : index
    %42 = vector.load %arg8[%c0_18, %c0_19] : memref<8x128xf32, #tpu.memory_space<vmem>>, vector<8x128xf32>
    tpu.vector_store %arg8[%c0_18, %c0_19], %39 {strides = array<i32>} : memref<8x128xf32, #tpu.memory_space<vmem>>, vector<8x128xf32>,
    %c0_20 = arith.constant 0 : index
    %c0_21 = arith.constant 0 : index
    %43 = vector.load %arg7[%c0_20, %c0_21] : memref<8x128xf32, #tpu.memory_space<vmem>>, vector<8x128xf32>
    tpu.vector_store %arg7[%c0_20, %c0_21], %41 {strides = array<i32>} : memref<8x128xf32, #tpu.memory_space<vmem>>, vector<8x128xf32>,
    %c0_22 = arith.constant 0 : index
    %c0_23 = arith.constant 0 : index
    %44 = vector.load %arg4[%c0_22, %c0_23] : memref<128x2xf32, #tpu.memory_space<vmem>>, vector<128x2xf32>
    %cst_24 = arith.constant dense<0.000000e+00> : vector<8x2xf32>
    %45 = tpu.matmul %41, %44, %cst_24 {dimension_numbers = #tpu.dot_dimension_numbers<[1], [0], [0], [1], [0, 0, 1, 1], [], []>} : vector<8x128xf32>, vector<128x2xf32>, vector<8x2xf32> -> vector<8x2xf32>
    %c0_25 = arith.constant 0 : index
    %c0_26 = arith.constant 0 : index
    %46 = vector.load %arg5[%c0_25, %c0_26] : memref<1x2xf32, #tpu.memory_space<vmem>>, vector<1x2xf32>
    %47 = vector.broadcast %46 : vector<1x2xf32> to vector<8x2xf32>
    %48 = arith.addf %45, %47 : vector<8x2xf32>
    %49 = arith.index_cast %c0_i32_1 : i32 to index
    %c0_27 = arith.constant 0 : index
    %c0_28 = arith.constant 0 : index
    %50 = vector.load %arg6[%49, %c0_27, %c0_28] : memref<4x8x2xf32, #tpu.memory_space<vmem>>, vector<1x8x2xf32>
    %51 = vector.shape_cast %50 : vector<1x8x2xf32> to vector<8x2xf32>
    %52 = vector.shape_cast %48 : vector<8x2xf32> to vector<1x8x2xf32>
    tpu.vector_store %arg6[%49, %c0_27, %c0_28], %52 {strides = array<i32>} : memref<4x8x2xf32, #tpu.memory_space<vmem>>, vector<1x8x2xf32>,
    %c1_i32 = arith.constant 1 : i32
    %53 = arith.index_cast %c1_i32 : i32 to index
    %c0_29 = arith.constant 0 : index
    %c0_30 = arith.constant 0 : index
    %54 = vector.load %arg2[%53, %c0_29, %c0_30] : memref<4x8x512xf32, #tpu.memory_space<vmem>>, vector<1x8x512xf32>
    %55 = vector.shape_cast %54 : vector<1x8x512xf32> to vector<8x512xf32>
    %c0_31 = arith.constant 0 : index
    %c0_32 = arith.constant 0 : index
    %56 = vector.load %arg7[%c0_31, %c0_32] : memref<8x128xf32, #tpu.memory_space<vmem>>, vector<8x128xf32>
    %c0_33 = arith.constant 0 : index
    %c0_34 = arith.constant 0 : index
    %57 = vector.load %arg3[%c0_33, %c0_34] : memref<128x512xf32, #tpu.memory_space<vmem>>, vector<128x512xf32>
    %cst_35 = arith.constant dense<0.000000e+00> : vector<8x512xf32>
    %58 = tpu.matmul %56, %57, %cst_35 {dimension_numbers = #tpu.dot_dimension_numbers<[1], [0], [0], [1], [0, 0, 1, 1], [], []>} : vector<8x128xf32>, vector<128x512xf32>, vector<8x512xf32> -> vector<8x512xf32>
    %59 = arith.addf %55, %58 : vector<8x512xf32>
    %60 = vector.extract_strided_slice %59 {offsets = [0, 0], sizes = [8, 128], strides = [1, 1]} : vector<8x512xf32> to vector<8x128xf32>
    %cst_36 = arith.constant 5.000000e-01 : f32
    %61 = vector.broadcast %cst_36 : f32 to vector<8x128xf32>
    %62 = arith.mulf %61, %60 : vector<8x128xf32>
    %63 = math.tanh %62 : vector<8x128xf32>
    %cst_37 = arith.constant 5.000000e-01 : f32
    %64 = vector.broadcast %cst_37 : f32 to vector<8x128xf32>
    %65 = arith.mulf %64, %63 : vector<8x128xf32>
    %cst_38 = arith.constant 5.000000e-01 : f32
    %66 = vector.broadcast %cst_38 : f32 to vector<8x128xf32>
    %67 = arith.addf %65, %66 : vector<8x128xf32>
    %68 = vector.extract_strided_slice %59 {offsets = [0, 128], sizes = [8, 128], strides = [1, 1]} : vector<8x512xf32> to vector<8x128xf32>
    %cst_39 = arith.constant 5.000000e-01 : f32
    %69 = vector.broadcast %cst_39 : f32 to vector<8x128xf32>
    %70 = arith.mulf %69, %68 : vector<8x128xf32>
    %71 = math.tanh %70 : vector<8x128xf32>
    %cst_40 = arith.constant 5.000000e-01 : f32
    %72 = vector.broadcast %cst_40 : f32 to vector<8x128xf32>
    %73 = arith.mulf %72, %71 : vector<8x128xf32>
    %cst_41 = arith.constant 5.000000e-01 : f32
    %74 = vector.broadcast %cst_41 : f32 to vector<8x128xf32>
    %75 = arith.addf %73, %74 : vector<8x128xf32>
    %76 = vector.extract_strided_slice %59 {offsets = [0, 256], sizes = [8, 128], strides = [1, 1]} : vector<8x512xf32> to vector<8x128xf32>
    %77 = math.tanh %76 : vector<8x128xf32>
    %78 = vector.extract_strided_slice %59 {offsets = [0, 384], sizes = [8, 128], strides = [1, 1]} : vector<8x512xf32> to vector<8x128xf32>
    %cst_42 = arith.constant 5.000000e-01 : f32
    %79 = vector.broadcast %cst_42 : f32 to vector<8x128xf32>
    %80 = arith.mulf %79, %78 : vector<8x128xf32>
    %81 = math.tanh %80 : vector<8x128xf32>
    %cst_43 = arith.constant 5.000000e-01 : f32
    %82 = vector.broadcast %cst_43 : f32 to vector<8x128xf32>
    %83 = arith.mulf %82, %81 : vector<8x128xf32>
    %cst_44 = arith.constant 5.000000e-01 : f32
    %84 = vector.broadcast %cst_44 : f32 to vector<8x128xf32>
    %85 = arith.addf %83, %84 : vector<8x128xf32>
    %c0_45 = arith.constant 0 : index
    %c0_46 = arith.constant 0 : index
    %86 = vector.load %arg8[%c0_45, %c0_46] : memref<8x128xf32, #tpu.memory_space<vmem>>, vector<8x128xf32>
    %87 = arith.mulf %75, %86 : vector<8x128xf32>
    %88 = arith.mulf %67, %77 : vector<8x128xf32>
    %89 = arith.addf %87, %88 : vector<8x128xf32>
    %90 = math.tanh %89 : vector<8x128xf32>
    %91 = arith.mulf %85, %90 : vector<8x128xf32>
    %c0_47 = arith.constant 0 : index
    %c0_48 = arith.constant 0 : index
    %92 = vector.load %arg8[%c0_47, %c0_48] : memref<8x128xf32, #tpu.memory_space<vmem>>, vector<8x128xf32>
    tpu.vector_store %arg8[%c0_47, %c0_48], %89 {strides = array<i32>} : memref<8x128xf32, #tpu.memory_space<vmem>>, vector<8x128xf32>,
    %c0_49 = arith.constant 0 : index
    %c0_50 = arith.constant 0 : index
    %93 = vector.load %arg7[%c0_49, %c0_50] : memref<8x128xf32, #tpu.memory_space<vmem>>, vector<8x128xf32>
    tpu.vector_store %arg7[%c0_49, %c0_50], %91 {strides = array<i32>} : memref<8x128xf32, #tpu.memory_space<vmem>>, vector<8x128xf32>,
    %c0_51 = arith.constant 0 : index
    %c0_52 = arith.constant 0 : index
    %94 = vector.load %arg4[%c0_51, %c0_52] : memref<128x2xf32, #tpu.memory_space<vmem>>, vector<128x2xf32>
    %cst_53 = arith.constant dense<0.000000e+00> : vector<8x2xf32>
    %95 = tpu.matmul %91, %94, %cst_53 {dimension_numbers = #tpu.dot_dimension_numbers<[1], [0], [0], [1], [0, 0, 1, 1], [], []>} : vector<8x128xf32>, vector<128x2xf32>, vector<8x2xf32> -> vector<8x2xf32>
    %c0_54 = arith.constant 0 : index
    %c0_55 = arith.constant 0 : index
    %96 = vector.load %arg5[%c0_54, %c0_55] : memref<1x2xf32, #tpu.memory_space<vmem>>, vector<1x2xf32>
    %97 = vector.broadcast %96 : vector<1x2xf32> to vector<8x2xf32>
    %98 = arith.addf %95, %97 : vector<8x2xf32>
    %99 = arith.index_cast %c1_i32 : i32 to index
    %c0_56 = arith.constant 0 : index
    %c0_57 = arith.constant 0 : index
    %100 = vector.load %arg6[%99, %c0_56, %c0_57] : memref<4x8x2xf32, #tpu.memory_space<vmem>>, vector<1x8x2xf32>
    %101 = vector.shape_cast %100 : vector<1x8x2xf32> to vector<8x2xf32>
    %102 = vector.shape_cast %98 : vector<8x2xf32> to vector<1x8x2xf32>
    tpu.vector_store %arg6[%99, %c0_56, %c0_57], %102 {strides = array<i32>} : memref<4x8x2xf32, #tpu.memory_space<vmem>>, vector<1x8x2xf32>,
    %c2_i32 = arith.constant 2 : i32
    %103 = arith.index_cast %c2_i32 : i32 to index
    %c0_58 = arith.constant 0 : index
    %c0_59 = arith.constant 0 : index
    %104 = vector.load %arg2[%103, %c0_58, %c0_59] : memref<4x8x512xf32, #tpu.memory_space<vmem>>, vector<1x8x512xf32>
    %105 = vector.shape_cast %104 : vector<1x8x512xf32> to vector<8x512xf32>
    %c0_60 = arith.constant 0 : index
    %c0_61 = arith.constant 0 : index
    %106 = vector.load %arg7[%c0_60, %c0_61] : memref<8x128xf32, #tpu.memory_space<vmem>>, vector<8x128xf32>
    %c0_62 = arith.constant 0 : index
    %c0_63 = arith.constant 0 : index
    %107 = vector.load %arg3[%c0_62, %c0_63] : memref<128x512xf32, #tpu.memory_space<vmem>>, vector<128x512xf32>
    %cst_64 = arith.constant dense<0.000000e+00> : vector<8x512xf32>
    %108 = tpu.matmul %106, %107, %cst_64 {dimension_numbers = #tpu.dot_dimension_numbers<[1], [0], [0], [1], [0, 0, 1, 1], [], []>} : vector<8x128xf32>, vector<128x512xf32>, vector<8x512xf32> -> vector<8x512xf32>
    %109 = arith.addf %105, %108 : vector<8x512xf32>
    %110 = vector.extract_strided_slice %109 {offsets = [0, 0], sizes = [8, 128], strides = [1, 1]} : vector<8x512xf32> to vector<8x128xf32>
    %cst_65 = arith.constant 5.000000e-01 : f32
    %111 = vector.broadcast %cst_65 : f32 to vector<8x128xf32>
    %112 = arith.mulf %111, %110 : vector<8x128xf32>
    %113 = math.tanh %112 : vector<8x128xf32>
    %cst_66 = arith.constant 5.000000e-01 : f32
    %114 = vector.broadcast %cst_66 : f32 to vector<8x128xf32>
    %115 = arith.mulf %114, %113 : vector<8x128xf32>
    %cst_67 = arith.constant 5.000000e-01 : f32
    %116 = vector.broadcast %cst_67 : f32 to vector<8x128xf32>
    %117 = arith.addf %115, %116 : vector<8x128xf32>
    %118 = vector.extract_strided_slice %109 {offsets = [0, 128], sizes = [8, 128], strides = [1, 1]} : vector<8x512xf32> to vector<8x128xf32>
    %cst_68 = arith.constant 5.000000e-01 : f32
    %119 = vector.broadcast %cst_68 : f32 to vector<8x128xf32>
    %120 = arith.mulf %119, %118 : vector<8x128xf32>
    %121 = math.tanh %120 : vector<8x128xf32>
    %cst_69 = arith.constant 5.000000e-01 : f32
    %122 = vector.broadcast %cst_69 : f32 to vector<8x128xf32>
    %123 = arith.mulf %122, %121 : vector<8x128xf32>
    %cst_70 = arith.constant 5.000000e-01 : f32
    %124 = vector.broadcast %cst_70 : f32 to vector<8x128xf32>
    %125 = arith.addf %123, %124 : vector<8x128xf32>
    %126 = vector.extract_strided_slice %109 {offsets = [0, 256], sizes = [8, 128], strides = [1, 1]} : vector<8x512xf32> to vector<8x128xf32>
    %127 = math.tanh %126 : vector<8x128xf32>
    %128 = vector.extract_strided_slice %109 {offsets = [0, 384], sizes = [8, 128], strides = [1, 1]} : vector<8x512xf32> to vector<8x128xf32>
    %cst_71 = arith.constant 5.000000e-01 : f32
    %129 = vector.broadcast %cst_71 : f32 to vector<8x128xf32>
    %130 = arith.mulf %129, %128 : vector<8x128xf32>
    %131 = math.tanh %130 : vector<8x128xf32>
    %cst_72 = arith.constant 5.000000e-01 : f32
    %132 = vector.broadcast %cst_72 : f32 to vector<8x128xf32>
    %133 = arith.mulf %132, %131 : vector<8x128xf32>
    %cst_73 = arith.constant 5.000000e-01 : f32
    %134 = vector.broadcast %cst_73 : f32 to vector<8x128xf32>
    %135 = arith.addf %133, %134 : vector<8x128xf32>
    %c0_74 = arith.constant 0 : index
    %c0_75 = arith.constant 0 : index
    %136 = vector.load %arg8[%c0_74, %c0_75] : memref<8x128xf32, #tpu.memory_space<vmem>>, vector<8x128xf32>
    %137 = arith.mulf %125, %136 : vector<8x128xf32>
    %138 = arith.mulf %117, %127 : vector<8x128xf32>
    %139 = arith.addf %137, %138 : vector<8x128xf32>
    %140 = math.tanh %139 : vector<8x128xf32>
    %141 = arith.mulf %135, %140 : vector<8x128xf32>
    %c0_76 = arith.constant 0 : index
    %c0_77 = arith.constant 0 : index
    %142 = vector.load %arg8[%c0_76, %c0_77] : memref<8x128xf32, #tpu.memory_space<vmem>>, vector<8x128xf32>
    tpu.vector_store %arg8[%c0_76, %c0_77], %139 {strides = array<i32>} : memref<8x128xf32, #tpu.memory_space<vmem>>, vector<8x128xf32>,
    %c0_78 = arith.constant 0 : index
    %c0_79 = arith.constant 0 : index
    %143 = vector.load %arg7[%c0_78, %c0_79] : memref<8x128xf32, #tpu.memory_space<vmem>>, vector<8x128xf32>
    tpu.vector_store %arg7[%c0_78, %c0_79], %141 {strides = array<i32>} : memref<8x128xf32, #tpu.memory_space<vmem>>, vector<8x128xf32>,
    %c0_80 = arith.constant 0 : index
    %c0_81 = arith.constant 0 : index
    %144 = vector.load %arg4[%c0_80, %c0_81] : memref<128x2xf32, #tpu.memory_space<vmem>>, vector<128x2xf32>
    %cst_82 = arith.constant dense<0.000000e+00> : vector<8x2xf32>
    %145 = tpu.matmul %141, %144, %cst_82 {dimension_numbers = #tpu.dot_dimension_numbers<[1], [0], [0], [1], [0, 0, 1, 1], [], []>} : vector<8x128xf32>, vector<128x2xf32>, vector<8x2xf32> -> vector<8x2xf32>
    %c0_83 = arith.constant 0 : index
    %c0_84 = arith.constant 0 : index
    %146 = vector.load %arg5[%c0_83, %c0_84] : memref<1x2xf32, #tpu.memory_space<vmem>>, vector<1x2xf32>
    %147 = vector.broadcast %146 : vector<1x2xf32> to vector<8x2xf32>
    %148 = arith.addf %145, %147 : vector<8x2xf32>
    %149 = arith.index_cast %c2_i32 : i32 to index
    %c0_85 = arith.constant 0 : index
    %c0_86 = arith.constant 0 : index
    %150 = vector.load %arg6[%149, %c0_85, %c0_86] : memref<4x8x2xf32, #tpu.memory_space<vmem>>, vector<1x8x2xf32>
    %151 = vector.shape_cast %150 : vector<1x8x2xf32> to vector<8x2xf32>
    %152 = vector.shape_cast %148 : vector<8x2xf32> to vector<1x8x2xf32>
    tpu.vector_store %arg6[%149, %c0_85, %c0_86], %152 {strides = array<i32>} : memref<4x8x2xf32, #tpu.memory_space<vmem>>, vector<1x8x2xf32>,
    %c3_i32 = arith.constant 3 : i32
    %153 = arith.index_cast %c3_i32 : i32 to index
    %c0_87 = arith.constant 0 : index
    %c0_88 = arith.constant 0 : index
    %154 = vector.load %arg2[%153, %c0_87, %c0_88] : memref<4x8x512xf32, #tpu.memory_space<vmem>>, vector<1x8x512xf32>
    %155 = vector.shape_cast %154 : vector<1x8x512xf32> to vector<8x512xf32>
    %c0_89 = arith.constant 0 : index
    %c0_90 = arith.constant 0 : index
    %156 = vector.load %arg7[%c0_89, %c0_90] : memref<8x128xf32, #tpu.memory_space<vmem>>, vector<8x128xf32>
    %c0_91 = arith.constant 0 : index
    %c0_92 = arith.constant 0 : index
    %157 = vector.load %arg3[%c0_91, %c0_92] : memref<128x512xf32, #tpu.memory_space<vmem>>, vector<128x512xf32>
    %cst_93 = arith.constant dense<0.000000e+00> : vector<8x512xf32>
    %158 = tpu.matmul %156, %157, %cst_93 {dimension_numbers = #tpu.dot_dimension_numbers<[1], [0], [0], [1], [0, 0, 1, 1], [], []>} : vector<8x128xf32>, vector<128x512xf32>, vector<8x512xf32> -> vector<8x512xf32>
    %159 = arith.addf %155, %158 : vector<8x512xf32>
    %160 = vector.extract_strided_slice %159 {offsets = [0, 0], sizes = [8, 128], strides = [1, 1]} : vector<8x512xf32> to vector<8x128xf32>
    %cst_94 = arith.constant 5.000000e-01 : f32
    %161 = vector.broadcast %cst_94 : f32 to vector<8x128xf32>
    %162 = arith.mulf %161, %160 : vector<8x128xf32>
    %163 = math.tanh %162 : vector<8x128xf32>
    %cst_95 = arith.constant 5.000000e-01 : f32
    %164 = vector.broadcast %cst_95 : f32 to vector<8x128xf32>
    %165 = arith.mulf %164, %163 : vector<8x128xf32>
    %cst_96 = arith.constant 5.000000e-01 : f32
    %166 = vector.broadcast %cst_96 : f32 to vector<8x128xf32>
    %167 = arith.addf %165, %166 : vector<8x128xf32>
    %168 = vector.extract_strided_slice %159 {offsets = [0, 128], sizes = [8, 128], strides = [1, 1]} : vector<8x512xf32> to vector<8x128xf32>
    %cst_97 = arith.constant 5.000000e-01 : f32
    %169 = vector.broadcast %cst_97 : f32 to vector<8x128xf32>
    %170 = arith.mulf %169, %168 : vector<8x128xf32>
    %171 = math.tanh %170 : vector<8x128xf32>
    %cst_98 = arith.constant 5.000000e-01 : f32
    %172 = vector.broadcast %cst_98 : f32 to vector<8x128xf32>
    %173 = arith.mulf %172, %171 : vector<8x128xf32>
    %cst_99 = arith.constant 5.000000e-01 : f32
    %174 = vector.broadcast %cst_99 : f32 to vector<8x128xf32>
    %175 = arith.addf %173, %174 : vector<8x128xf32>
    %176 = vector.extract_strided_slice %159 {offsets = [0, 256], sizes = [8, 128], strides = [1, 1]} : vector<8x512xf32> to vector<8x128xf32>
    %177 = math.tanh %176 : vector<8x128xf32>
    %178 = vector.extract_strided_slice %159 {offsets = [0, 384], sizes = [8, 128], strides = [1, 1]} : vector<8x512xf32> to vector<8x128xf32>
    %cst_100 = arith.constant 5.000000e-01 : f32
    %179 = vector.broadcast %cst_100 : f32 to vector<8x128xf32>
    %180 = arith.mulf %179, %178 : vector<8x128xf32>
    %181 = math.tanh %180 : vector<8x128xf32>
    %cst_101 = arith.constant 5.000000e-01 : f32
    %182 = vector.broadcast %cst_101 : f32 to vector<8x128xf32>
    %183 = arith.mulf %182, %181 : vector<8x128xf32>
    %cst_102 = arith.constant 5.000000e-01 : f32
    %184 = vector.broadcast %cst_102 : f32 to vector<8x128xf32>
    %185 = arith.addf %183, %184 : vector<8x128xf32>
    %c0_103 = arith.constant 0 : index
    %c0_104 = arith.constant 0 : index
    %186 = vector.load %arg8[%c0_103, %c0_104] : memref<8x128xf32, #tpu.memory_space<vmem>>, vector<8x128xf32>
    %187 = arith.mulf %175, %186 : vector<8x128xf32>
    %188 = arith.mulf %167, %177 : vector<8x128xf32>
    %189 = arith.addf %187, %188 : vector<8x128xf32>
    %190 = math.tanh %189 : vector<8x128xf32>
    %191 = arith.mulf %185, %190 : vector<8x128xf32>
    %c0_105 = arith.constant 0 : index
    %c0_106 = arith.constant 0 : index
    %192 = vector.load %arg8[%c0_105, %c0_106] : memref<8x128xf32, #tpu.memory_space<vmem>>, vector<8x128xf32>
    tpu.vector_store %arg8[%c0_105, %c0_106], %189 {strides = array<i32>} : memref<8x128xf32, #tpu.memory_space<vmem>>, vector<8x128xf32>,
    %c0_107 = arith.constant 0 : index
    %c0_108 = arith.constant 0 : index
    %193 = vector.load %arg7[%c0_107, %c0_108] : memref<8x128xf32, #tpu.memory_space<vmem>>, vector<8x128xf32>
    tpu.vector_store %arg7[%c0_107, %c0_108], %191 {strides = array<i32>} : memref<8x128xf32, #tpu.memory_space<vmem>>, vector<8x128xf32>,
    %c0_109 = arith.constant 0 : index
    %c0_110 = arith.constant 0 : index
    %194 = vector.load %arg4[%c0_109, %c0_110] : memref<128x2xf32, #tpu.memory_space<vmem>>, vector<128x2xf32>
    %cst_111 = arith.constant dense<0.000000e+00> : vector<8x2xf32>
    %195 = tpu.matmul %191, %194, %cst_111 {dimension_numbers = #tpu.dot_dimension_numbers<[1], [0], [0], [1], [0, 0, 1, 1], [], []>} : vector<8x128xf32>, vector<128x2xf32>, vector<8x2xf32> -> vector<8x2xf32>
    %c0_112 = arith.constant 0 : index
    %c0_113 = arith.constant 0 : index
    %196 = vector.load %arg5[%c0_112, %c0_113] : memref<1x2xf32, #tpu.memory_space<vmem>>, vector<1x2xf32>
    %197 = vector.broadcast %196 : vector<1x2xf32> to vector<8x2xf32>
    %198 = arith.addf %195, %197 : vector<8x2xf32>
    %199 = arith.index_cast %c3_i32 : i32 to index
    %c0_114 = arith.constant 0 : index
    %c0_115 = arith.constant 0 : index
    %200 = vector.load %arg6[%199, %c0_114, %c0_115] : memref<4x8x2xf32, #tpu.memory_space<vmem>>, vector<1x8x2xf32>
    %201 = vector.shape_cast %200 : vector<1x8x2xf32> to vector<8x2xf32>
    %202 = vector.shape_cast %198 : vector<8x2xf32> to vector<1x8x2xf32>
    tpu.vector_store %arg6[%199, %c0_114, %c0_115], %202 {strides = array<i32>} : memref<4x8x2xf32, #tpu.memory_space<vmem>>, vector<1x8x2xf32>,
    %c4_i32 = arith.constant 4 : i32
    return
  }
  func.func @transform_0(%arg0: i32, %arg1: i32) -> (i32, i32, i32) {
    %c0_i32 = arith.constant 0 : i32
    %c0_i32_0 = arith.constant 0 : i32
    return %arg1, %arg0, %c0_i32 : i32, i32, i32
  }
  func.func @transform_1(%arg0: i32, %arg1: i32) -> (i32, i32) {
    %c0_i32 = arith.constant 0 : i32
    %c0_i32_0 = arith.constant 0 : i32
    %c0_i32_1 = arith.constant 0 : i32
    return %c0_i32, %c0_i32_0 : i32, i32
  }
  func.func @transform_2(%arg0: i32, %arg1: i32) -> (i32, i32) {
    %c0_i32 = arith.constant 0 : i32
    %c0_i32_0 = arith.constant 0 : i32
    %c0_i32_1 = arith.constant 0 : i32
    return %c0_i32, %c0_i32_0 : i32, i32
  }
  func.func @transform_3(%arg0: i32, %arg1: i32) -> (i32, i32) {
    %c0_i32 = arith.constant 0 : i32
    %c0_i32_0 = arith.constant 0 : i32
    %c0_i32_1 = arith.constant 0 : i32
    return %c0_i32, %c0_i32_0 : i32, i32
  }
  func.func @transform_4(%arg0: i32, %arg1: i32) -> (i32, i32, i32) {
    %c0_i32 = arith.constant 0 : i32
    %c0_i32_0 = arith.constant 0 : i32
    return %arg1, %arg0, %c0_i32 : i32, i32, i32
  }
}

</mosaic_0001>

<llo_original>
// kernel: _lambda_.2
$region0: #{_lambda_.2}
  #allocation0 [shape = 'u32[]', space=smem, size = 0x4, offset = 0x4, fixed_abs, tag = 'smem constant byte address 0x4 - core index']
  #allocation1 [shape = 'u32[144,128]{1,0:T(1,128)}', space=vmem, size = 0x12000, scoped, tag = 'internal scratch']
  %s0 = inlined_call_operand.hbm [shape: f32[64,4], index: 0, kind: input, shape index: {}]
  %s1 = inlined_call_operand.hbm [shape: f32[4,128], index: 1, kind: input, shape index: {}]
  %s2 = inlined_call_operand.hbm [shape: f32[1,128], index: 2, kind: input, shape index: {}]
  %s3 = inlined_call_operand.hbm [shape: f32[128,512], index: 3, kind: input, shape index: {}]
  %s4 = inlined_call_operand.hbm [shape: f32[1,512], index: 4, kind: input, shape index: {}]
  %s5 = inlined_call_operand.hbm [shape: f32[64,512], index: 5, kind: output, shape index: {}]
  %s6 = sld [smem:[#allocation0]]
  $region50: #{_lambda_.2} parent=0
    _
  %s8 = ssub.s32 1, %s6
  %s9 = scalar_select 0, %s8, %s6
  $region1: #{_lambda_.2} parent=0
    #allocation2 [shape = 'u8[32768]{0}', space=vmem, size = 0x8000, scoped, tag = 'input window, operand 0, single buffered']
    #allocation3 [shape = 's32[1]{0}', space=sflag, size = 0x4, scoped, tag = 'scoped memory for _lambda_.2']
    #allocation4 [shape = 's32[1]{0}', space=sflag, size = 0x4, scoped, tag = 'scoped memory for _lambda_.2']
    #allocation5 [shape = 'u8[2048]{0}', space=vmem, size = 0x800, scoped, tag = 'input window, operand 1, single buffered']
    #allocation6 [shape = 's32[1]{0}', space=sflag, size = 0x4, scoped, tag = 'scoped memory for _lambda_.2']
    #allocation7 [shape = 'u8[512]{0}', space=vmem, size = 0x400, scoped, tag = 'input window, operand 2, single buffered']
    #allocation8 [shape = 'u8[262144]{0}', space=vmem, size = 0x40000, scoped, tag = 'input window, operand 3, single buffered']
    #allocation9 [shape = 's32[1]{0}', space=sflag, size = 0x4, scoped, tag = 'scoped memory for _lambda_.2']
    #allocation10 [shape = 'u8[2048]{0}', space=vmem, size = 0x800, scoped, tag = 'input window, operand 4, single buffered']
    #allocation11 [shape = 'u8[131072]{0}', space=vmem, size = 0x20000, scoped, tag = 'output window, operand 0, single buffered']
    %10 = vsyncpa [#allocation3], 0
    %11 = vsyncpa [#allocation6], 0
    %12 = vsyncpa [#allocation9], 0
    %13 = vsyncpa [#allocation4], 0
    // Predicated region
    $region2: #{_lambda_.2} parent=1 // pred_check
      _
    $region3: #{_lambda_.2} parent=1 // pred_check_branch
      %15 = sbr.rel (0) target = $region5
    $region4: #{_lambda_.2} parent=1 // pred_region
      %s17 = ssub.s32 1024, 1024
      %18 = vsyncadd [#allocation3], %s17
      %s19 = sshll.u32 [#allocation2], 4
      %s20 = int_to_ptr.vmem [resolvable:$true] %s19
      %25 = dma.hbm_to_vmem [thread:$0]  %s0, 1024, %s20, [#allocation3], 128, 128, 8
    $region5: #{_lambda_.2} parent=1 // pred_fallthru
      _
    // Predicated region
    $region6: #{_lambda_.2} parent=1 // pred_check
      _
    $region7: #{_lambda_.2} parent=1 // pred_check_branch
      %27 = sbr.rel (0) target = $region9
    $region8: #{_lambda_.2} parent=1 // pred_region
      %s29 = ssub.s32 64, 64
      %30 = vsyncadd [#allocation6], %s29
      %s32 = sshll.u32 [#allocation5], 4
      %s33 = int_to_ptr.vmem [resolvable:$true] %s32
      %35 = dma.hbm_to_vmem [thread:$0]  %s1, 64, %s33, [#allocation6]
    $region9: #{_lambda_.2} parent=1 // pred_fallthru
      _
    // Predicated region
    $region10: #{_lambda_.2} parent=1 // pred_check
      _
    $region11: #{_lambda_.2} parent=1 // pred_check_branch
      %37 = sbr.rel (0) target = $region13
    $region12: #{_lambda_.2} parent=1 // pred_region
      %s39 = ssub.s32 16, 16
      %40 = vsyncadd [#allocation6], %s39
      %s42 = sshll.u32 [#allocation7], 4
      %s43 = int_to_ptr.vmem [resolvable:$true] %s42
      %45 = dma.hbm_to_vmem [thread:$0]  %s2, 16, %s43, [#allocation6]
    $region13: #{_lambda_.2} parent=1 // pred_fallthru
      _
    // Predicated region
    $region14: #{_lambda_.2} parent=1 // pred_check
      _
    $region15: #{_lambda_.2} parent=1 // pred_check_branch
      %47 = sbr.rel (0) target = $region17
    $region16: #{_lambda_.2} parent=1 // pred_region
      %s49 = ssub.s32 8192, 8192
      %50 = vsyncadd [#allocation9], %s49
      %s51 = sshll.u32 [#allocation8], 4
      %s52 = int_to_ptr.vmem [resolvable:$true] %s51
      %57 = dma.hbm_to_vmem [thread:$0]  %s3, 8192, %s52, [#allocation9], 512, 512, 32
    $region17: #{_lambda_.2} parent=1 // pred_fallthru
      _
    // Predicated region
    $region18: #{_lambda_.2} parent=1 // pred_check
      _
    $region19: #{_lambda_.2} parent=1 // pred_check_branch
      %59 = sbr.rel (0) target = $region21
    $region20: #{_lambda_.2} parent=1 // pred_region
      %s61 = ssub.s32 64, 64
      %62 = vsyncadd [#allocation9], %s61
      %s64 = sshll.u32 [#allocation10], 4
      %s65 = int_to_ptr.vmem [resolvable:$true] %s64
      %67 = dma.hbm_to_vmem [thread:$0]  %s4, 64, %s65, [#allocation9]
    $region21: #{_lambda_.2} parent=1 // pred_fallthru
      _
    // Predicated region
    $region22: #{_lambda_.2} parent=1 // pred_check
      _
    $region23: #{_lambda_.2} parent=1 // pred_check_branch
      %69 = sbr.rel (0) target = $region25
    $region24: #{_lambda_.2} parent=1 // pred_region
      %70 = dma.done [#allocation3], 1024
    $region25: #{_lambda_.2} parent=1 // pred_fallthru
      _
    // Predicated region
    $region26: #{_lambda_.2} parent=1 // pred_check
      _
    $region27: #{_lambda_.2} parent=1 // pred_check_branch
      %72 = sbr.rel (0) target = $region29
    $region28: #{_lambda_.2} parent=1 // pred_region
      %73 = dma.done [#allocation6], 64
    $region29: #{_lambda_.2} parent=1 // pred_fallthru
      _
    // Predicated region
    $region30: #{_lambda_.2} parent=1 // pred_check
      _
    $region31: #{_lambda_.2} parent=1 // pred_check_branch
      %75 = sbr.rel (0) target = $region33
    $region32: #{_lambda_.2} parent=1 // pred_region
      %76 = dma.done [#allocation6], 16
    $region33: #{_lambda_.2} parent=1 // pred_fallthru
      _
    // Predicated region
    $region34: #{_lambda_.2} parent=1 // pred_check
      _
    $region35: #{_lambda_.2} parent=1 // pred_check_branch
      %78 = sbr.rel (0) target = $region37
    $region36: #{_lambda_.2} parent=1 // pred_region
      %79 = dma.done [#allocation9], 8192
    $region37: #{_lambda_.2} parent=1 // pred_fallthru
      _
    // Predicated region
    $region38: #{_lambda_.2} parent=1 // pred_check
      _
    $region39: #{_lambda_.2} parent=1 // pred_check_branch
      %81 = sbr.rel (0) target = $region41
    $region40: #{_lambda_.2} parent=1 // pred_region
      %82 = dma.done [#allocation9], 64
    $region41: #{_lambda_.2} parent=1 // pred_fallthru
      _
    %v83 = vld [vmem:[#allocation2] sm:$0xff]
    %v84 = vld [vmem:[#allocation2 + $0x8] sm:$0xff]
    %v85 = vld [vmem:[#allocation2 + $0x10] sm:$0xff]
    %v86 = vld [vmem:[#allocation2 + $0x18] sm:$0xff]
    %v87 = vld [vmem:[#allocation2 + $0x20] sm:$0xff]
    %v88 = vld [vmem:[#allocation2 + $0x28] sm:$0xff]
    %v89 = vld [vmem:[#allocation2 + $0x30] sm:$0xff]
    %v90 = vld [vmem:[#allocation2 + $0x38] sm:$0xff]
    %v91 = vld [vmem:[#allocation5] sm:$0xf]
    %v92 = vld [vmem:[#allocation7] sm:$0x1]
    %v94 = vlaneseq
    %v95 = vshrl.u32 %v94, 7
    %v96 = vsub.s32 0, %v95
    %v97 = vrot.slane %v92, %v96
    %vm99 = vcmask 31744
    %v101 = vsel %vm99, %v83, 0
    %v104 = vsel %vm99, %v84, 0
    %v107 = vsel %vm99, %v85, 0
    %v110 = vsel %vm99, %v86, 0
    %v113 = vsel %vm99, %v87, 0
    %v116 = vsel %vm99, %v88, 0
    %v119 = vsel %vm99, %v89, 0
    %v122 = vsel %vm99, %v90, 0
    %vm124 = vcmask 1043456
    %v126 = vsel %vm124, %v91, 0
    %128 = vmatprep.subr.mxu0 0.0
    %129 = vmatpush1.msra.mxu0 %v126
    %130 = vmatprep.subr.mxu0 0.0
    %131 = vmatpush1.msra.mxu0 0.0
    %132 = vmatprep.subr.mxu0 0.0
    %133 = vmatpush1.msra.mxu0 0.0
    %134 = vmatprep.subr.mxu0 0.0
    %135 = vmatpush1.msra.mxu0 0.0
    %136 = vmatprep.subr.mxu0 0.0
    %137 = vmatpush1.msra.mxu0 0.0
    %138 = vmatprep.subr.mxu0 0.0
    %139 = vmatpush1.msra.mxu0 0.0
    %140 = vmatprep.subr.mxu0 0.0
    %141 = vmatpush1.msra.mxu0 0.0
    %142 = vmatprep.subr.mxu0 0.0
    %143 = vmatpush1.msra.mxu0 0.0
    %144 = vmatprep.subr.mxu0 0.0
    %145 = vmatpush1.msra.mxu0 0.0
    %146 = vmatprep.subr.mxu0 0.0
    %147 = vmatpush1.msra.mxu0 0.0
    %148 = vmatprep.subr.mxu0 0.0
    %149 = vmatpush1.msra.mxu0 0.0
    %150 = vmatprep.subr.mxu0 0.0
    %151 = vmatpush1.msra.mxu0 0.0
    %152 = vmatprep.subr.mxu0 0.0
    %153 = vmatpush1.msra.mxu0 0.0
    %154 = vmatprep.subr.mxu0 0.0
    %155 = vmatpush1.msra.mxu0 0.0
    %156 = vmatprep.subr.mxu0 0.0
    %157 = vmatpush1.msra.mxu0 0.0
    %158 = vmatprep.subr.mxu0 0.0
    %159 = vmatpush1.msra.mxu0 0.0
    %160 = vmatprep.subr.mxu0 0.0
    %161 = vmatpush1.msra.mxu0 0.0
    %162 = vmatprep.subr.mxu0 0.0
    %163 = vmatpush1.msra.mxu0 0.0
    %164 = vmatprep.subr.mxu0 0.0
    %165 = vmatpush1.msra.mxu0 0.0
    %166 = vmatprep.subr.mxu0 0.0
    %167 = vmatpush1.msra.mxu0 0.0
    %168 = vmatprep.subr.mxu0 0.0
    %169 = vmatpush1.msra.mxu0 0.0
    %170 = vmatprep.subr.mxu0 0.0
    %171 = vmatpush1.msra.mxu0 0.0
    %172 = vmatprep.subr.mxu0 0.0
    %173 = vmatpush1.msra.mxu0 0.0
    %174 = vmatprep.subr.mxu0 0.0
    %175 = vmatpush1.msra.mxu0 0.0
    %176 = vmatprep.subr.mxu0 0.0
    %177 = vmatpush1.msra.mxu0 0.0
    %178 = vmatprep.subr.mxu0 0.0
    %179 = vmatpush1.msra.mxu0 0.0
    %180 = vmatprep.subr.mxu0 0.0
    %181 = vmatpush1.msra.mxu0 0.0
    %182 = vmatprep.subr.mxu0 0.0
    %183 = vmatpush1.msra.mxu0 0.0
    %184 = vmatprep.subr.mxu0 0.0
    %185 = vmatpush1.msra.mxu0 0.0
    %186 = vmatprep.subr.mxu0 0.0
    %187 = vmatpush1.msra.mxu0 0.0
    %188 = vmatprep.subr.mxu0 0.0
    %189 = vmatpush1.msra.mxu0 0.0
    %190 = vmatprep.subr.mxu0 0.0
    %191 = vmatpush1.msra.mxu0 0.0
    %192 = vmatprep.mubr.f32.mxu0 0.0
    %193 = vmatmul.mubr.f32.gmra.mrb[0].mxu0 %v101
    %v194 = vpop.f32.mrb[0].mxu0
    %v195 = vadd.f32 %v97, %v194
    %v196 = vpop.f32.mrb[0].mxu0
    %197 = vmatprep.mubr.f32.mxu0 0.0
    %198 = vmatmul.mubr.f32.gmra.mrb[0].mxu0 %v104
    %v199 = vpop.f32.mrb[0].mxu0
    %v200 = vadd.f32 %v97, %v199
    %v201 = vpop.f32.mrb[0].mxu0
    %202 = vmatprep.mubr.f32.mxu0 0.0
    %203 = vmatmul.mubr.f32.gmra.mrb[0].mxu0 %v107
    %v204 = vpop.f32.mrb[0].mxu0
    %v205 = vadd.f32 %v97, %v204
    %v206 = vpop.f32.mrb[0].mxu0
    %207 = vmatprep.mubr.f32.mxu0 0.0
    %208 = vmatmul.mubr.f32.gmra.mrb[0].mxu0 %v110
    %v209 = vpop.f32.mrb[0].mxu0
    %v210 = vadd.f32 %v97, %v209
    %v211 = vpop.f32.mrb[0].mxu0
    %212 = vmatprep.mubr.f32.mxu0 0.0
    %213 = vmatmul.mubr.f32.gmra.mrb[0].mxu0 %v113
    %v214 = vpop.f32.mrb[0].mxu0
    %v215 = vadd.f32 %v97, %v214
    %v216 = vpop.f32.mrb[0].mxu0
    %217 = vmatprep.mubr.f32.mxu0 0.0
    %218 = vmatmul.mubr.f32.gmra.mrb[0].mxu0 %v116
    %v219 = vpop.f32.mrb[0].mxu0
    %v220 = vadd.f32 %v97, %v219
    %v221 = vpop.f32.mrb[0].mxu0
    %222 = vmatprep.mubr.f32.mxu0 0.0
    %223 = vmatmul.mubr.f32.gmra.mrb[0].mxu0 %v119
    %v224 = vpop.f32.mrb[0].mxu0
    %v225 = vadd.f32 %v97, %v224
    %v226 = vpop.f32.mrb[0].mxu0
    %227 = vmatprep.mubr.f32.mxu0 0.0
    %228 = vmatmul.mubr.f32.gmra.mrb[0].mxu0 %v122
    %v229 = vpop.f32.mrb[0].mxu0
    %v230 = vadd.f32 %v97, %v229
    %v231 = vpop.f32.mrb[0].mxu0
    %232 = vdwg.mxu0
    %v233 = vmax.f32 %v195, 0.0
    %v234 = vmax.f32 %v200, 0.0
    %v235 = vmax.f32 %v205, 0.0
    %v236 = vmax.f32 %v210, 0.0
    %v237 = vmax.f32 %v215, 0.0
    %v238 = vmax.f32 %v220, 0.0
    %v239 = vmax.f32 %v225, 0.0
    %v240 = vmax.f32 %v230, 0.0
    %v241 = vld [vmem:[#allocation8] sm:$0xff]
    %v242 = vld [vmem:[#allocation8 + $0x8] sm:$0xff]
    %v243 = vld [vmem:[#allocation8 + $0x10] sm:$0xff]
    %v244 = vld [vmem:[#allocation8 + $0x18] sm:$0xff]
    %v245 = vld [vmem:[#allocation8 + $0x20] sm:$0xff]
    %v246 = vld [vmem:[#allocation8 + $0x28] sm:$0xff]
    %v247 = vld [vmem:[#allocation8 + $0x30] sm:$0xff]
    %v248 = vld [vmem:[#allocation8 + $0x38] sm:$0xff]
    %v249 = vld [vmem:[#allocation8 + $0x40] sm:$0xff]
    %v250 = vld [vmem:[#allocation8 + $0x48] sm:$0xff]
    %v251 = vld [vmem:[#allocation8 + $0x50] sm:$0xff]
    %v252 = vld [vmem:[#allocation8 + $0x58] sm:$0xff]
    %v253 = vld [vmem:[#allocation8 + $0x60] sm:$0xff]
    %v254 = vld [vmem:[#allocation8 + $0x68] sm:$0xff]
    %v255 = vld [vmem:[#allocation8 + $0x70] sm:$0xff]
    %v256 = vld [vmem:[#allocation8 + $0x78] sm:$0xff]
    %v257 = vld [vmem:[#allocation8 + $0x80] sm:$0xff]
    %v258 = vld [vmem:[#allocation8 + $0x88] sm:$0xff]
    %v259 = vld [vmem:[#allocation8 + $0x90] sm:$0xff]
    %v260 = vld [vmem:[#allocation8 + $0x98] sm:$0xff]
    %v261 = vld [vmem:[#allocation8 + $0xa0] sm:$0xff]
    %v262 = vld [vmem:[#allocation8 + $0xa8] sm:$0xff]
    %v263 = vld [vmem:[#allocation8 + $0xb0] sm:$0xff]
    %v264 = vld [vmem:[#allocation8 + $0xb8] sm:$0xff]
    %v265 = vld [vmem:[#allocation8 + $0xc0] sm:$0xff]
    %v266 = vld [vmem:[#allocation8 + $0xc8] sm:$0xff]
    %v267 = vld [vmem:[#allocation8 + $0xd0] sm:$0xff]
    %v268 = vld [vmem:[#allocation8 + $0xd8] sm:$0xff]
    %v269 = vld [vmem:[#allocation8 + $0xe0] sm:$0xff]
    %v270 = vld [vmem:[#allocation8 + $0xe8] sm:$0xff]
    %v271 = vld [vmem:[#allocation8 + $0xf0] sm:$0xff]
    %v272 = vld [vmem:[#allocation8 + $0xf8] sm:$0xff]
    %v273 = vld [vmem:[#allocation8 + $0x100] sm:$0xff]
    %v274 = vld [vmem:[#allocation8 + $0x108] sm:$0xff]
    %v275 = vld [vmem:[#allocation8 + $0x110] sm:$0xff]
    %v276 = vld [vmem:[#allocation8 + $0x118] sm:$0xff]
    %v277 = vld [vmem:[#allocation8 + $0x120] sm:$0xff]
    %v278 = vld [vmem:[#allocation8 + $0x128] sm:$0xff]
    %v279 = vld [vmem:[#allocation8 + $0x130] sm:$0xff]
    %v280 = vld [vmem:[#allocation8 + $0x138] sm:$0xff]
    %v281 = vld [vmem:[#allocation8 + $0x140] sm:$0xff]
    %v282 = vld [vmem:[#allocation8 + $0x148] sm:$0xff]
    %v283 = vld [vmem:[#allocation8 + $0x150] sm:$0xff]
    %v284 = vld [vmem:[#allocation8 + $0x158] sm:$0xff]
    %v285 = vld [vmem:[#allocation8 + $0x160] sm:$0xff]
    %v286 = vld [vmem:[#allocation8 + $0x168] sm:$0xff]
    %v287 = vld [vmem:[#allocation8 + $0x170] sm:$0xff]
    %v288 = vld [vmem:[#allocation8 + $0x178] sm:$0xff]
    %v289 = vld [vmem:[#allocation8 + $0x180] sm:$0xff]
    %v290 = vld [vmem:[#allocation8 + $0x188] sm:$0xff]
    %v291 = vld [vmem:[#allocation8 + $0x190] sm:$0xff]
    %v292 = vld [vmem:[#allocation8 + $0x198] sm:$0xff]
    %v293 = vld [vmem:[#allocation8 + $0x1a0] sm:$0xff]
    %v294 = vld [vmem:[#allocation8 + $0x1a8] sm:$0xff]
    %v295 = vld [vmem:[#allocation8 + $0x1b0] sm:$0xff]
    %v296 = vld [vmem:[#allocation8 + $0x1b8] sm:$0xff]
    %v297 = vld [vmem:[#allocation8 + $0x1c0] sm:$0xff]
    %v298 = vld [vmem:[#allocation8 + $0x1c8] sm:$0xff]
    %v299 = vld [vmem:[#allocation8 + $0x1d0] sm:$0xff]
    %v300 = vld [vmem:[#allocation8 + $0x1d8] sm:$0xff]
    %v301 = vld [vmem:[#allocation8 + $0x1e0] sm:$0xff]
    %v302 = vld [vmem:[#allocation8 + $0x1e8] sm:$0xff]
    %v303 = vld [vmem:[#allocation8 + $0x1f0] sm:$0xff]
    %v304 = vld [vmem:[#allocation8 + $0x1f8] sm:$0xff]
    %v305 = vld [vmem:[#allocation10] sm:$0xf]
    %v307 = vlaneseq
    %v308 = vshrl.u32 %v307, 7
    %v309 = vsub.s32 0, %v308
    %v310 = vrot.slane %v305, %v309
    %v311 = vlaneseq
    %v312 = vshrl.u32 %v311, 7
    %v313 = vsub.s32 1, %v312
    %v314 = vrot.slane %v305, %v313
    %v315 = vlaneseq
    %v316 = vshrl.u32 %v315, 7
    %v317 = vsub.s32 2, %v316
    %v318 = vrot.slane %v305, %v317
    %v319 = vlaneseq
    %v320 = vshrl.u32 %v319, 7
    %v321 = vsub.s32 3, %v320
    %v322 = vrot.slane %v305, %v321
    %327 = vmatprep.subr.mxu0 %v242
    %328 = vmatpush1.msra.mxu0 %v241
    %329 = vmatprep.subr.mxu0 %v246
    %330 = vmatpush1.msra.mxu0 %v245
    %331 = vmatprep.subr.mxu0 %v250
    %332 = vmatpush1.msra.mxu0 %v249
    %333 = vmatprep.subr.mxu0 %v254
    %334 = vmatpush1.msra.mxu0 %v253
    %335 = vmatprep.subr.mxu0 %v258
    %336 = vmatpush1.msra.mxu0 %v257
    %337 = vmatprep.subr.mxu0 %v262
    %338 = vmatpush1.msra.mxu0 %v261
    %339 = vmatprep.subr.mxu0 %v266
    %340 = vmatpush1.msra.mxu0 %v265
    %341 = vmatprep.subr.mxu0 %v270
    %342 = vmatpush1.msra.mxu0 %v269
    %343 = vmatprep.subr.mxu0 %v274
    %344 = vmatpush1.msra.mxu0 %v273
    %345 = vmatprep.subr.mxu0 %v278
    %346 = vmatpush1.msra.mxu0 %v277
    %347 = vmatprep.subr.mxu0 %v282
    %348 = vmatpush1.msra.mxu0 %v281
    %349 = vmatprep.subr.mxu0 %v286
    %350 = vmatpush1.msra.mxu0 %v285
    %351 = vmatprep.subr.mxu0 %v290
    %352 = vmatpush1.msra.mxu0 %v289
    %353 = vmatprep.subr.mxu0 %v294
    %354 = vmatpush1.msra.mxu0 %v293
    %355 = vmatprep.subr.mxu0 %v298
    %356 = vmatpush1.msra.mxu0 %v297
    %357 = vmatprep.subr.mxu0 %v302
    %358 = vmatpush1.msra.mxu0 %v301
    %359 = vmatprep.subr.mxu0 0.0
    %360 = vmatpush1.msra.mxu0 0.0
    %361 = vmatprep.subr.mxu0 0.0
    %362 = vmatpush1.msra.mxu0 0.0
    %363 = vmatprep.subr.mxu0 0.0
    %364 = vmatpush1.msra.mxu0 0.0
    %365 = vmatprep.subr.mxu0 0.0
    %366 = vmatpush1.msra.mxu0 0.0
    %367 = vmatprep.subr.mxu0 0.0
    %368 = vmatpush1.msra.mxu0 0.0
    %369 = vmatprep.subr.mxu0 0.0
    %370 = vmatpush1.msra.mxu0 0.0
    %371 = vmatprep.subr.mxu0 0.0
    %372 = vmatpush1.msra.mxu0 0.0
    %373 = vmatprep.subr.mxu0 0.0
    %374 = vmatpush1.msra.mxu0 0.0
    %375 = vmatprep.subr.mxu0 0.0
    %376 = vmatpush1.msra.mxu0 0.0
    %377 = vmatprep.subr.mxu0 0.0
    %378 = vmatpush1.msra.mxu0 0.0
    %379 = vmatprep.subr.mxu0 0.0
    %380 = vmatpush1.msra.mxu0 0.0
    %381 = vmatprep.subr.mxu0 0.0
    %382 = vmatpush1.msra.mxu0 0.0
    %383 = vmatprep.subr.mxu0 0.0
    %384 = vmatpush1.msra.mxu0 0.0
    %385 = vmatprep.subr.mxu0 0.0
    %386 = vmatpush1.msra.mxu0 0.0
    %387 = vmatprep.subr.mxu0 0.0
    %388 = vmatpush1.msra.mxu0 0.0
    %389 = vmatprep.subr.mxu0 0.0
    %390 = vmatpush1.msra.mxu0 0.0
    %391 = vmatprep.mubr.f32.mxu0 0.0
    %392 = vmatmul.mubr.f32.gmra.mrb[0].mxu0 %v233
    %v393 = vpop.f32.mrb[0].mxu0
    %v394 = vadd.f32 %v310, %v393
    %v395 = vpop.f32.mrb[0].mxu0
    %v396 = vadd.f32 %v314, %v395
    %397 = vmatprep.mubr.f32.mxu0 0.0
    %398 = vmatmul.mubr.f32.gmra.mrb[0].mxu0 %v234
    %v399 = vpop.f32.mrb[0].mxu0
    %v400 = vadd.f32 %v310, %v399
    %v401 = vpop.f32.mrb[0].mxu0
    %v402 = vadd.f32 %v314, %v401
    %403 = vmatprep.mubr.f32.mxu0 0.0
    %404 = vmatmul.mubr.f32.gmra.mrb[0].mxu0 %v235
    %v405 = vpop.f32.mrb[0].mxu0
    %v406 = vadd.f32 %v310, %v405
    %v407 = vpop.f32.mrb[0].mxu0
    %v408 = vadd.f32 %v314, %v407
    %409 = vmatprep.mubr.f32.mxu0 0.0
    %410 = vmatmul.mubr.f32.gmra.mrb[0].mxu0 %v236
    %v411 = vpop.f32.mrb[0].mxu0
    %v412 = vadd.f32 %v310, %v411
    %v413 = vpop.f32.mrb[0].mxu0
    %v414 = vadd.f32 %v314, %v413
    %415 = vmatprep.mubr.f32.mxu0 0.0
    %416 = vmatmul.mubr.f32.gmra.mrb[0].mxu0 %v237
    %v417 = vpop.f32.mrb[0].mxu0
    %v418 = vadd.f32 %v310, %v417
    %v419 = vpop.f32.mrb[0].mxu0
    %v420 = vadd.f32 %v314, %v419
    %421 = vmatprep.mubr.f32.mxu0 0.0
    %422 = vmatmul.mubr.f32.gmra.mrb[0].mxu0 %v238
    %v423 = vpop.f32.mrb[0].mxu0
    %v424 = vadd.f32 %v310, %v423
    %v425 = vpop.f32.mrb[0].mxu0
    %v426 = vadd.f32 %v314, %v425
    %427 = vmatprep.mubr.f32.mxu0 0.0
    %428 = vmatmul.mubr.f32.gmra.mrb[0].mxu0 %v239
    %v429 = vpop.f32.mrb[0].mxu0
    %v430 = vadd.f32 %v310, %v429
    %v431 = vpop.f32.mrb[0].mxu0
    %v432 = vadd.f32 %v314, %v431
    %433 = vmatprep.mubr.f32.mxu0 0.0
    %434 = vmatmul.mubr.f32.gmra.mrb[0].mxu0 %v240
    %v435 = vpop.f32.mrb[0].mxu0
    %v436 = vadd.f32 %v310, %v435
    %v437 = vpop.f32.mrb[0].mxu0
    %v438 = vadd.f32 %v314, %v437
    %439 = vdwg.mxu0
    %440 = vmatprep.subr.mxu0 %v244
    %441 = vmatpush1.msra.mxu0 %v243
    %442 = vmatprep.subr.mxu0 %v248
    %443 = vmatpush1.msra.mxu0 %v247
    %444 = vmatprep.subr.mxu0 %v252
    %445 = vmatpush1.msra.mxu0 %v251
    %446 = vmatprep.subr.mxu0 %v256
    %447 = vmatpush1.msra.mxu0 %v255
    %448 = vmatprep.subr.mxu0 %v260
    %449 = vmatpush1.msra.mxu0 %v259
    %450 = vmatprep.subr.mxu0 %v264
    %451 = vmatpush1.msra.mxu0 %v263
    %452 = vmatprep.subr.mxu0 %v268
    %453 = vmatpush1.msra.mxu0 %v267
    %454 = vmatprep.subr.mxu0 %v272
    %455 = vmatpush1.msra.mxu0 %v271
    %456 = vmatprep.subr.mxu0 %v276
    %457 = vmatpush1.msra.mxu0 %v275
    %458 = vmatprep.subr.mxu0 %v280
    %459 = vmatpush1.msra.mxu0 %v279
    %460 = vmatprep.subr.mxu0 %v284
    %461 = vmatpush1.msra.mxu0 %v283
    %462 = vmatprep.subr.mxu0 %v288
    %463 = vmatpush1.msra.mxu0 %v287
    %464 = vmatprep.subr.mxu0 %v292
    %465 = vmatpush1.msra.mxu0 %v291
    %466 = vmatprep.subr.mxu0 %v296
    %467 = vmatpush1.msra.mxu0 %v295
    %468 = vmatprep.subr.mxu0 %v300
    %469 = vmatpush1.msra.mxu0 %v299
    %470 = vmatprep.subr.mxu0 %v304
    %471 = vmatpush1.msra.mxu0 %v303
    %472 = vmatprep.subr.mxu0 0.0
    %473 = vmatpush1.msra.mxu0 0.0
    %474 = vmatprep.subr.mxu0 0.0
    %475 = vmatpush1.msra.mxu0 0.0
    %476 = vmatprep.subr.mxu0 0.0
    %477 = vmatpush1.msra.mxu0 0.0
    %478 = vmatprep.subr.mxu0 0.0
    %479 = vmatpush1.msra.mxu0 0.0
    %480 = vmatprep.subr.mxu0 0.0
    %481 = vmatpush1.msra.mxu0 0.0
    %482 = vmatprep.subr.mxu0 0.0
    %483 = vmatpush1.msra.mxu0 0.0
    %484 = vmatprep.subr.mxu0 0.0
    %485 = vmatpush1.msra.mxu0 0.0
    %486 = vmatprep.subr.mxu0 0.0
    %487 = vmatpush1.msra.mxu0 0.0
    %488 = vmatprep.subr.mxu0 0.0
    %489 = vmatpush1.msra.mxu0 0.0
    %490 = vmatprep.subr.mxu0 0.0
    %491 = vmatpush1.msra.mxu0 0.0
    %492 = vmatprep.subr.mxu0 0.0
    %493 = vmatpush1.msra.mxu0 0.0
    %494 = vmatprep.subr.mxu0 0.0
    %495 = vmatpush1.msra.mxu0 0.0
    %496 = vmatprep.subr.mxu0 0.0
    %497 = vmatpush1.msra.mxu0 0.0
    %498 = vmatprep.subr.mxu0 0.0
    %499 = vmatpush1.msra.mxu0 0.0
    %500 = vmatprep.subr.mxu0 0.0
    %501 = vmatpush1.msra.mxu0 0.0
    %502 = vmatprep.subr.mxu0 0.0
    %503 = vmatpush1.msra.mxu0 0.0
    %504 = vmatprep.mubr.f32.mxu0 0.0
    %505 = vmatmul.mubr.f32.gmra.mrb[0].mxu0 %v233
    %v506 = vpop.f32.mrb[0].mxu0
    %v507 = vadd.f32 %v318, %v506
    %v508 = vpop.f32.mrb[0].mxu0
    %v509 = vadd.f32 %v322, %v508
    %510 = vmatprep.mubr.f32.mxu0 0.0
    %511 = vmatmul.mubr.f32.gmra.mrb[0].mxu0 %v234
    %v512 = vpop.f32.mrb[0].mxu0
    %v513 = vadd.f32 %v318, %v512
    %v514 = vpop.f32.mrb[0].mxu0
    %v515 = vadd.f32 %v322, %v514
    %516 = vmatprep.mubr.f32.mxu0 0.0
    %517 = vmatmul.mubr.f32.gmra.mrb[0].mxu0 %v235
    %v518 = vpop.f32.mrb[0].mxu0
    %v519 = vadd.f32 %v318, %v518
    %v520 = vpop.f32.mrb[0].mxu0
    %v521 = vadd.f32 %v322, %v520
    %522 = vmatprep.mubr.f32.mxu0 0.0
    %523 = vmatmul.mubr.f32.gmra.mrb[0].mxu0 %v236
    %v524 = vpop.f32.mrb[0].mxu0
    %v525 = vadd.f32 %v318, %v524
    %v526 = vpop.f32.mrb[0].mxu0
    %v527 = vadd.f32 %v322, %v526
    %528 = vmatprep.mubr.f32.mxu0 0.0
    %529 = vmatmul.mubr.f32.gmra.mrb[0].mxu0 %v237
    %v530 = vpop.f32.mrb[0].mxu0
    %v531 = vadd.f32 %v318, %v530
    %v532 = vpop.f32.mrb[0].mxu0
    %v533 = vadd.f32 %v322, %v532
    %534 = vmatprep.mubr.f32.mxu0 0.0
    %535 = vmatmul.mubr.f32.gmra.mrb[0].mxu0 %v238
    %v536 = vpop.f32.mrb[0].mxu0
    %v537 = vadd.f32 %v318, %v536
    %v538 = vpop.f32.mrb[0].mxu0
    %v539 = vadd.f32 %v322, %v538
    %540 = vmatprep.mubr.f32.mxu0 0.0
    %541 = vmatmul.mubr.f32.gmra.mrb[0].mxu0 %v239
    %v542 = vpop.f32.mrb[0].mxu0
    %v543 = vadd.f32 %v318, %v542
    %v544 = vpop.f32.mrb[0].mxu0
    %v545 = vadd.f32 %v322, %v544
    %546 = vmatprep.mubr.f32.mxu0 0.0
    %547 = vmatmul.mubr.f32.gmra.mrb[0].mxu0 %v240
    %v548 = vpop.f32.mrb[0].mxu0
    %v549 = vadd.f32 %v318, %v548
    %v550 = vpop.f32.mrb[0].mxu0
    %v551 = vadd.f32 %v322, %v550
    %552 = vdwg.mxu0
    %553 = vst [vmem:[#allocation11] sm:$0xff] %v394
    %554 = vst [vmem:[#allocation11 + $0x8] sm:$0xff] %v396
    %555 = vst [vmem:[#allocation11 + $0x10] sm:$0xff] %v507
    %556 = vst [vmem:[#allocation11 + $0x18] sm:$0xff] %v509
    %557 = vst [vmem:[#allocation11 + $0x20] sm:$0xff] %v400
    %558 = vst [vmem:[#allocation11 + $0x28] sm:$0xff] %v402
    %559 = vst [vmem:[#allocation11 + $0x30] sm:$0xff] %v513
    %560 = vst [vmem:[#allocation11 + $0x38] sm:$0xff] %v515
    %561 = vst [vmem:[#allocation11 + $0x40] sm:$0xff] %v406
    %562 = vst [vmem:[#allocation11 + $0x48] sm:$0xff] %v408
    %563 = vst [vmem:[#allocation11 + $0x50] sm:$0xff] %v519
    %564 = vst [vmem:[#allocation11 + $0x58] sm:$0xff] %v521
    %565 = vst [vmem:[#allocation11 + $0x60] sm:$0xff] %v412
    %566 = vst [vmem:[#allocation11 + $0x68] sm:$0xff] %v414
    %567 = vst [vmem:[#allocation11 + $0x70] sm:$0xff] %v525
    %568 = vst [vmem:[#allocation11 + $0x78] sm:$0xff] %v527
    %569 = vst [vmem:[#allocation11 + $0x80] sm:$0xff] %v418
    %570 = vst [vmem:[#allocation11 + $0x88] sm:$0xff] %v420
    %571 = vst [vmem:[#allocation11 + $0x90] sm:$0xff] %v531
    %572 = vst [vmem:[#allocation11 + $0x98] sm:$0xff] %v533
    %573 = vst [vmem:[#allocation11 + $0xa0] sm:$0xff] %v424
    %574 = vst [vmem:[#allocation11 + $0xa8] sm:$0xff] %v426
    %575 = vst [vmem:[#allocation11 + $0xb0] sm:$0xff] %v537
    %576 = vst [vmem:[#allocation11 + $0xb8] sm:$0xff] %v539
    %577 = vst [vmem:[#allocation11 + $0xc0] sm:$0xff] %v430
    %578 = vst [vmem:[#allocation11 + $0xc8] sm:$0xff] %v432
    %579 = vst [vmem:[#allocation11 + $0xd0] sm:$0xff] %v543
    %580 = vst [vmem:[#allocation11 + $0xd8] sm:$0xff] %v545
    %581 = vst [vmem:[#allocation11 + $0xe0] sm:$0xff] %v436
    %582 = vst [vmem:[#allocation11 + $0xe8] sm:$0xff] %v438
    %583 = vst [vmem:[#allocation11 + $0xf0] sm:$0xff] %v549
    %584 = vst [vmem:[#allocation11 + $0xf8] sm:$0xff] %v551
    // Predicated region
    $region42: #{_lambda_.2} parent=1 // pred_check
      _
    $region43: #{_lambda_.2} parent=1 // pred_check_branch
      %586 = sbr.rel (0) target = $region45
    $region44: #{_lambda_.2} parent=1 // pred_region
      %s588 = ssub.s32 4096, 4096
      %589 = vsyncadd [#allocation4], %s588
      %s590 = sshll.u32 [#allocation11], 4
      %s591 = int_to_ptr.vmem [resolvable:$true] %s590
      %596 = dma.vmem_to_hbm [thread:$0]  %s591, 4096, %s5, [#allocation4], 512, 512, 32
    $region45: #{_lambda_.2} parent=1 // pred_fallthru
      _
    // Predicated region
    $region46: #{_lambda_.2} parent=1 // pred_check
      _
    $region47: #{_lambda_.2} parent=1 // pred_check_branch
      %598 = sbr.rel (0) target = $region49
    $region48: #{_lambda_.2} parent=1 // pred_region
      %599 = dma.done [#allocation4], 4096
    $region49: #{_lambda_.2} parent=1 // pred_fallthru
      _
    %600 = vsyncpa [#allocation3], 1
    %601 = vsyncpa [#allocation6], 1
    %602 = vsyncpa [#allocation9], 1
    %603 = vsyncpa [#allocation4], 1

// kernel: _lambda_.3
$region0: #{_lambda_.3}
  #allocation0 [shape = 'u32[]', space=smem, size = 0x4, offset = 0x4, fixed_abs, tag = 'smem constant byte address 0x4 - core index']
  #allocation1 [shape = 'u32[144,128]{1,0:T(1,128)}', space=vmem, size = 0x12000, scoped, tag = 'internal scratch']
  #allocation2 [shape = 'f32[8,128]{1,0:T(8,128)}', space=vmem, size = 0x1000, scoped, tag = 'scratch operand']
  #allocation3 [shape = 'f32[8,128]{1,0:T(8,128)}', space=vmem, size = 0x1000, scoped, tag = 'scratch operand']
  %s0 = inlined_call_operand.hbm [shape: f32[8,8,512], index: 0, kind: input, shape index: {}]
  %s1 = inlined_call_operand.hbm [shape: f32[128,512], index: 1, kind: input, shape index: {}]
  %s2 = inlined_call_operand.hbm [shape: f32[128,2], index: 2, kind: input, shape index: {}]
  %s3 = inlined_call_operand.hbm [shape: f32[1,2], index: 3, kind: input, shape index: {}]
  %s4 = inlined_call_operand.hbm [shape: f32[8,8,2], index: 4, kind: output, shape index: {}]
  %s5 = sld [smem:[#allocation0]]
  $region69: #{_lambda_.3} parent=0
    _
  %s7 = ssub.s32 1, %s5
  %s8 = scalar_select 0, %s7, %s5
  $region1: #{_lambda_.3} parent=0
    #allocation4 [shape = 'u8[131072]{0}', space=vmem, size = 0x20000, scoped, tag = 'input window, operand 0']
    #allocation5 [shape = 's32[2]{0}', space=sflag, size = 0x8, scoped, tag = 'scoped memory for _lambda_.3']
    #allocation6 [shape = 's32[2]{0}', space=sflag, size = 0x8, scoped, tag = 'scoped memory for _lambda_.3']
    #allocation7 [shape = 'u8[262144]{0}', space=vmem, size = 0x40000, scoped, tag = 'input window, operand 1, single buffered']
    #allocation8 [shape = 's32[1]{0}', space=sflag, size = 0x4, scoped, tag = 'scoped memory for _lambda_.3']
    #allocation9 [shape = 'u8[65536]{0}', space=vmem, size = 0x10000, scoped, tag = 'input window, operand 2, single buffered']
    #allocation10 [shape = 'u8[512]{0}', space=vmem, size = 0x400, scoped, tag = 'input window, operand 3, single buffered']
    #allocation11 [shape = 's32[1]{0}', space=sflag, size = 0x4, scoped, tag = 'scoped memory for _lambda_.3']
    #allocation12 [shape = 'u8[32768]{0}', space=vmem, size = 0x8000, scoped, tag = 'output window, operand 0']
    %9 = vsyncpa [#allocation5], 0
    %s10 = scalar_lea.sflag [#allocation5], 1
    %11 = vsyncpa %s10, 0
    %12 = vsyncpa [#allocation8], 0
    %13 = vsyncpa [#allocation11], 0
    %14 = vsyncpa [#allocation6], 0
    %s15 = scalar_lea.sflag [#allocation6], 1
    %16 = vsyncpa %s15, 0
    loop: start=0, step=1, limit=4
    $region2: #{_lambda_.3} parent=1 // loop_pre_header
      _
    $region3: #{_lambda_.3} parent=1 // loop_header
      %s18 = sphi 0, %s22
      %p19 = scmp.ge.s32.totalorder %s18, 4
      %s25 = sphi 0, %s37
      %s26 = sphi 0, %s33
      %s27 = sphi 0, %s25
      %s28 = sphi 0, %s26
      %s29 = sphi 0, %s27
      %s30 = sphi 0, %s28
      %s42 = sphi 0, %s44
      %s45 = sphi 0, %s42
      %s46 = sphi 0, %s45
      %s62 = sphi 0, %s46
      %s66 = sphi 0, %s66
      %s68 = sphi 0, %s66
      %s69 = sphi 0, %s68
      %s83 = sphi 0, %s69
      %s87 = sphi 0, %s87
      %s89 = sphi 0, %s87
      %s90 = sphi 0, %s89
      %s104 = sphi 0, %s90
      %s108 = sphi 0, %s108
      %s110 = sphi 0, %s108
      %s111 = sphi 0, %s110
      %s125 = sphi 0, %s111
      %s133 = sphi 0, %s135
      %s136 = sphi 0, %s133
      %s137 = sphi 0, %s136
      %s153 = sphi 0, %s137
    $region4: #{_lambda_.3} parent=1 // loop_header_branch
      %21 = sbr.rel (%p19) target = $region8
    $region5: #{_lambda_.3} parent=1 // loop_body
      %s23 = ssub.s32 %s18, 1
      %s24 = ssub.s32 %s18, 2
      %s31 = sadd.s32 1, %s26
      %p32 = scmp.ge.s32.totalorder %s31, 2
      %s33 = scalar_select %p32, 0, %s31
      %s34 = sadd.s32 1, %s25
      %s35 = scalar_select %p32, %s34, %s25
      %p36 = scmp.ge.s32.totalorder %s35, 1
      %s37 = scalar_select %p36, 0, %s35
      %s38 = ssub.s32 %s26, %s33
      %s39 = ssub.s32 %s25, %s37
      %s40 = sor.u32 %s38, %s39
      %p41 = scmp.eq.s32.totalorder %s40, 0
      %s43 = sadd.s32 %s42, 1
      %s44 = scalar_select %p41, %s42, %s43
      %p47 = pneg %p41
      %p48 = scmp.eq.s32.totalorder %s18, 1
      %p49 = por %p47, %p48
      %p50 = scmp.ne.s32.totalorder %s42, %s45
      %p51 = scmp.eq.s32.totalorder %s18, 0
      %p52 = por %p50, %p51
      %p53 = scmp.ne.s32.totalorder %s42, %s45
      %p54 = scmp.eq.s32.totalorder %s23, 1
      %p55 = por %p53, %p54
      %p56 = scmp.ne.s32.totalorder %s45, %s46
      %p57 = scmp.eq.s32.totalorder %s23, 0
      %p58 = por %p56, %p57
      %p59 = scmp.ne.s32.totalorder %s45, %s46
      %p60 = scmp.eq.s32.totalorder %s24, 1
      %p61 = por %p59, %p60
      %p63 = scmp.ne.s32.totalorder %s46, %s62
      %p64 = scmp.eq.s32.totalorder %s24, 0
      %p65 = por %p63, %p64
      %s67 = sadd.s32 %s66, 1
      %p70 = scmp.eq.s32.totalorder %s18, 1
      %p71 = scmp.ne.s32.totalorder %s66, %s68
      %p72 = scmp.eq.s32.totalorder %s18, 0
      %p73 = por %p71, %p72
      %p74 = scmp.ne.s32.totalorder %s66, %s68
      %p75 = scmp.eq.s32.totalorder %s23, 1
      %p76 = por %p74, %p75
      %p77 = scmp.ne.s32.totalorder %s68, %s69
      %p78 = scmp.eq.s32.totalorder %s23, 0
      %p79 = por %p77, %p78
      %p80 = scmp.ne.s32.totalorder %s68, %s69
      %p81 = scmp.eq.s32.totalorder %s24, 1
      %p82 = por %p80, %p81
      %p84 = scmp.ne.s32.totalorder %s69, %s83
      %p85 = scmp.eq.s32.totalorder %s24, 0
      %p86 = por %p84, %p85
      %s88 = sadd.s32 %s87, 1
      %p91 = scmp.eq.s32.totalorder %s18, 1
      %p92 = scmp.ne.s32.totalorder %s87, %s89
      %p93 = scmp.eq.s32.totalorder %s18, 0
      %p94 = por %p92, %p93
      %p95 = scmp.ne.s32.totalorder %s87, %s89
      %p96 = scmp.eq.s32.totalorder %s23, 1
      %p97 = por %p95, %p96
      %p98 = scmp.ne.s32.totalorder %s89, %s90
      %p99 = scmp.eq.s32.totalorder %s23, 0
      %p100 = por %p98, %p99
      %p101 = scmp.ne.s32.totalorder %s89, %s90
      %p102 = scmp.eq.s32.totalorder %s24, 1
      %p103 = por %p101, %p102
      %p105 = scmp.ne.s32.totalorder %s90, %s104
      %p106 = scmp.eq.s32.totalorder %s24, 0
      %p107 = por %p105, %p106
      %s109 = sadd.s32 %s108, 1
      %p112 = scmp.eq.s32.totalorder %s18, 1
      %p113 = scmp.ne.s32.totalorder %s108, %s110
      %p114 = scmp.eq.s32.totalorder %s18, 0
      %p115 = por %p113, %p114
      %p116 = scmp.ne.s32.totalorder %s108, %s110
      %p117 = scmp.eq.s32.totalorder %s23, 1
      %p118 = por %p116, %p117
      %p119 = scmp.ne.s32.totalorder %s110, %s111
      %p120 = scmp.eq.s32.totalorder %s23, 0
      %p121 = por %p119, %p120
      %p122 = scmp.ne.s32.totalorder %s110, %s111
      %p123 = scmp.eq.s32.totalorder %s24, 1
      %p124 = por %p122, %p123
      %p126 = scmp.ne.s32.totalorder %s111, %s125
      %p127 = scmp.eq.s32.totalorder %s24, 0
      %p128 = por %p126, %p127
      %s129 = ssub.s32 %s26, %s33
      %s130 = ssub.s32 %s25, %s37
      %s131 = sor.u32 %s129, %s130
      %p132 = scmp.eq.s32.totalorder %s131, 0
      %s134 = sadd.s32 %s133, 1
      %s135 = scalar_select %p132, %s133, %s134
      %p138 = pneg %p132
      %p139 = scmp.eq.s32.totalorder %s18, 1
      %p140 = por %p138, %p139
      %p141 = scmp.ne.s32.totalorder %s133, %s136
      %p142 = scmp.eq.s32.totalorder %s18, 0
      %p143 = por %p141, %p142
      %p144 = scmp.ne.s32.totalorder %s133, %s136
      %p145 = scmp.eq.s32.totalorder %s23, 1
      %p146 = por %p144, %p145
      %p147 = scmp.ne.s32.totalorder %s136, %s137
      %p148 = scmp.eq.s32.totalorder %s23, 0
      %p149 = por %p147, %p148
      %p150 = scmp.ne.s32.totalorder %s136, %s137
      %p151 = scmp.eq.s32.totalorder %s24, 1
      %p152 = por %p150, %p151
      %p154 = scmp.ne.s32.totalorder %s137, %s153
      %p155 = scmp.eq.s32.totalorder %s24, 0
      %p156 = por %p154, %p155
      %p157 = scmp.le.s32.totalorder 1, %s18
      %p158 = scmp.lt.s32.totalorder %s18, 3
      %p159 = pnand %p157, %p158
      %p160 = pneg %p159
      // Predicated region
      $region9: #{_lambda_.3} parent=5 // pred_check
        _
      $region10: #{_lambda_.3} parent=5 // pred_check_branch
        %162 = sbr.rel (%p159) target = $region12
      $region11: #{_lambda_.3} parent=5 // pred_region
        %s163 = ssub.s32 %s18, 1
        // Predicated region
        $region13: #{_lambda_.3} parent=11 // pred_check
          %p164 = pneg %p79
        $region14: #{_lambda_.3} parent=11 // pred_check_branch
          %166 = sbr.rel (%p164) target = $region16
        $region15: #{_lambda_.3} parent=11 // pred_region
          %s168 = ssub.s32 8192, 8192
          %169 = vsyncadd [#allocation8], %s168
          %s170 = sshll.u32 [#allocation7], 4
          %s171 = int_to_ptr.vmem [resolvable:$true] %s170
          %176 = dma.hbm_to_vmem [thread:$0]  %s1, 8192, %s171, [#allocation8], 512, 512, 32
        $region16: #{_lambda_.3} parent=11 // pred_fallthru
          _
        // Predicated region
        $region17: #{_lambda_.3} parent=11 // pred_check
          %p177 = pneg %p100
        $region18: #{_lambda_.3} parent=11 // pred_check_branch
          %179 = sbr.rel (%p177) target = $region20
        $region19: #{_lambda_.3} parent=11 // pred_region
          %s181 = ssub.s32 2048, 2048
          %182 = vsyncadd [#allocation8], %s181
          %s183 = sshll.u32 [#allocation9], 4
          %s184 = int_to_ptr.vmem [resolvable:$true] %s183
          %189 = dma.hbm_to_vmem [thread:$0]  %s2, 2048, %s184, [#allocation8], 128, 128, 8
        $region20: #{_lambda_.3} parent=11 // pred_fallthru
          _
        // Predicated region
        $region21: #{_lambda_.3} parent=11 // pred_check
          %p190 = pneg %p121
        $region22: #{_lambda_.3} parent=11 // pred_check_branch
          %192 = sbr.rel (%p190) target = $region24
        $region23: #{_lambda_.3} parent=11 // pred_region
          %s194 = ssub.s32 16, 16
          %195 = vsyncadd [#allocation11], %s194
          %s197 = sshll.u32 [#allocation10], 4
          %s198 = int_to_ptr.vmem [resolvable:$true] %s197
          %200 = dma.hbm_to_vmem [thread:$0]  %s3, 16, %s198, [#allocation11]
        $region24: #{_lambda_.3} parent=11 // pred_fallthru
          _
      $region12: #{_lambda_.3} parent=5 // pred_fallthru
        _
      %p201 = scmp.lt.s32.totalorder %s18, 2
      // Predicated region
      $region25: #{_lambda_.3} parent=5 // pred_check
        %p202 = pneg %p201
      $region26: #{_lambda_.3} parent=5 // pred_check_branch
        %204 = sbr.rel (%p202) target = $region28
      $region27: #{_lambda_.3} parent=5 // pred_region
        // Predicated region
        $region29: #{_lambda_.3} parent=27 // pred_check
          %p205 = pneg %p52
        $region30: #{_lambda_.3} parent=27 // pred_check_branch
          %207 = sbr.rel (%p205) target = $region32
        $region31: #{_lambda_.3} parent=27 // pred_region
          %s208 = sand.u32 %s42, 1
          %s209 = scalar_lea.sflag [#allocation5], %s208
          %s210 = sand.u32 %s42, 1
          %s211 = smul.addr %s210, 128
          %s212 = scalar_lea.vmem [#allocation4], %s211
          %s213 = smul.u32 4, %s26
          %s215 = ssub.s32 2048, 2048
          %216 = vsyncadd %s209, %s215
          %s217 = smul.addr %s25, 4
          %s218 = smul.addr %s213, 4
          %s219 = sadd.s32 %s217, %s218
          %s220 = smul.addr %s219, 128
          %s221 = scalar_lea.hbm %s0, %s220
          %s222 = sshll.u32 %s212, 4
          %s223 = int_to_ptr.vmem [resolvable:$true] %s222
          %228 = dma.hbm_to_vmem [thread:$0]  %s221, 2048, %s223, %s209, 512, 512, 32
        $region32: #{_lambda_.3} parent=27 // pred_fallthru
          _
      $region28: #{_lambda_.3} parent=5 // pred_fallthru
        _
      %p229 = scmp.le.s32.totalorder 1, %s18
      %p230 = scmp.lt.s32.totalorder %s18, 3
      %p231 = pnand %p229, %p230
      %p232 = pneg %p231
      // Predicated region
      $region33: #{_lambda_.3} parent=5 // pred_check
        _
      $region34: #{_lambda_.3} parent=5 // pred_check_branch
        %234 = sbr.rel (%p231) target = $region36
      $region35: #{_lambda_.3} parent=5 // pred_region
        %s235 = ssub.s32 %s18, 1
        %s236 = sand.u32 %s45, 1
        %s237 = scalar_lea.sflag [#allocation5], %s236
        %s238 = sand.u32 %s45, 1
        %s239 = smul.addr %s238, 128
        %s240 = scalar_lea.vmem [#allocation4], %s239
        // Predicated region
        $region37: #{_lambda_.3} parent=35 // pred_check
          %p241 = pneg %p58
        $region38: #{_lambda_.3} parent=35 // pred_check_branch
          %243 = sbr.rel (%p241) target = $region40
        $region39: #{_lambda_.3} parent=35 // pred_region
          %244 = dma.done %s237, 2048
        $region40: #{_lambda_.3} parent=35 // pred_fallthru
          _
        // Predicated region
        $region41: #{_lambda_.3} parent=35 // pred_check
          %p245 = pneg %p79
        $region42: #{_lambda_.3} parent=35 // pred_check_branch
          %247 = sbr.rel (%p245) target = $region44
        $region43: #{_lambda_.3} parent=35 // pred_region
          %248 = dma.done [#allocation8], 8192
        $region44: #{_lambda_.3} parent=35 // pred_fallthru
          _
        // Predicated region
        $region45: #{_lambda_.3} parent=35 // pred_check
          %p249 = pneg %p100
        $region46: #{_lambda_.3} parent=35 // pred_check_branch
          %251 = sbr.rel (%p249) target = $region48
        $region47: #{_lambda_.3} parent=35 // pred_region
          %252 = dma.done [#allocation8], 2048
        $region48: #{_lambda_.3} parent=35 // pred_fallthru
          _
        // Predicated region
        $region49: #{_lambda_.3} parent=35 // pred_check
          %p253 = pneg %p121
        $region50: #{_lambda_.3} parent=35 // pred_check_branch
          %255 = sbr.rel (%p253) target = $region52
        $region51: #{_lambda_.3} parent=35 // pred_region
          %256 = dma.done [#allocation11], 16
        $region52: #{_lambda_.3} parent=35 // pred_fallthru
          _
        %s257 = sand.u32 %s45, 1
        %s258 = scalar_lea.sflag [#allocation5], %s257
        %s259 = sand.u32 %s45, 1
        %s260 = smul.addr %s259, 128
        %s261 = scalar_lea.vmem [#allocation4], %s260
        %p262 = pneg %p58
        %p263 = pneg %p55
        %p264 = pneg %p79
        %p265 = pneg %p76
        %p266 = pneg %p100
        %p267 = pneg %p97
        %p268 = pneg %p121
        %p269 = pneg %p118
        %p270 = pneg %p149
        %p271 = pneg %p146
        %s272 = sand.u32 %s136, 1
        %s273 = scalar_lea.sflag [#allocation6], %s272
        %s274 = sand.u32 %s136, 1
        %s275 = smul.addr %s274, 32
        %s276 = scalar_lea.vmem [#allocation12], %s275
        %s277 = smul.u32 4, %s28
        %s278 = smul.u32 4, %s28
        %p279 = scmp.eq.s32.totalorder %s28, 0
        // Predicated region
        $region53: #{_lambda_.3} parent=35 // pred_check
          %p280 = pneg %p279
        $region54: #{_lambda_.3} parent=35 // pred_check_branch
          %282 = sbr.rel (%p280) target = $region56
        $region55: #{_lambda_.3} parent=35 // pred_region
          %283 = vst [vmem:[#allocation2] sm:$0xff] 0.0
          %284 = vst [vmem:[#allocation3] sm:$0xff] 0.0
        $region56: #{_lambda_.3} parent=35 // pred_fallthru
          _
        %v285 = vld [vmem:[%s240] sm:$0xff]
        %v286 = vld [vmem:[%s240 + $0x8] sm:$0xff]
        %v287 = vld [vmem:[%s240 + $0x10] sm:$0xff]
        %v288 = vld [vmem:[%s240 + $0x18] sm:$0xff]
        %v289 = vld [vmem:[#allocation2] sm:$0xff]
        %v290 = vld [vmem:[#allocation7] sm:$0xff]
        %v291 = vld [vmem:[#allocation7 + $0x8] sm:$0xff]
        %v292 = vld [vmem:[#allocation7 + $0x10] sm:$0xff]
        %v293 = vld [vmem:[#allocation7 + $0x18] sm:$0xff]
        %v294 = vld [vmem:[#allocation7 + $0x20] sm:$0xff]
        %v295 = vld [vmem:[#allocation7 + $0x28] sm:$0xff]
        %v296 = vld [vmem:[#allocation7 + $0x30] sm:$0xff]
        %v297 = vld [vmem:[#allocation7 + $0x38] sm:$0xff]
        %v298 = vld [vmem:[#allocation7 + $0x40] sm:$0xff]
        %v299 = vld [vmem:[#allocation7 + $0x48] sm:$0xff]
        %v300 = vld [vmem:[#allocation7 + $0x50] sm:$0xff]
        %v301 = vld [vmem:[#allocation7 + $0x58] sm:$0xff]
        %v302 = vld [vmem:[#allocation7 + $0x60] sm:$0xff]
        %v303 = vld [vmem:[#allocation7 + $0x68] sm:$0xff]
        %v304 = vld [vmem:[#allocation7 + $0x70] sm:$0xff]
        %v305 = vld [vmem:[#allocation7 + $0x78] sm:$0xff]
        %v306 = vld [vmem:[#allocation7 + $0x80] sm:$0xff]
        %v307 = vld [vmem:[#allocation7 + $0x88] sm:$0xff]
        %v308 = vld [vmem:[#allocation7 + $0x90] sm:$0xff]
        %v309 = vld [vmem:[#allocation7 + $0x98] sm:$0xff]
        %v310 = vld [vmem:[#allocation7 + $0xa0] sm:$0xff]
        %v311 = vld [vmem:[#allocation7 + $0xa8] sm:$0xff]
        %v312 = vld [vmem:[#allocation7 + $0xb0] sm:$0xff]
        %v313 = vld [vmem:[#allocation7 + $0xb8] sm:$0xff]
        %v314 = vld [vmem:[#allocation7 + $0xc0] sm:$0xff]
        %v315 = vld [vmem:[#allocation7 + $0xc8] sm:$0xff]
        %v316 = vld [vmem:[#allocation7 + $0xd0] sm:$0xff]
        %v317 = vld [vmem:[#allocation7 + $0xd8] sm:$0xff]
        %v318 = vld [vmem:[#allocation7 + $0xe0] sm:$0xff]
        %v319 = vld [vmem:[#allocation7 + $0xe8] sm:$0xff]
        %v320 = vld [vmem:[#allocation7 + $0xf0] sm:$0xff]
        %v321 = vld [vmem:[#allocation7 + $0xf8] sm:$0xff]
        %v322 = vld [vmem:[#allocation7 + $0x100] sm:$0xff]
        %v323 = vld [vmem:[#allocation7 + $0x108] sm:$0xff]
        %v324 = vld [vmem:[#allocation7 + $0x110] sm:$0xff]
        %v325 = vld [vmem:[#allocation7 + $0x118] sm:$0xff]
        %v326 = vld [vmem:[#allocation7 + $0x120] sm:$0xff]
        %v327 = vld [vmem:[#allocation7 + $0x128] sm:$0xff]
        %v328 = vld [vmem:[#allocation7 + $0x130] sm:$0xff]
        %v329 = vld [vmem:[#allocation7 + $0x138] sm:$0xff]
        %v330 = vld [vmem:[#allocation7 + $0x140] sm:$0xff]
        %v331 = vld [vmem:[#allocation7 + $0x148] sm:$0xff]
        %v332 = vld [vmem:[#allocation7 + $0x150] sm:$0xff]
        %v333 = vld [vmem:[#allocation7 + $0x158] sm:$0xff]
        %v334 = vld [vmem:[#allocation7 + $0x160] sm:$0xff]
        %v335 = vld [vmem:[#allocation7 + $0x168] sm:$0xff]
        %v336 = vld [vmem:[#allocation7 + $0x170] sm:$0xff]
        %v337 = vld [vmem:[#allocation7 + $0x178] sm:$0xff]
        %v338 = vld [vmem:[#allocation7 + $0x180] sm:$0xff]
        %v339 = vld [vmem:[#allocation7 + $0x188] sm:$0xff]
        %v340 = vld [vmem:[#allocation7 + $0x190] sm:$0xff]
        %v341 = vld [vmem:[#allocation7 + $0x198] sm:$0xff]
        %v342 = vld [vmem:[#allocation7 + $0x1a0] sm:$0xff]
        %v343 = vld [vmem:[#allocation7 + $0x1a8] sm:$0xff]
        %v344 = vld [vmem:[#allocation7 + $0x1b0] sm:$0xff]
        %v345 = vld [vmem:[#allocation7 + $0x1b8] sm:$0xff]
        %v346 = vld [vmem:[#allocation7 + $0x1c0] sm:$0xff]
        %v347 = vld [vmem:[#allocation7 + $0x1c8] sm:$0xff]
        %v348 = vld [vmem:[#allocation7 + $0x1d0] sm:$0xff]
        %v349 = vld [vmem:[#allocation7 + $0x1d8] sm:$0xff]
        %v350 = vld [vmem:[#allocation7 + $0x1e0] sm:$0xff]
        %v351 = vld [vmem:[#allocation7 + $0x1e8] sm:$0xff]
        %v352 = vld [vmem:[#allocation7 + $0x1f0] sm:$0xff]
        %v353 = vld [vmem:[#allocation7 + $0x1f8] sm:$0xff]
        %354 = vmatprep.subr.mxu0 %v291
        %355 = vmatpush1.msra.mxu0 %v290
        %356 = vmatprep.subr.mxu0 %v295
        %357 = vmatpush1.msra.mxu0 %v294
        %358 = vmatprep.subr.mxu0 %v299
        %359 = vmatpush1.msra.mxu0 %v298
        %360 = vmatprep.subr.mxu0 %v303
        %361 = vmatpush1.msra.mxu0 %v302
        %362 = vmatprep.subr.mxu0 %v307
        %363 = vmatpush1.msra.mxu0 %v306
        %364 = vmatprep.subr.mxu0 %v311
        %365 = vmatpush1.msra.mxu0 %v310
        %366 = vmatprep.subr.mxu0 %v315
        %367 = vmatpush1.msra.mxu0 %v314
        %368 = vmatprep.subr.mxu0 %v319
        %369 = vmatpush1.msra.mxu0 %v318
        %370 = vmatprep.subr.mxu0 %v323
        %371 = vmatpush1.msra.mxu0 %v322
        %372 = vmatprep.subr.mxu0 %v327
        %373 = vmatpush1.msra.mxu0 %v326
        %374 = vmatprep.subr.mxu0 %v331
        %375 = vmatpush1.msra.mxu0 %v330
        %376 = vmatprep.subr.mxu0 %v335
        %377 = vmatpush1.msra.mxu0 %v334
        %378 = vmatprep.subr.mxu0 %v339
        %379 = vmatpush1.msra.mxu0 %v338
        %380 = vmatprep.subr.mxu0 %v343
        %381 = vmatpush1.msra.mxu0 %v342
        %382 = vmatprep.subr.mxu0 %v347
        %383 = vmatpush1.msra.mxu0 %v346
        %384 = vmatprep.subr.mxu0 %v351
        %385 = vmatpush1.msra.mxu0 %v350
        %386 = vmatprep.subr.mxu0 0.0
        %387 = vmatpush1.msra.mxu0 0.0
        %388 = vmatprep.subr.mxu0 0.0
        %389 = vmatpush1.msra.mxu0 0.0
        %390 = vmatprep.subr.mxu0 0.0
        %391 = vmatpush1.msra.mxu0 0.0
        %392 = vmatprep.subr.mxu0 0.0
        %393 = vmatpush1.msra.mxu0 0.0
        %394 = vmatprep.subr.mxu0 0.0
        %395 = vmatpush1.msra.mxu0 0.0
        %396 = vmatprep.subr.mxu0 0.0
        %397 = vmatpush1.msra.mxu0 0.0
        %398 = vmatprep.subr.mxu0 0.0
        %399 = vmatpush1.msra.mxu0 0.0
        %400 = vmatprep.subr.mxu0 0.0
        %401 = vmatpush1.msra.mxu0 0.0
        %402 = vmatprep.subr.mxu0 0.0
        %403 = vmatpush1.msra.mxu0 0.0
        %404 = vmatprep.subr.mxu0 0.0
        %405 = vmatpush1.msra.mxu0 0.0
        %406 = vmatprep.subr.mxu0 0.0
        %407 = vmatpush1.msra.mxu0 0.0
        %408 = vmatprep.subr.mxu0 0.0
        %409 = vmatpush1.msra.mxu0 0.0
        %410 = vmatprep.subr.mxu0 0.0
        %411 = vmatpush1.msra.mxu0 0.0
        %412 = vmatprep.subr.mxu0 0.0
        %413 = vmatpush1.msra.mxu0 0.0
        %414 = vmatprep.subr.mxu0 0.0
        %415 = vmatpush1.msra.mxu0 0.0
        %416 = vmatprep.subr.mxu0 0.0
        %417 = vmatpush1.msra.mxu0 0.0
        %418 = vmatprep.mubr.f32.mxu0 0.0
        %419 = vmatmul.mubr.f32.gmra.mrb[0].mxu0 %v289
        %v420 = vpop.f32.mrb[0].mxu0
        %v421 = vadd.f32 0.0, %v420
        %v422 = vpop.f32.mrb[0].mxu0
        %v423 = vadd.f32 0.0, %v422
        %424 = vdwg.mxu0
        %425 = vmatprep.subr.mxu0 %v293
        %426 = vmatpush1.msra.mxu0 %v292
        %427 = vmatprep.subr.mxu0 %v297
        %428 = vmatpush1.msra.mxu0 %v296
        %429 = vmatprep.subr.mxu0 %v301
        %430 = vmatpush1.msra.mxu0 %v300
        %431 = vmatprep.subr.mxu0 %v305
        %432 = vmatpush1.msra.mxu0 %v304
        %433 = vmatprep.subr.mxu0 %v309
        %434 = vmatpush1.msra.mxu0 %v308
        %435 = vmatprep.subr.mxu0 %v313
        %436 = vmatpush1.msra.mxu0 %v312
        %437 = vmatprep.subr.mxu0 %v317
        %438 = vmatpush1.msra.mxu0 %v316
        %439 = vmatprep.subr.mxu0 %v321
        %440 = vmatpush1.msra.mxu0 %v320
        %441 = vmatprep.subr.mxu0 %v325
        %442 = vmatpush1.msra.mxu0 %v324
        %443 = vmatprep.subr.mxu0 %v329
        %444 = vmatpush1.msra.mxu0 %v328
        %445 = vmatprep.subr.mxu0 %v333
        %446 = vmatpush1.msra.mxu0 %v332
        %447 = vmatprep.subr.mxu0 %v337
        %448 = vmatpush1.msra.mxu0 %v336
        %449 = vmatprep.subr.mxu0 %v341
        %450 = vmatpush1.msra.mxu0 %v340
        %451 = vmatprep.subr.mxu0 %v345
        %452 = vmatpush1.msra.mxu0 %v344
        %453 = vmatprep.subr.mxu0 %v349
        %454 = vmatpush1.msra.mxu0 %v348
        %455 = vmatprep.subr.mxu0 %v353
        %456 = vmatpush1.msra.mxu0 %v352
        %457 = vmatprep.subr.mxu0 0.0
        %458 = vmatpush1.msra.mxu0 0.0
        %459 = vmatprep.subr.mxu0 0.0
        %460 = vmatpush1.msra.mxu0 0.0
        %461 = vmatprep.subr.mxu0 0.0
        %462 = vmatpush1.msra.mxu0 0.0
        %463 = vmatprep.subr.mxu0 0.0
        %464 = vmatpush1.msra.mxu0 0.0
        %465 = vmatprep.subr.mxu0 0.0
        %466 = vmatpush1.msra.mxu0 0.0
        %467 = vmatprep.subr.mxu0 0.0
        %468 = vmatpush1.msra.mxu0 0.0
        %469 = vmatprep.subr.mxu0 0.0
        %470 = vmatpush1.msra.mxu0 0.0
        %471 = vmatprep.subr.mxu0 0.0
        %472 = vmatpush1.msra.mxu0 0.0
        %473 = vmatprep.subr.mxu0 0.0
        %474 = vmatpush1.msra.mxu0 0.0
        %475 = vmatprep.subr.mxu0 0.0
        %476 = vmatpush1.msra.mxu0 0.0
        %477 = vmatprep.subr.mxu0 0.0
        %478 = vmatpush1.msra.mxu0 0.0
        %479 = vmatprep.subr.mxu0 0.0
        %480 = vmatpush1.msra.mxu0 0.0
        %481 = vmatprep.subr.mxu0 0.0
        %482 = vmatpush1.msra.mxu0 0.0
        %483 = vmatprep.subr.mxu0 0.0
        %484 = vmatpush1.msra.mxu0 0.0
        %485 = vmatprep.subr.mxu0 0.0
        %486 = vmatpush1.msra.mxu0 0.0
        %487 = vmatprep.subr.mxu0 0.0
        %488 = vmatpush1.msra.mxu0 0.0
        %489 = vmatprep.mubr.f32.mxu0 0.0
        %490 = vmatmul.mubr.f32.gmra.mrb[0].mxu0 %v289
        %v491 = vpop.f32.mrb[0].mxu0
        %v492 = vadd.f32 0.0, %v491
        %v493 = vpop.f32.mrb[0].mxu0
        %v494 = vadd.f32 0.0, %v493
        %495 = vdwg.mxu0
        %v496 = vadd.f32 %v285, %v421
        %v497 = vadd.f32 %v286, %v423
        %v498 = vadd.f32 %v287, %v492
        %v499 = vadd.f32 %v288, %v494
        %v500 = vmul.f32 %v496, 0.5
        %v501 = vtanh.pop %v500
        %v502 = vmul.f32 %v501, 0.5
        %v503 = vadd.f32 %v502, 0.5
        %v504 = vmul.f32 %v497, 0.5
        %v505 = vtanh.pop %v504
        %v506 = vmul.f32 %v505, 0.5
        %v507 = vadd.f32 %v506, 0.5
        %v508 = vtanh.pop %v498
        %v509 = vmul.f32 %v499, 0.5
        %v510 = vtanh.pop %v509
        %v511 = vmul.f32 %v510, 0.5
        %v512 = vadd.f32 %v511, 0.5
        %v513 = vld [vmem:[#allocation3] sm:$0xff]
        %v514 = vmul.f32 %v507, %v513
        %v515 = vmul.f32 %v503, %v508
        %v516 = vadd.f32 %v514, %v515
        %v517 = vtanh.pop %v516
        %v518 = vmul.f32 %v512, %v517
        %519 = vst [vmem:[#allocation3] sm:$0xff] %v516
        %520 = vst [vmem:[#allocation2] sm:$0xff] %v518
        %v521 = vld [vmem:[#allocation9] sm:$0xff]
        %v522 = vld [vmem:[#allocation9 + $0x8] sm:$0xff]
        %v523 = vld [vmem:[#allocation9 + $0x10] sm:$0xff]
        %v524 = vld [vmem:[#allocation9 + $0x18] sm:$0xff]
        %v525 = vld [vmem:[#allocation9 + $0x20] sm:$0xff]
        %v526 = vld [vmem:[#allocation9 + $0x28] sm:$0xff]
        %v527 = vld [vmem:[#allocation9 + $0x30] sm:$0xff]
        %v528 = vld [vmem:[#allocation9 + $0x38] sm:$0xff]
        %v529 = vld [vmem:[#allocation9 + $0x40] sm:$0xff]
        %v530 = vld [vmem:[#allocation9 + $0x48] sm:$0xff]
        %v531 = vld [vmem:[#allocation9 + $0x50] sm:$0xff]
        %v532 = vld [vmem:[#allocation9 + $0x58] sm:$0xff]
        %v533 = vld [vmem:[#allocation9 + $0x60] sm:$0xff]
        %v534 = vld [vmem:[#allocation9 + $0x68] sm:$0xff]
        %v535 = vld [vmem:[#allocation9 + $0x70] sm:$0xff]
        %v536 = vld [vmem:[#allocation9 + $0x78] sm:$0xff]
        %v537 = vld [vmem:[#allocation10] sm:$0x1]
        %v539 = vlaneseq
        %v540 = vshrl.u32 %v539, 7
        %v541 = vsub.s32 0, %v540
        %v542 = vrot.slane %v537, %v541
        %544 = vmatprep.subr.mxu0 0.0
        %545 = vmatpush1.msra.mxu0 %v521
        %546 = vmatprep.subr.mxu0 0.0
        %547 = vmatpush1.msra.mxu0 %v522
        %548 = vmatprep.subr.mxu0 0.0
        %549 = vmatpush1.msra.mxu0 %v523
        %550 = vmatprep.subr.mxu0 0.0
        %551 = vmatpush1.msra.mxu0 %v524
        %552 = vmatprep.subr.mxu0 0.0
        %553 = vmatpush1.msra.mxu0 %v525
        %554 = vmatprep.subr.mxu0 0.0
        %555 = vmatpush1.msra.mxu0 %v526
        %556 = vmatprep.subr.mxu0 0.0
        %557 = vmatpush1.msra.mxu0 %v527
        %558 = vmatprep.subr.mxu0 0.0
        %559 = vmatpush1.msra.mxu0 %v528
        %560 = vmatprep.subr.mxu0 0.0
        %561 = vmatpush1.msra.mxu0 %v529
        %562 = vmatprep.subr.mxu0 0.0
        %563 = vmatpush1.msra.mxu0 %v530
        %564 = vmatprep.subr.mxu0 0.0
        %565 = vmatpush1.msra.mxu0 %v531
        %566 = vmatprep.subr.mxu0 0.0
        %567 = vmatpush1.msra.mxu0 %v532
        %568 = vmatprep.subr.mxu0 0.0
        %569 = vmatpush1.msra.mxu0 %v533
        %570 = vmatprep.subr.mxu0 0.0
        %571 = vmatpush1.msra.mxu0 %v534
        %572 = vmatprep.subr.mxu0 0.0
        %573 = vmatpush1.msra.mxu0 %v535
        %574 = vmatprep.subr.mxu0 0.0
        %575 = vmatpush1.msra.mxu0 %v536
        %576 = vmatprep.subr.mxu0 0.0
        %577 = vmatpush1.msra.mxu0 0.0
        %578 = vmatprep.subr.mxu0 0.0
        %579 = vmatpush1.msra.mxu0 0.0
        %580 = vmatprep.subr.mxu0 0.0
        %581 = vmatpush1.msra.mxu0 0.0
        %582 = vmatprep.subr.mxu0 0.0
        %583 = vmatpush1.msra.mxu0 0.0
        %584 = vmatprep.subr.mxu0 0.0
        %585 = vmatpush1.msra.mxu0 0.0
        %586 = vmatprep.subr.mxu0 0.0
        %587 = vmatpush1.msra.mxu0 0.0
        %588 = vmatprep.subr.mxu0 0.0
        %589 = vmatpush1.msra.mxu0 0.0
        %590 = vmatprep.subr.mxu0 0.0
        %591 = vmatpush1.msra.mxu0 0.0
        %592 = vmatprep.subr.mxu0 0.0
        %593 = vmatpush1.msra.mxu0 0.0
        %594 = vmatprep.subr.mxu0 0.0
        %595 = vmatpush1.msra.mxu0 0.0
        %596 = vmatprep.subr.mxu0 0.0
        %597 = vmatpush1.msra.mxu0 0.0
        %598 = vmatprep.subr.mxu0 0.0
        %599 = vmatpush1.msra.mxu0 0.0
        %600 = vmatprep.subr.mxu0 0.0
        %601 = vmatpush1.msra.mxu0 0.0
        %602 = vmatprep.subr.mxu0 0.0
        %603 = vmatpush1.msra.mxu0 0.0
        %604 = vmatprep.subr.mxu0 0.0
        %605 = vmatpush1.msra.mxu0 0.0
        %606 = vmatprep.subr.mxu0 0.0
        %607 = vmatpush1.msra.mxu0 0.0
        %608 = vmatprep.mubr.f32.mxu0 0.0
        %609 = vmatmul.mubr.f32.gmra.mrb[0].mxu0 %v518
        %v610 = vpop.f32.mrb[0].mxu0
        %v611 = vadd.f32 %v542, %v610
        %v612 = vpop.f32.mrb[0].mxu0
        %613 = vdwg.mxu0
        %vm614 = vcmask 15360
        %615 = vst.msk [vmem:[%s276] sm:$0xff] %vm614, %v611
        %s616 = scalar_lea.vmem %s240, 32 [#allocation4]
        %v617 = vld [vmem:[%s616] sm:$0xff]
        %v618 = vld [vmem:[%s616 + $0x8] sm:$0xff]
        %v619 = vld [vmem:[%s616 + $0x10] sm:$0xff]
        %v620 = vld [vmem:[%s616 + $0x18] sm:$0xff]
        %v621 = vld [vmem:[#allocation2] sm:$0xff]
        %v622 = vld [vmem:[#allocation7] sm:$0xff]
        %v623 = vld [vmem:[#allocation7 + $0x8] sm:$0xff]
        %v624 = vld [vmem:[#allocation7 + $0x10] sm:$0xff]
        %v625 = vld [vmem:[#allocation7 + $0x18] sm:$0xff]
        %v626 = vld [vmem:[#allocation7 + $0x20] sm:$0xff]
        %v627 = vld [vmem:[#allocation7 + $0x28] sm:$0xff]
        %v628 = vld [vmem:[#allocation7 + $0x30] sm:$0xff]
        %v629 = vld [vmem:[#allocation7 + $0x38] sm:$0xff]
        %v630 = vld [vmem:[#allocation7 + $0x40] sm:$0xff]
        %v631 = vld [vmem:[#allocation7 + $0x48] sm:$0xff]
        %v632 = vld [vmem:[#allocation7 + $0x50] sm:$0xff]
        %v633 = vld [vmem:[#allocation7 + $0x58] sm:$0xff]
        %v634 = vld [vmem:[#allocation7 + $0x60] sm:$0xff]
        %v635 = vld [vmem:[#allocation7 + $0x68] sm:$0xff]
        %v636 = vld [vmem:[#allocation7 + $0x70] sm:$0xff]
        %v637 = vld [vmem:[#allocation7 + $0x78] sm:$0xff]
        %v638 = vld [vmem:[#allocation7 + $0x80] sm:$0xff]
        %v639 = vld [vmem:[#allocation7 + $0x88] sm:$0xff]
        %v640 = vld [vmem:[#allocation7 + $0x90] sm:$0xff]
        %v641 = vld [vmem:[#allocation7 + $0x98] sm:$0xff]
        %v642 = vld [vmem:[#allocation7 + $0xa0] sm:$0xff]
        %v643 = vld [vmem:[#allocation7 + $0xa8] sm:$0xff]
        %v644 = vld [vmem:[#allocation7 + $0xb0] sm:$0xff]
        %v645 = vld [vmem:[#allocation7 + $0xb8] sm:$0xff]
        %v646 = vld [vmem:[#allocation7 + $0xc0] sm:$0xff]
        %v647 = vld [vmem:[#allocation7 + $0xc8] sm:$0xff]
        %v648 = vld [vmem:[#allocation7 + $0xd0] sm:$0xff]
        %v649 = vld [vmem:[#allocation7 + $0xd8] sm:$0xff]
        %v650 = vld [vmem:[#allocation7 + $0xe0] sm:$0xff]
        %v651 = vld [vmem:[#allocation7 + $0xe8] sm:$0xff]
        %v652 = vld [vmem:[#allocation7 + $0xf0] sm:$0xff]
        %v653 = vld [vmem:[#allocation7 + $0xf8] sm:$0xff]
        %v654 = vld [vmem:[#allocation7 + $0x100] sm:$0xff]
        %v655 = vld [vmem:[#allocation7 + $0x108] sm:$0xff]
        %v656 = vld [vmem:[#allocation7 + $0x110] sm:$0xff]
        %v657 = vld [vmem:[#allocation7 + $0x118] sm:$0xff]
        %v658 = vld [vmem:[#allocation7 + $0x120] sm:$0xff]
        %v659 = vld [vmem:[#allocation7 + $0x128] sm:$0xff]
        %v660 = vld [vmem:[#allocation7 + $0x130] sm:$0xff]
        %v661 = vld [vmem:[#allocation7 + $0x138] sm:$0xff]
        %v662 = vld [vmem:[#allocation7 + $0x140] sm:$0xff]
        %v663 = vld [vmem:[#allocation7 + $0x148] sm:$0xff]
        %v664 = vld [vmem:[#allocation7 + $0x150] sm:$0xff]
        %v665 = vld [vmem:[#allocation7 + $0x158] sm:$0xff]
        %v666 = vld [vmem:[#allocation7 + $0x160] sm:$0xff]
        %v667 = vld [vmem:[#allocation7 + $0x168] sm:$0xff]
        %v668 = vld [vmem:[#allocation7 + $0x170] sm:$0xff]
        %v669 = vld [vmem:[#allocation7 + $0x178] sm:$0xff]
        %v670 = vld [vmem:[#allocation7 + $0x180] sm:$0xff]
        %v671 = vld [vmem:[#allocation7 + $0x188] sm:$0xff]
        %v672 = vld [vmem:[#allocation7 + $0x190] sm:$0xff]
        %v673 = vld [vmem:[#allocation7 + $0x198] sm:$0xff]
        %v674 = vld [vmem:[#allocation7 + $0x1a0] sm:$0xff]
        %v675 = vld [vmem:[#allocation7 + $0x1a8] sm:$0xff]
        %v676 = vld [vmem:[#allocation7 + $0x1b0] sm:$0xff]
        %v677 = vld [vmem:[#allocation7 + $0x1b8] sm:$0xff]
        %v678 = vld [vmem:[#allocation7 + $0x1c0] sm:$0xff]
        %v679 = vld [vmem:[#allocation7 + $0x1c8] sm:$0xff]
        %v680 = vld [vmem:[#allocation7 + $0x1d0] sm:$0xff]
        %v681 = vld [vmem:[#allocation7 + $0x1d8] sm:$0xff]
        %v682 = vld [vmem:[#allocation7 + $0x1e0] sm:$0xff]
        %v683 = vld [vmem:[#allocation7 + $0x1e8] sm:$0xff]
        %v684 = vld [vmem:[#allocation7 + $0x1f0] sm:$0xff]
        %v685 = vld [vmem:[#allocation7 + $0x1f8] sm:$0xff]
        %686 = vmatprep.subr.mxu0 %v623
        %687 = vmatpush1.msra.mxu0 %v622
        %688 = vmatprep.subr.mxu0 %v627
        %689 = vmatpush1.msra.mxu0 %v626
        %690 = vmatprep.subr.mxu0 %v631
        %691 = vmatpush1.msra.mxu0 %v630
        %692 = vmatprep.subr.mxu0 %v635
        %693 = vmatpush1.msra.mxu0 %v634
        %694 = vmatprep.subr.mxu0 %v639
        %695 = vmatpush1.msra.mxu0 %v638
        %696 = vmatprep.subr.mxu0 %v643
        %697 = vmatpush1.msra.mxu0 %v642
        %698 = vmatprep.subr.mxu0 %v647
        %699 = vmatpush1.msra.mxu0 %v646
        %700 = vmatprep.subr.mxu0 %v651
        %701 = vmatpush1.msra.mxu0 %v650
        %702 = vmatprep.subr.mxu0 %v655
        %703 = vmatpush1.msra.mxu0 %v654
        %704 = vmatprep.subr.mxu0 %v659
        %705 = vmatpush1.msra.mxu0 %v658
        %706 = vmatprep.subr.mxu0 %v663
        %707 = vmatpush1.msra.mxu0 %v662
        %708 = vmatprep.subr.mxu0 %v667
        %709 = vmatpush1.msra.mxu0 %v666
        %710 = vmatprep.subr.mxu0 %v671
        %711 = vmatpush1.msra.mxu0 %v670
        %712 = vmatprep.subr.mxu0 %v675
        %713 = vmatpush1.msra.mxu0 %v674
        %714 = vmatprep.subr.mxu0 %v679
        %715 = vmatpush1.msra.mxu0 %v678
        %716 = vmatprep.subr.mxu0 %v683
        %717 = vmatpush1.msra.mxu0 %v682
        %718 = vmatprep.subr.mxu0 0.0
        %719 = vmatpush1.msra.mxu0 0.0
        %720 = vmatprep.subr.mxu0 0.0
        %721 = vmatpush1.msra.mxu0 0.0
        %722 = vmatprep.subr.mxu0 0.0
        %723 = vmatpush1.msra.mxu0 0.0
        %724 = vmatprep.subr.mxu0 0.0
        %725 = vmatpush1.msra.mxu0 0.0
        %726 = vmatprep.subr.mxu0 0.0
        %727 = vmatpush1.msra.mxu0 0.0
        %728 = vmatprep.subr.mxu0 0.0
        %729 = vmatpush1.msra.mxu0 0.0
        %730 = vmatprep.subr.mxu0 0.0
        %731 = vmatpush1.msra.mxu0 0.0
        %732 = vmatprep.subr.mxu0 0.0
        %733 = vmatpush1.msra.mxu0 0.0
        %734 = vmatprep.subr.mxu0 0.0
        %735 = vmatpush1.msra.mxu0 0.0
        %736 = vmatprep.subr.mxu0 0.0
        %737 = vmatpush1.msra.mxu0 0.0
        %738 = vmatprep.subr.mxu0 0.0
        %739 = vmatpush1.msra.mxu0 0.0
        %740 = vmatprep.subr.mxu0 0.0
        %741 = vmatpush1.msra.mxu0 0.0
        %742 = vmatprep.subr.mxu0 0.0
        %743 = vmatpush1.msra.mxu0 0.0
        %744 = vmatprep.subr.mxu0 0.0
        %745 = vmatpush1.msra.mxu0 0.0
        %746 = vmatprep.subr.mxu0 0.0
        %747 = vmatpush1.msra.mxu0 0.0
        %748 = vmatprep.subr.mxu0 0.0
        %749 = vmatpush1.msra.mxu0 0.0
        %750 = vmatprep.mubr.f32.mxu0 0.0
        %751 = vmatmul.mubr.f32.gmra.mrb[0].mxu0 %v621
        %v752 = vpop.f32.mrb[0].mxu0
        %v753 = vadd.f32 0.0, %v752
        %v754 = vpop.f32.mrb[0].mxu0
        %v755 = vadd.f32 0.0, %v754
        %756 = vdwg.mxu0
        %757 = vmatprep.subr.mxu0 %v625
        %758 = vmatpush1.msra.mxu0 %v624
        %759 = vmatprep.subr.mxu0 %v629
        %760 = vmatpush1.msra.mxu0 %v628
        %761 = vmatprep.subr.mxu0 %v633
        %762 = vmatpush1.msra.mxu0 %v632
        %763 = vmatprep.subr.mxu0 %v637
        %764 = vmatpush1.msra.mxu0 %v636
        %765 = vmatprep.subr.mxu0 %v641
        %766 = vmatpush1.msra.mxu0 %v640
        %767 = vmatprep.subr.mxu0 %v645
        %768 = vmatpush1.msra.mxu0 %v644
        %769 = vmatprep.subr.mxu0 %v649
        %770 = vmatpush1.msra.mxu0 %v648
        %771 = vmatprep.subr.mxu0 %v653
        %772 = vmatpush1.msra.mxu0 %v652
        %773 = vmatprep.subr.mxu0 %v657
        %774 = vmatpush1.msra.mxu0 %v656
        %775 = vmatprep.subr.mxu0 %v661
        %776 = vmatpush1.msra.mxu0 %v660
        %777 = vmatprep.subr.mxu0 %v665
        %778 = vmatpush1.msra.mxu0 %v664
        %779 = vmatprep.subr.mxu0 %v669
        %780 = vmatpush1.msra.mxu0 %v668
        %781 = vmatprep.subr.mxu0 %v673
        %782 = vmatpush1.msra.mxu0 %v672
        %783 = vmatprep.subr.mxu0 %v677
        %784 = vmatpush1.msra.mxu0 %v676
        %785 = vmatprep.subr.mxu0 %v681
        %786 = vmatpush1.msra.mxu0 %v680
        %787 = vmatprep.subr.mxu0 %v685
        %788 = vmatpush1.msra.mxu0 %v684
        %789 = vmatprep.subr.mxu0 0.0
        %790 = vmatpush1.msra.mxu0 0.0
        %791 = vmatprep.subr.mxu0 0.0
        %792 = vmatpush1.msra.mxu0 0.0
        %793 = vmatprep.subr.mxu0 0.0
        %794 = vmatpush1.msra.mxu0 0.0
        %795 = vmatprep.subr.mxu0 0.0
        %796 = vmatpush1.msra.mxu0 0.0
        %797 = vmatprep.subr.mxu0 0.0
        %798 = vmatpush1.msra.mxu0 0.0
        %799 = vmatprep.subr.mxu0 0.0
        %800 = vmatpush1.msra.mxu0 0.0
        %801 = vmatprep.subr.mxu0 0.0
        %802 = vmatpush1.msra.mxu0 0.0
        %803 = vmatprep.subr.mxu0 0.0
        %804 = vmatpush1.msra.mxu0 0.0
        %805 = vmatprep.subr.mxu0 0.0
        %806 = vmatpush1.msra.mxu0 0.0
        %807 = vmatprep.subr.mxu0 0.0
        %808 = vmatpush1.msra.mxu0 0.0
        %809 = vmatprep.subr.mxu0 0.0
        %810 = vmatpush1.msra.mxu0 0.0
        %811 = vmatprep.subr.mxu0 0.0
        %812 = vmatpush1.msra.mxu0 0.0
        %813 = vmatprep.subr.mxu0 0.0
        %814 = vmatpush1.msra.mxu0 0.0
        %815 = vmatprep.subr.mxu0 0.0
        %816 = vmatpush1.msra.mxu0 0.0
        %817 = vmatprep.subr.mxu0 0.0
        %818 = vmatpush1.msra.mxu0 0.0
        %819 = vmatprep.subr.mxu0 0.0
        %820 = vmatpush1.msra.mxu0 0.0
        %821 = vmatprep.mubr.f32.mxu0 0.0
        %822 = vmatmul.mubr.f32.gmra.mrb[0].mxu0 %v621
        %v823 = vpop.f32.mrb[0].mxu0
        %v824 = vadd.f32 0.0, %v823
        %v825 = vpop.f32.mrb[0].mxu0
        %v826 = vadd.f32 0.0, %v825
        %827 = vdwg.mxu0
        %v828 = vadd.f32 %v617, %v753
        %v829 = vadd.f32 %v618, %v755
        %v830 = vadd.f32 %v619, %v824
        %v831 = vadd.f32 %v620, %v826
        %v832 = vmul.f32 %v828, 0.5
        %v833 = vtanh.pop %v832
        %v834 = vmul.f32 %v833, 0.5
        %v835 = vadd.f32 %v834, 0.5
        %v836 = vmul.f32 %v829, 0.5
        %v837 = vtanh.pop %v836
        %v838 = vmul.f32 %v837, 0.5
        %v839 = vadd.f32 %v838, 0.5
        %v840 = vtanh.pop %v830
        %v841 = vmul.f32 %v831, 0.5
        %v842 = vtanh.pop %v841
        %v843 = vmul.f32 %v842, 0.5
        %v844 = vadd.f32 %v843, 0.5
        %v845 = vld [vmem:[#allocation3] sm:$0xff]
        %v846 = vmul.f32 %v839, %v845
        %v847 = vmul.f32 %v835, %v840
        %v848 = vadd.f32 %v846, %v847
        %v849 = vtanh.pop %v848
        %v850 = vmul.f32 %v844, %v849
        %851 = vst [vmem:[#allocation3] sm:$0xff] %v848
        %852 = vst [vmem:[#allocation2] sm:$0xff] %v850
        %v853 = vld [vmem:[#allocation9] sm:$0xff]
        %v854 = vld [vmem:[#allocation9 + $0x8] sm:$0xff]
        %v855 = vld [vmem:[#allocation9 + $0x10] sm:$0xff]
        %v856 = vld [vmem:[#allocation9 + $0x18] sm:$0xff]
        %v857 = vld [vmem:[#allocation9 + $0x20] sm:$0xff]
        %v858 = vld [vmem:[#allocation9 + $0x28] sm:$0xff]
        %v859 = vld [vmem:[#allocation9 + $0x30] sm:$0xff]
        %v860 = vld [vmem:[#allocation9 + $0x38] sm:$0xff]
        %v861 = vld [vmem:[#allocation9 + $0x40] sm:$0xff]
        %v862 = vld [vmem:[#allocation9 + $0x48] sm:$0xff]
        %v863 = vld [vmem:[#allocation9 + $0x50] sm:$0xff]
        %v864 = vld [vmem:[#allocation9 + $0x58] sm:$0xff]
        %v865 = vld [vmem:[#allocation9 + $0x60] sm:$0xff]
        %v866 = vld [vmem:[#allocation9 + $0x68] sm:$0xff]
        %v867 = vld [vmem:[#allocation9 + $0x70] sm:$0xff]
        %v868 = vld [vmem:[#allocation9 + $0x78] sm:$0xff]
        %v869 = vld [vmem:[#allocation10] sm:$0x1]
        %v871 = vlaneseq
        %v872 = vshrl.u32 %v871, 7
        %v873 = vsub.s32 0, %v872
        %v874 = vrot.slane %v869, %v873
        %876 = vmatprep.subr.mxu0 0.0
        %877 = vmatpush1.msra.mxu0 %v853
        %878 = vmatprep.subr.mxu0 0.0
        %879 = vmatpush1.msra.mxu0 %v854
        %880 = vmatprep.subr.mxu0 0.0
        %881 = vmatpush1.msra.mxu0 %v855
        %882 = vmatprep.subr.mxu0 0.0
        %883 = vmatpush1.msra.mxu0 %v856
        %884 = vmatprep.subr.mxu0 0.0
        %885 = vmatpush1.msra.mxu0 %v857
        %886 = vmatprep.subr.mxu0 0.0
        %887 = vmatpush1.msra.mxu0 %v858
        %888 = vmatprep.subr.mxu0 0.0
        %889 = vmatpush1.msra.mxu0 %v859
        %890 = vmatprep.subr.mxu0 0.0
        %891 = vmatpush1.msra.mxu0 %v860
        %892 = vmatprep.subr.mxu0 0.0
        %893 = vmatpush1.msra.mxu0 %v861
        %894 = vmatprep.subr.mxu0 0.0
        %895 = vmatpush1.msra.mxu0 %v862
        %896 = vmatprep.subr.mxu0 0.0
        %897 = vmatpush1.msra.mxu0 %v863
        %898 = vmatprep.subr.mxu0 0.0
        %899 = vmatpush1.msra.mxu0 %v864
        %900 = vmatprep.subr.mxu0 0.0
        %901 = vmatpush1.msra.mxu0 %v865
        %902 = vmatprep.subr.mxu0 0.0
        %903 = vmatpush1.msra.mxu0 %v866
        %904 = vmatprep.subr.mxu0 0.0
        %905 = vmatpush1.msra.mxu0 %v867
        %906 = vmatprep.subr.mxu0 0.0
        %907 = vmatpush1.msra.mxu0 %v868
        %908 = vmatprep.subr.mxu0 0.0
        %909 = vmatpush1.msra.mxu0 0.0
        %910 = vmatprep.subr.mxu0 0.0
        %911 = vmatpush1.msra.mxu0 0.0
        %912 = vmatprep.subr.mxu0 0.0
        %913 = vmatpush1.msra.mxu0 0.0
        %914 = vmatprep.subr.mxu0 0.0
        %915 = vmatpush1.msra.mxu0 0.0
        %916 = vmatprep.subr.mxu0 0.0
        %917 = vmatpush1.msra.mxu0 0.0
        %918 = vmatprep.subr.mxu0 0.0
        %919 = vmatpush1.msra.mxu0 0.0
        %920 = vmatprep.subr.mxu0 0.0
        %921 = vmatpush1.msra.mxu0 0.0
        %922 = vmatprep.subr.mxu0 0.0
        %923 = vmatpush1.msra.mxu0 0.0
        %924 = vmatprep.subr.mxu0 0.0
        %925 = vmatpush1.msra.mxu0 0.0
        %926 = vmatprep.subr.mxu0 0.0
        %927 = vmatpush1.msra.mxu0 0.0
        %928 = vmatprep.subr.mxu0 0.0
        %929 = vmatpush1.msra.mxu0 0.0
        %930 = vmatprep.subr.mxu0 0.0
        %931 = vmatpush1.msra.mxu0 0.0
        %932 = vmatprep.subr.mxu0 0.0
        %933 = vmatpush1.msra.mxu0 0.0
        %934 = vmatprep.subr.mxu0 0.0
        %935 = vmatpush1.msra.mxu0 0.0
        %936 = vmatprep.subr.mxu0 0.0
        %937 = vmatpush1.msra.mxu0 0.0
        %938 = vmatprep.subr.mxu0 0.0
        %939 = vmatpush1.msra.mxu0 0.0
        %940 = vmatprep.mubr.f32.mxu0 0.0
        %941 = vmatmul.mubr.f32.gmra.mrb[0].mxu0 %v850
        %v942 = vpop.f32.mrb[0].mxu0
        %v943 = vadd.f32 %v874, %v942
        %v944 = vpop.f32.mrb[0].mxu0
        %945 = vdwg.mxu0
        %s946 = scalar_lea.vmem %s276, 8 [#allocation12]
        %947 = vst.msk [vmem:[%s946] sm:$0xff] %vm614, %v943
        %s948 = scalar_lea.vmem %s240, 64 [#allocation4]
        %v949 = vld [vmem:[%s948] sm:$0xff]
        %v950 = vld [vmem:[%s948 + $0x8] sm:$0xff]
        %v951 = vld [vmem:[%s948 + $0x10] sm:$0xff]
        %v952 = vld [vmem:[%s948 + $0x18] sm:$0xff]
        %v953 = vld [vmem:[#allocation2] sm:$0xff]
        %v954 = vld [vmem:[#allocation7] sm:$0xff]
        %v955 = vld [vmem:[#allocation7 + $0x8] sm:$0xff]
        %v956 = vld [vmem:[#allocation7 + $0x10] sm:$0xff]
        %v957 = vld [vmem:[#allocation7 + $0x18] sm:$0xff]
        %v958 = vld [vmem:[#allocation7 + $0x20] sm:$0xff]
        %v959 = vld [vmem:[#allocation7 + $0x28] sm:$0xff]
        %v960 = vld [vmem:[#allocation7 + $0x30] sm:$0xff]
        %v961 = vld [vmem:[#allocation7 + $0x38] sm:$0xff]
        %v962 = vld [vmem:[#allocation7 + $0x40] sm:$0xff]
        %v963 = vld [vmem:[#allocation7 + $0x48] sm:$0xff]
        %v964 = vld [vmem:[#allocation7 + $0x50] sm:$0xff]
        %v965 = vld [vmem:[#allocation7 + $0x58] sm:$0xff]
        %v966 = vld [vmem:[#allocation7 + $0x60] sm:$0xff]
        %v967 = vld [vmem:[#allocation7 + $0x68] sm:$0xff]
        %v968 = vld [vmem:[#allocation7 + $0x70] sm:$0xff]
        %v969 = vld [vmem:[#allocation7 + $0x78] sm:$0xff]
        %v970 = vld [vmem:[#allocation7 + $0x80] sm:$0xff]
        %v971 = vld [vmem:[#allocation7 + $0x88] sm:$0xff]
        %v972 = vld [vmem:[#allocation7 + $0x90] sm:$0xff]
        %v973 = vld [vmem:[#allocation7 + $0x98] sm:$0xff]
        %v974 = vld [vmem:[#allocation7 + $0xa0] sm:$0xff]
        %v975 = vld [vmem:[#allocation7 + $0xa8] sm:$0xff]
        %v976 = vld [vmem:[#allocation7 + $0xb0] sm:$0xff]
        %v977 = vld [vmem:[#allocation7 + $0xb8] sm:$0xff]
        %v978 = vld [vmem:[#allocation7 + $0xc0] sm:$0xff]
        %v979 = vld [vmem:[#allocation7 + $0xc8] sm:$0xff]
        %v980 = vld [vmem:[#allocation7 + $0xd0] sm:$0xff]
        %v981 = vld [vmem:[#allocation7 + $0xd8] sm:$0xff]
        %v982 = vld [vmem:[#allocation7 + $0xe0] sm:$0xff]
        %v983 = vld [vmem:[#allocation7 + $0xe8] sm:$0xff]
        %v984 = vld [vmem:[#allocation7 + $0xf0] sm:$0xff]
        %v985 = vld [vmem:[#allocation7 + $0xf8] sm:$0xff]
        %v986 = vld [vmem:[#allocation7 + $0x100] sm:$0xff]
        %v987 = vld [vmem:[#allocation7 + $0x108] sm:$0xff]
        %v988 = vld [vmem:[#allocation7 + $0x110] sm:$0xff]
        %v989 = vld [vmem:[#allocation7 + $0x118] sm:$0xff]
        %v990 = vld [vmem:[#allocation7 + $0x120] sm:$0xff]
        %v991 = vld [vmem:[#allocation7 + $0x128] sm:$0xff]
        %v992 = vld [vmem:[#allocation7 + $0x130] sm:$0xff]
        %v993 = vld [vmem:[#allocation7 + $0x138] sm:$0xff]
        %v994 = vld [vmem:[#allocation7 + $0x140] sm:$0xff]
        %v995 = vld [vmem:[#allocation7 + $0x148] sm:$0xff]
        %v996 = vld [vmem:[#allocation7 + $0x150] sm:$0xff]
        %v997 = vld [vmem:[#allocation7 + $0x158] sm:$0xff]
        %v998 = vld [vmem:[#allocation7 + $0x160] sm:$0xff]
        %v999 = vld [vmem:[#allocation7 + $0x168] sm:$0xff]
        %v1000 = vld [vmem:[#allocation7 + $0x170] sm:$0xff]
        %v1001 = vld [vmem:[#allocation7 + $0x178] sm:$0xff]
        %v1002 = vld [vmem:[#allocation7 + $0x180] sm:$0xff]
        %v1003 = vld [vmem:[#allocation7 + $0x188] sm:$0xff]
        %v1004 = vld [vmem:[#allocation7 + $0x190] sm:$0xff]
        %v1005 = vld [vmem:[#allocation7 + $0x198] sm:$0xff]
        %v1006 = vld [vmem:[#allocation7 + $0x1a0] sm:$0xff]
        %v1007 = vld [vmem:[#allocation7 + $0x1a8] sm:$0xff]
        %v1008 = vld [vmem:[#allocation7 + $0x1b0] sm:$0xff]
        %v1009 = vld [vmem:[#allocation7 + $0x1b8] sm:$0xff]
        %v1010 = vld [vmem:[#allocation7 + $0x1c0] sm:$0xff]
        %v1011 = vld [vmem:[#allocation7 + $0x1c8] sm:$0xff]
        %v1012 = vld [vmem:[#allocation7 + $0x1d0] sm:$0xff]
        %v1013 = vld [vmem:[#allocation7 + $0x1d8] sm:$0xff]
        %v1014 = vld [vmem:[#allocation7 + $0x1e0] sm:$0xff]
        %v1015 = vld [vmem:[#allocation7 + $0x1e8] sm:$0xff]
        %v1016 = vld [vmem:[#allocation7 + $0x1f0] sm:$0xff]
        %v1017 = vld [vmem:[#allocation7 + $0x1f8] sm:$0xff]
        %1018 = vmatprep.subr.mxu0 %v955
        %1019 = vmatpush1.msra.mxu0 %v954
        %1020 = vmatprep.subr.mxu0 %v959
        %1021 = vmatpush1.msra.mxu0 %v958
        %1022 = vmatprep.subr.mxu0 %v963
        %1023 = vmatpush1.msra.mxu0 %v962
        %1024 = vmatprep.subr.mxu0 %v967
        %1025 = vmatpush1.msra.mxu0 %v966
        %1026 = vmatprep.subr.mxu0 %v971
        %1027 = vmatpush1.msra.mxu0 %v970
        %1028 = vmatprep.subr.mxu0 %v975
        %1029 = vmatpush1.msra.mxu0 %v974
        %1030 = vmatprep.subr.mxu0 %v979
        %1031 = vmatpush1.msra.mxu0 %v978
        %1032 = vmatprep.subr.mxu0 %v983
        %1033 = vmatpush1.msra.mxu0 %v982
        %1034 = vmatprep.subr.mxu0 %v987
        %1035 = vmatpush1.msra.mxu0 %v986
        %1036 = vmatprep.subr.mxu0 %v991
        %1037 = vmatpush1.msra.mxu0 %v990
        %1038 = vmatprep.subr.mxu0 %v995
        %1039 = vmatpush1.msra.mxu0 %v994
        %1040 = vmatprep.subr.mxu0 %v999
        %1041 = vmatpush1.msra.mxu0 %v998
        %1042 = vmatprep.subr.mxu0 %v1003
        %1043 = vmatpush1.msra.mxu0 %v1002
        %1044 = vmatprep.subr.mxu0 %v1007
        %1045 = vmatpush1.msra.mxu0 %v1006
        %1046 = vmatprep.subr.mxu0 %v1011
        %1047 = vmatpush1.msra.mxu0 %v1010
        %1048 = vmatprep.subr.mxu0 %v1015
        %1049 = vmatpush1.msra.mxu0 %v1014
        %1050 = vmatprep.subr.mxu0 0.0
        %1051 = vmatpush1.msra.mxu0 0.0
        %1052 = vmatprep.subr.mxu0 0.0
        %1053 = vmatpush1.msra.mxu0 0.0
        %1054 = vmatprep.subr.mxu0 0.0
        %1055 = vmatpush1.msra.mxu0 0.0
        %1056 = vmatprep.subr.mxu0 0.0
        %1057 = vmatpush1.msra.mxu0 0.0
        %1058 = vmatprep.subr.mxu0 0.0
        %1059 = vmatpush1.msra.mxu0 0.0
        %1060 = vmatprep.subr.mxu0 0.0
        %1061 = vmatpush1.msra.mxu0 0.0
        %1062 = vmatprep.subr.mxu0 0.0
        %1063 = vmatpush1.msra.mxu0 0.0
        %1064 = vmatprep.subr.mxu0 0.0
        %1065 = vmatpush1.msra.mxu0 0.0
        %1066 = vmatprep.subr.mxu0 0.0
        %1067 = vmatpush1.msra.mxu0 0.0
        %1068 = vmatprep.subr.mxu0 0.0
        %1069 = vmatpush1.msra.mxu0 0.0
        %1070 = vmatprep.subr.mxu0 0.0
        %1071 = vmatpush1.msra.mxu0 0.0
        %1072 = vmatprep.subr.mxu0 0.0
        %1073 = vmatpush1.msra.mxu0 0.0
        %1074 = vmatprep.subr.mxu0 0.0
        %1075 = vmatpush1.msra.mxu0 0.0
        %1076 = vmatprep.subr.mxu0 0.0
        %1077 = vmatpush1.msra.mxu0 0.0
        %1078 = vmatprep.subr.mxu0 0.0
        %1079 = vmatpush1.msra.mxu0 0.0
        %1080 = vmatprep.subr.mxu0 0.0
        %1081 = vmatpush1.msra.mxu0 0.0
        %1082 = vmatprep.mubr.f32.mxu0 0.0
        %1083 = vmatmul.mubr.f32.gmra.mrb[0].mxu0 %v953
        %v1084 = vpop.f32.mrb[0].mxu0
        %v1085 = vadd.f32 0.0, %v1084
        %v1086 = vpop.f32.mrb[0].mxu0
        %v1087 = vadd.f32 0.0, %v1086
        %1088 = vdwg.mxu0
        %1089 = vmatprep.subr.mxu0 %v957
        %1090 = vmatpush1.msra.mxu0 %v956
        %1091 = vmatprep.subr.mxu0 %v961
        %1092 = vmatpush1.msra.mxu0 %v960
        %1093 = vmatprep.subr.mxu0 %v965
        %1094 = vmatpush1.msra.mxu0 %v964
        %1095 = vmatprep.subr.mxu0 %v969
        %1096 = vmatpush1.msra.mxu0 %v968
        %1097 = vmatprep.subr.mxu0 %v973
        %1098 = vmatpush1.msra.mxu0 %v972
        %1099 = vmatprep.subr.mxu0 %v977
        %1100 = vmatpush1.msra.mxu0 %v976
        %1101 = vmatprep.subr.mxu0 %v981
        %1102 = vmatpush1.msra.mxu0 %v980
        %1103 = vmatprep.subr.mxu0 %v985
        %1104 = vmatpush1.msra.mxu0 %v984
        %1105 = vmatprep.subr.mxu0 %v989
        %1106 = vmatpush1.msra.mxu0 %v988
        %1107 = vmatprep.subr.mxu0 %v993
        %1108 = vmatpush1.msra.mxu0 %v992
        %1109 = vmatprep.subr.mxu0 %v997
        %1110 = vmatpush1.msra.mxu0 %v996
        %1111 = vmatprep.subr.mxu0 %v1001
        %1112 = vmatpush1.msra.mxu0 %v1000
        %1113 = vmatprep.subr.mxu0 %v1005
        %1114 = vmatpush1.msra.mxu0 %v1004
        %1115 = vmatprep.subr.mxu0 %v1009
        %1116 = vmatpush1.msra.mxu0 %v1008
        %1117 = vmatprep.subr.mxu0 %v1013
        %1118 = vmatpush1.msra.mxu0 %v1012
        %1119 = vmatprep.subr.mxu0 %v1017
        %1120 = vmatpush1.msra.mxu0 %v1016
        %1121 = vmatprep.subr.mxu0 0.0
        %1122 = vmatpush1.msra.mxu0 0.0
        %1123 = vmatprep.subr.mxu0 0.0
        %1124 = vmatpush1.msra.mxu0 0.0
        %1125 = vmatprep.subr.mxu0 0.0
        %1126 = vmatpush1.msra.mxu0 0.0
        %1127 = vmatprep.subr.mxu0 0.0
        %1128 = vmatpush1.msra.mxu0 0.0
        %1129 = vmatprep.subr.mxu0 0.0
        %1130 = vmatpush1.msra.mxu0 0.0
        %1131 = vmatprep.subr.mxu0 0.0
        %1132 = vmatpush1.msra.mxu0 0.0
        %1133 = vmatprep.subr.mxu0 0.0
        %1134 = vmatpush1.msra.mxu0 0.0
        %1135 = vmatprep.subr.mxu0 0.0
        %1136 = vmatpush1.msra.mxu0 0.0
        %1137 = vmatprep.subr.mxu0 0.0
        %1138 = vmatpush1.msra.mxu0 0.0
        %1139 = vmatprep.subr.mxu0 0.0
        %1140 = vmatpush1.msra.mxu0 0.0
        %1141 = vmatprep.subr.mxu0 0.0
        %1142 = vmatpush1.msra.mxu0 0.0
        %1143 = vmatprep.subr.mxu0 0.0
        %1144 = vmatpush1.msra.mxu0 0.0
        %1145 = vmatprep.subr.mxu0 0.0
        %1146 = vmatpush1.msra.mxu0 0.0
        %1147 = vmatprep.subr.mxu0 0.0
        %1148 = vmatpush1.msra.mxu0 0.0
        %1149 = vmatprep.subr.mxu0 0.0
        %1150 = vmatpush1.msra.mxu0 0.0
        %1151 = vmatprep.subr.mxu0 0.0
        %1152 = vmatpush1.msra.mxu0 0.0
        %1153 = vmatprep.mubr.f32.mxu0 0.0
        %1154 = vmatmul.mubr.f32.gmra.mrb[0].mxu0 %v953
        %v1155 = vpop.f32.mrb[0].mxu0
        %v1156 = vadd.f32 0.0, %v1155
        %v1157 = vpop.f32.mrb[0].mxu0
        %v1158 = vadd.f32 0.0, %v1157
        %1159 = vdwg.mxu0
        %v1160 = vadd.f32 %v949, %v1085
        %v1161 = vadd.f32 %v950, %v1087
        %v1162 = vadd.f32 %v951, %v1156
        %v1163 = vadd.f32 %v952, %v1158
        %v1164 = vmul.f32 %v1160, 0.5
        %v1165 = vtanh.pop %v1164
        %v1166 = vmul.f32 %v1165, 0.5
        %v1167 = vadd.f32 %v1166, 0.5
        %v1168 = vmul.f32 %v1161, 0.5
        %v1169 = vtanh.pop %v1168
        %v1170 = vmul.f32 %v1169, 0.5
        %v1171 = vadd.f32 %v1170, 0.5
        %v1172 = vtanh.pop %v1162
        %v1173 = vmul.f32 %v1163, 0.5
        %v1174 = vtanh.pop %v1173
        %v1175 = vmul.f32 %v1174, 0.5
        %v1176 = vadd.f32 %v1175, 0.5
        %v1177 = vld [vmem:[#allocation3] sm:$0xff]
        %v1178 = vmul.f32 %v1171, %v1177
        %v1179 = vmul.f32 %v1167, %v1172
        %v1180 = vadd.f32 %v1178, %v1179
        %v1181 = vtanh.pop %v1180
        %v1182 = vmul.f32 %v1176, %v1181
        %1183 = vst [vmem:[#allocation3] sm:$0xff] %v1180
        %1184 = vst [vmem:[#allocation2] sm:$0xff] %v1182
        %v1185 = vld [vmem:[#allocation9] sm:$0xff]
        %v1186 = vld [vmem:[#allocation9 + $0x8] sm:$0xff]
        %v1187 = vld [vmem:[#allocation9 + $0x10] sm:$0xff]
        %v1188 = vld [vmem:[#allocation9 + $0x18] sm:$0xff]
        %v1189 = vld [vmem:[#allocation9 + $0x20] sm:$0xff]
        %v1190 = vld [vmem:[#allocation9 + $0x28] sm:$0xff]
        %v1191 = vld [vmem:[#allocation9 + $0x30] sm:$0xff]
        %v1192 = vld [vmem:[#allocation9 + $0x38] sm:$0xff]
        %v1193 = vld [vmem:[#allocation9 + $0x40] sm:$0xff]
        %v1194 = vld [vmem:[#allocation9 + $0x48] sm:$0xff]
        %v1195 = vld [vmem:[#allocation9 + $0x50] sm:$0xff]
        %v1196 = vld [vmem:[#allocation9 + $0x58] sm:$0xff]
        %v1197 = vld [vmem:[#allocation9 + $0x60] sm:$0xff]
        %v1198 = vld [vmem:[#allocation9 + $0x68] sm:$0xff]
        %v1199 = vld [vmem:[#allocation9 + $0x70] sm:$0xff]
        %v1200 = vld [vmem:[#allocation9 + $0x78] sm:$0xff]
        %v1201 = vld [vmem:[#allocation10] sm:$0x1]
        %v1203 = vlaneseq
        %v1204 = vshrl.u32 %v1203, 7
        %v1205 = vsub.s32 0, %v1204
        %v1206 = vrot.slane %v1201, %v1205
        %1208 = vmatprep.subr.mxu0 0.0
        %1209 = vmatpush1.msra.mxu0 %v1185
        %1210 = vmatprep.subr.mxu0 0.0
        %1211 = vmatpush1.msra.mxu0 %v1186
        %1212 = vmatprep.subr.mxu0 0.0
        %1213 = vmatpush1.msra.mxu0 %v1187
        %1214 = vmatprep.subr.mxu0 0.0
        %1215 = vmatpush1.msra.mxu0 %v1188
        %1216 = vmatprep.subr.mxu0 0.0
        %1217 = vmatpush1.msra.mxu0 %v1189
        %1218 = vmatprep.subr.mxu0 0.0
        %1219 = vmatpush1.msra.mxu0 %v1190
        %1220 = vmatprep.subr.mxu0 0.0
        %1221 = vmatpush1.msra.mxu0 %v1191
        %1222 = vmatprep.subr.mxu0 0.0
        %1223 = vmatpush1.msra.mxu0 %v1192
        %1224 = vmatprep.subr.mxu0 0.0
        %1225 = vmatpush1.msra.mxu0 %v1193
        %1226 = vmatprep.subr.mxu0 0.0
        %1227 = vmatpush1.msra.mxu0 %v1194
        %1228 = vmatprep.subr.mxu0 0.0
        %1229 = vmatpush1.msra.mxu0 %v1195
        %1230 = vmatprep.subr.mxu0 0.0
        %1231 = vmatpush1.msra.mxu0 %v1196
        %1232 = vmatprep.subr.mxu0 0.0
        %1233 = vmatpush1.msra.mxu0 %v1197
        %1234 = vmatprep.subr.mxu0 0.0
        %1235 = vmatpush1.msra.mxu0 %v1198
        %1236 = vmatprep.subr.mxu0 0.0
        %1237 = vmatpush1.msra.mxu0 %v1199
        %1238 = vmatprep.subr.mxu0 0.0
        %1239 = vmatpush1.msra.mxu0 %v1200
        %1240 = vmatprep.subr.mxu0 0.0
        %1241 = vmatpush1.msra.mxu0 0.0
        %1242 = vmatprep.subr.mxu0 0.0
        %1243 = vmatpush1.msra.mxu0 0.0
        %1244 = vmatprep.subr.mxu0 0.0
        %1245 = vmatpush1.msra.mxu0 0.0
        %1246 = vmatprep.subr.mxu0 0.0
        %1247 = vmatpush1.msra.mxu0 0.0
        %1248 = vmatprep.subr.mxu0 0.0
        %1249 = vmatpush1.msra.mxu0 0.0
        %1250 = vmatprep.subr.mxu0 0.0
        %1251 = vmatpush1.msra.mxu0 0.0
        %1252 = vmatprep.subr.mxu0 0.0
        %1253 = vmatpush1.msra.mxu0 0.0
        %1254 = vmatprep.subr.mxu0 0.0
        %1255 = vmatpush1.msra.mxu0 0.0
        %1256 = vmatprep.subr.mxu0 0.0
        %1257 = vmatpush1.msra.mxu0 0.0
        %1258 = vmatprep.subr.mxu0 0.0
        %1259 = vmatpush1.msra.mxu0 0.0
        %1260 = vmatprep.subr.mxu0 0.0
        %1261 = vmatpush1.msra.mxu0 0.0
        %1262 = vmatprep.subr.mxu0 0.0
        %1263 = vmatpush1.msra.mxu0 0.0
        %1264 = vmatprep.subr.mxu0 0.0
        %1265 = vmatpush1.msra.mxu0 0.0
        %1266 = vmatprep.subr.mxu0 0.0
        %1267 = vmatpush1.msra.mxu0 0.0
        %1268 = vmatprep.subr.mxu0 0.0
        %1269 = vmatpush1.msra.mxu0 0.0
        %1270 = vmatprep.subr.mxu0 0.0
        %1271 = vmatpush1.msra.mxu0 0.0
        %1272 = vmatprep.mubr.f32.mxu0 0.0
        %1273 = vmatmul.mubr.f32.gmra.mrb[0].mxu0 %v1182
        %v1274 = vpop.f32.mrb[0].mxu0
        %v1275 = vadd.f32 %v1206, %v1274
        %v1276 = vpop.f32.mrb[0].mxu0
        %1277 = vdwg.mxu0
        %s1278 = scalar_lea.vmem %s276, 16 [#allocation12]
        %1279 = vst.msk [vmem:[%s1278] sm:$0xff] %vm614, %v1275
        %s1280 = scalar_lea.vmem %s240, 96 [#allocation4]
        %v1281 = vld [vmem:[%s1280] sm:$0xff]
        %v1282 = vld [vmem:[%s1280 + $0x8] sm:$0xff]
        %v1283 = vld [vmem:[%s1280 + $0x10] sm:$0xff]
        %v1284 = vld [vmem:[%s1280 + $0x18] sm:$0xff]
        %v1285 = vld [vmem:[#allocation2] sm:$0xff]
        %v1286 = vld [vmem:[#allocation7] sm:$0xff]
        %v1287 = vld [vmem:[#allocation7 + $0x8] sm:$0xff]
        %v1288 = vld [vmem:[#allocation7 + $0x10] sm:$0xff]
        %v1289 = vld [vmem:[#allocation7 + $0x18] sm:$0xff]
        %v1290 = vld [vmem:[#allocation7 + $0x20] sm:$0xff]
        %v1291 = vld [vmem:[#allocation7 + $0x28] sm:$0xff]
        %v1292 = vld [vmem:[#allocation7 + $0x30] sm:$0xff]
        %v1293 = vld [vmem:[#allocation7 + $0x38] sm:$0xff]
        %v1294 = vld [vmem:[#allocation7 + $0x40] sm:$0xff]
        %v1295 = vld [vmem:[#allocation7 + $0x48] sm:$0xff]
        %v1296 = vld [vmem:[#allocation7 + $0x50] sm:$0xff]
        %v1297 = vld [vmem:[#allocation7 + $0x58] sm:$0xff]
        %v1298 = vld [vmem:[#allocation7 + $0x60] sm:$0xff]
        %v1299 = vld [vmem:[#allocation7 + $0x68] sm:$0xff]
        %v1300 = vld [vmem:[#allocation7 + $0x70] sm:$0xff]
        %v1301 = vld [vmem:[#allocation7 + $0x78] sm:$0xff]
        %v1302 = vld [vmem:[#allocation7 + $0x80] sm:$0xff]
        %v1303 = vld [vmem:[#allocation7 + $0x88] sm:$0xff]
        %v1304 = vld [vmem:[#allocation7 + $0x90] sm:$0xff]
        %v1305 = vld [vmem:[#allocation7 + $0x98] sm:$0xff]
        %v1306 = vld [vmem:[#allocation7 + $0xa0] sm:$0xff]
        %v1307 = vld [vmem:[#allocation7 + $0xa8] sm:$0xff]
        %v1308 = vld [vmem:[#allocation7 + $0xb0] sm:$0xff]
        %v1309 = vld [vmem:[#allocation7 + $0xb8] sm:$0xff]
        %v1310 = vld [vmem:[#allocation7 + $0xc0] sm:$0xff]
        %v1311 = vld [vmem:[#allocation7 + $0xc8] sm:$0xff]
        %v1312 = vld [vmem:[#allocation7 + $0xd0] sm:$0xff]
        %v1313 = vld [vmem:[#allocation7 + $0xd8] sm:$0xff]
        %v1314 = vld [vmem:[#allocation7 + $0xe0] sm:$0xff]
        %v1315 = vld [vmem:[#allocation7 + $0xe8] sm:$0xff]
        %v1316 = vld [vmem:[#allocation7 + $0xf0] sm:$0xff]
        %v1317 = vld [vmem:[#allocation7 + $0xf8] sm:$0xff]
        %v1318 = vld [vmem:[#allocation7 + $0x100] sm:$0xff]
        %v1319 = vld [vmem:[#allocation7 + $0x108] sm:$0xff]
        %v1320 = vld [vmem:[#allocation7 + $0x110] sm:$0xff]
        %v1321 = vld [vmem:[#allocation7 + $0x118] sm:$0xff]
        %v1322 = vld [vmem:[#allocation7 + $0x120] sm:$0xff]
        %v1323 = vld [vmem:[#allocation7 + $0x128] sm:$0xff]
        %v1324 = vld [vmem:[#allocation7 + $0x130] sm:$0xff]
        %v1325 = vld [vmem:[#allocation7 + $0x138] sm:$0xff]
        %v1326 = vld [vmem:[#allocation7 + $0x140] sm:$0xff]
        %v1327 = vld [vmem:[#allocation7 + $0x148] sm:$0xff]
        %v1328 = vld [vmem:[#allocation7 + $0x150] sm:$0xff]
        %v1329 = vld [vmem:[#allocation7 + $0x158] sm:$0xff]
        %v1330 = vld [vmem:[#allocation7 + $0x160] sm:$0xff]
        %v1331 = vld [vmem:[#allocation7 + $0x168] sm:$0xff]
        %v1332 = vld [vmem:[#allocation7 + $0x170] sm:$0xff]
        %v1333 = vld [vmem:[#allocation7 + $0x178] sm:$0xff]
        %v1334 = vld [vmem:[#allocation7 + $0x180] sm:$0xff]
        %v1335 = vld [vmem:[#allocation7 + $0x188] sm:$0xff]
        %v1336 = vld [vmem:[#allocation7 + $0x190] sm:$0xff]
        %v1337 = vld [vmem:[#allocation7 + $0x198] sm:$0xff]
        %v1338 = vld [vmem:[#allocation7 + $0x1a0] sm:$0xff]
        %v1339 = vld [vmem:[#allocation7 + $0x1a8] sm:$0xff]
        %v1340 = vld [vmem:[#allocation7 + $0x1b0] sm:$0xff]
        %v1341 = vld [vmem:[#allocation7 + $0x1b8] sm:$0xff]
        %v1342 = vld [vmem:[#allocation7 + $0x1c0] sm:$0xff]
        %v1343 = vld [vmem:[#allocation7 + $0x1c8] sm:$0xff]
        %v1344 = vld [vmem:[#allocation7 + $0x1d0] sm:$0xff]
        %v1345 = vld [vmem:[#allocation7 + $0x1d8] sm:$0xff]
        %v1346 = vld [vmem:[#allocation7 + $0x1e0] sm:$0xff]
        %v1347 = vld [vmem:[#allocation7 + $0x1e8] sm:$0xff]
        %v1348 = vld [vmem:[#allocation7 + $0x1f0] sm:$0xff]
        %v1349 = vld [vmem:[#allocation7 + $0x1f8] sm:$0xff]
        %1350 = vmatprep.subr.mxu0 %v1287
        %1351 = vmatpush1.msra.mxu0 %v1286
        %1352 = vmatprep.subr.mxu0 %v1291
        %1353 = vmatpush1.msra.mxu0 %v1290
        %1354 = vmatprep.subr.mxu0 %v1295
        %1355 = vmatpush1.msra.mxu0 %v1294
        %1356 = vmatprep.subr.mxu0 %v1299
        %1357 = vmatpush1.msra.mxu0 %v1298
        %1358 = vmatprep.subr.mxu0 %v1303
        %1359 = vmatpush1.msra.mxu0 %v1302
        %1360 = vmatprep.subr.mxu0 %v1307
        %1361 = vmatpush1.msra.mxu0 %v1306
        %1362 = vmatprep.subr.mxu0 %v1311
        %1363 = vmatpush1.msra.mxu0 %v1310
        %1364 = vmatprep.subr.mxu0 %v1315
        %1365 = vmatpush1.msra.mxu0 %v1314
        %1366 = vmatprep.subr.mxu0 %v1319
        %1367 = vmatpush1.msra.mxu0 %v1318
        %1368 = vmatprep.subr.mxu0 %v1323
        %1369 = vmatpush1.msra.mxu0 %v1322
        %1370 = vmatprep.subr.mxu0 %v1327
        %1371 = vmatpush1.msra.mxu0 %v1326
        %1372 = vmatprep.subr.mxu0 %v1331
        %1373 = vmatpush1.msra.mxu0 %v1330
        %1374 = vmatprep.subr.mxu0 %v1335
        %1375 = vmatpush1.msra.mxu0 %v1334
        %1376 = vmatprep.subr.mxu0 %v1339
        %1377 = vmatpush1.msra.mxu0 %v1338
        %1378 = vmatprep.subr.mxu0 %v1343
        %1379 = vmatpush1.msra.mxu0 %v1342
        %1380 = vmatprep.subr.mxu0 %v1347
        %1381 = vmatpush1.msra.mxu0 %v1346
        %1382 = vmatprep.subr.mxu0 0.0
        %1383 = vmatpush1.msra.mxu0 0.0
        %1384 = vmatprep.subr.mxu0 0.0
        %1385 = vmatpush1.msra.mxu0 0.0
        %1386 = vmatprep.subr.mxu0 0.0
        %1387 = vmatpush1.msra.mxu0 0.0
        %1388 = vmatprep.subr.mxu0 0.0
        %1389 = vmatpush1.msra.mxu0 0.0
        %1390 = vmatprep.subr.mxu0 0.0
        %1391 = vmatpush1.msra.mxu0 0.0
        %1392 = vmatprep.subr.mxu0 0.0
        %1393 = vmatpush1.msra.mxu0 0.0
        %1394 = vmatprep.subr.mxu0 0.0
        %1395 = vmatpush1.msra.mxu0 0.0
        %1396 = vmatprep.subr.mxu0 0.0
        %1397 = vmatpush1.msra.mxu0 0.0
        %1398 = vmatprep.subr.mxu0 0.0
        %1399 = vmatpush1.msra.mxu0 0.0
        %1400 = vmatprep.subr.mxu0 0.0
        %1401 = vmatpush1.msra.mxu0 0.0
        %1402 = vmatprep.subr.mxu0 0.0
        %1403 = vmatpush1.msra.mxu0 0.0
        %1404 = vmatprep.subr.mxu0 0.0
        %1405 = vmatpush1.msra.mxu0 0.0
        %1406 = vmatprep.subr.mxu0 0.0
        %1407 = vmatpush1.msra.mxu0 0.0
        %1408 = vmatprep.subr.mxu0 0.0
        %1409 = vmatpush1.msra.mxu0 0.0
        %1410 = vmatprep.subr.mxu0 0.0
        %1411 = vmatpush1.msra.mxu0 0.0
        %1412 = vmatprep.subr.mxu0 0.0
        %1413 = vmatpush1.msra.mxu0 0.0
        %1414 = vmatprep.mubr.f32.mxu0 0.0
        %1415 = vmatmul.mubr.f32.gmra.mrb[0].mxu0 %v1285
        %v1416 = vpop.f32.mrb[0].mxu0
        %v1417 = vadd.f32 0.0, %v1416
        %v1418 = vpop.f32.mrb[0].mxu0
        %v1419 = vadd.f32 0.0, %v1418
        %1420 = vdwg.mxu0
        %1421 = vmatprep.subr.mxu0 %v1289
        %1422 = vmatpush1.msra.mxu0 %v1288
        %1423 = vmatprep.subr.mxu0 %v1293
        %1424 = vmatpush1.msra.mxu0 %v1292
        %1425 = vmatprep.subr.mxu0 %v1297
        %1426 = vmatpush1.msra.mxu0 %v1296
        %1427 = vmatprep.subr.mxu0 %v1301
        %1428 = vmatpush1.msra.mxu0 %v1300
        %1429 = vmatprep.subr.mxu0 %v1305
        %1430 = vmatpush1.msra.mxu0 %v1304
        %1431 = vmatprep.subr.mxu0 %v1309
        %1432 = vmatpush1.msra.mxu0 %v1308
        %1433 = vmatprep.subr.mxu0 %v1313
        %1434 = vmatpush1.msra.mxu0 %v1312
        %1435 = vmatprep.subr.mxu0 %v1317
        %1436 = vmatpush1.msra.mxu0 %v1316
        %1437 = vmatprep.subr.mxu0 %v1321
        %1438 = vmatpush1.msra.mxu0 %v1320
        %1439 = vmatprep.subr.mxu0 %v1325
        %1440 = vmatpush1.msra.mxu0 %v1324
        %1441 = vmatprep.subr.mxu0 %v1329
        %1442 = vmatpush1.msra.mxu0 %v1328
        %1443 = vmatprep.subr.mxu0 %v1333
        %1444 = vmatpush1.msra.mxu0 %v1332
        %1445 = vmatprep.subr.mxu0 %v1337
        %1446 = vmatpush1.msra.mxu0 %v1336
        %1447 = vmatprep.subr.mxu0 %v1341
        %1448 = vmatpush1.msra.mxu0 %v1340
        %1449 = vmatprep.subr.mxu0 %v1345
        %1450 = vmatpush1.msra.mxu0 %v1344
        %1451 = vmatprep.subr.mxu0 %v1349
        %1452 = vmatpush1.msra.mxu0 %v1348
        %1453 = vmatprep.subr.mxu0 0.0
        %1454 = vmatpush1.msra.mxu0 0.0
        %1455 = vmatprep.subr.mxu0 0.0
        %1456 = vmatpush1.msra.mxu0 0.0
        %1457 = vmatprep.subr.mxu0 0.0
        %1458 = vmatpush1.msra.mxu0 0.0
        %1459 = vmatprep.subr.mxu0 0.0
        %1460 = vmatpush1.msra.mxu0 0.0
        %1461 = vmatprep.subr.mxu0 0.0
        %1462 = vmatpush1.msra.mxu0 0.0
        %1463 = vmatprep.subr.mxu0 0.0
        %1464 = vmatpush1.msra.mxu0 0.0
        %1465 = vmatprep.subr.mxu0 0.0
        %1466 = vmatpush1.msra.mxu0 0.0
        %1467 = vmatprep.subr.mxu0 0.0
        %1468 = vmatpush1.msra.mxu0 0.0
        %1469 = vmatprep.subr.mxu0 0.0
        %1470 = vmatpush1.msra.mxu0 0.0
        %1471 = vmatprep.subr.mxu0 0.0
        %1472 = vmatpush1.msra.mxu0 0.0
        %1473 = vmatprep.subr.mxu0 0.0
        %1474 = vmatpush1.msra.mxu0 0.0
        %1475 = vmatprep.subr.mxu0 0.0
        %1476 = vmatpush1.msra.mxu0 0.0
        %1477 = vmatprep.subr.mxu0 0.0
        %1478 = vmatpush1.msra.mxu0 0.0
        %1479 = vmatprep.subr.mxu0 0.0
        %1480 = vmatpush1.msra.mxu0 0.0
        %1481 = vmatprep.subr.mxu0 0.0
        %1482 = vmatpush1.msra.mxu0 0.0
        %1483 = vmatprep.subr.mxu0 0.0
        %1484 = vmatpush1.msra.mxu0 0.0
        %1485 = vmatprep.mubr.f32.mxu0 0.0
        %1486 = vmatmul.mubr.f32.gmra.mrb[0].mxu0 %v1285
        %v1487 = vpop.f32.mrb[0].mxu0
        %v1488 = vadd.f32 0.0, %v1487
        %v1489 = vpop.f32.mrb[0].mxu0
        %v1490 = vadd.f32 0.0, %v1489
        %1491 = vdwg.mxu0
        %v1492 = vadd.f32 %v1281, %v1417
        %v1493 = vadd.f32 %v1282, %v1419
        %v1494 = vadd.f32 %v1283, %v1488
        %v1495 = vadd.f32 %v1284, %v1490
        %v1496 = vmul.f32 %v1492, 0.5
        %v1497 = vtanh.pop %v1496
        %v1498 = vmul.f32 %v1497, 0.5
        %v1499 = vadd.f32 %v1498, 0.5
        %v1500 = vmul.f32 %v1493, 0.5
        %v1501 = vtanh.pop %v1500
        %v1502 = vmul.f32 %v1501, 0.5
        %v1503 = vadd.f32 %v1502, 0.5
        %v1504 = vtanh.pop %v1494
        %v1505 = vmul.f32 %v1495, 0.5
        %v1506 = vtanh.pop %v1505
        %v1507 = vmul.f32 %v1506, 0.5
        %v1508 = vadd.f32 %v1507, 0.5
        %v1509 = vld [vmem:[#allocation3] sm:$0xff]
        %v1510 = vmul.f32 %v1503, %v1509
        %v1511 = vmul.f32 %v1499, %v1504
        %v1512 = vadd.f32 %v1510, %v1511
        %v1513 = vtanh.pop %v1512
        %v1514 = vmul.f32 %v1508, %v1513
        %1515 = vst [vmem:[#allocation3] sm:$0xff] %v1512
        %1516 = vst [vmem:[#allocation2] sm:$0xff] %v1514
        %v1517 = vld [vmem:[#allocation9] sm:$0xff]
        %v1518 = vld [vmem:[#allocation9 + $0x8] sm:$0xff]
        %v1519 = vld [vmem:[#allocation9 + $0x10] sm:$0xff]
        %v1520 = vld [vmem:[#allocation9 + $0x18] sm:$0xff]
        %v1521 = vld [vmem:[#allocation9 + $0x20] sm:$0xff]
        %v1522 = vld [vmem:[#allocation9 + $0x28] sm:$0xff]
        %v1523 = vld [vmem:[#allocation9 + $0x30] sm:$0xff]
        %v1524 = vld [vmem:[#allocation9 + $0x38] sm:$0xff]
        %v1525 = vld [vmem:[#allocation9 + $0x40] sm:$0xff]
        %v1526 = vld [vmem:[#allocation9 + $0x48] sm:$0xff]
        %v1527 = vld [vmem:[#allocation9 + $0x50] sm:$0xff]
        %v1528 = vld [vmem:[#allocation9 + $0x58] sm:$0xff]
        %v1529 = vld [vmem:[#allocation9 + $0x60] sm:$0xff]
        %v1530 = vld [vmem:[#allocation9 + $0x68] sm:$0xff]
        %v1531 = vld [vmem:[#allocation9 + $0x70] sm:$0xff]
        %v1532 = vld [vmem:[#allocation9 + $0x78] sm:$0xff]
        %v1533 = vld [vmem:[#allocation10] sm:$0x1]
        %v1535 = vlaneseq
        %v1536 = vshrl.u32 %v1535, 7
        %v1537 = vsub.s32 0, %v1536
        %v1538 = vrot.slane %v1533, %v1537
        %1540 = vmatprep.subr.mxu0 0.0
        %1541 = vmatpush1.msra.mxu0 %v1517
        %1542 = vmatprep.subr.mxu0 0.0
        %1543 = vmatpush1.msra.mxu0 %v1518
        %1544 = vmatprep.subr.mxu0 0.0
        %1545 = vmatpush1.msra.mxu0 %v1519
        %1546 = vmatprep.subr.mxu0 0.0
        %1547 = vmatpush1.msra.mxu0 %v1520
        %1548 = vmatprep.subr.mxu0 0.0
        %1549 = vmatpush1.msra.mxu0 %v1521
        %1550 = vmatprep.subr.mxu0 0.0
        %1551 = vmatpush1.msra.mxu0 %v1522
        %1552 = vmatprep.subr.mxu0 0.0
        %1553 = vmatpush1.msra.mxu0 %v1523
        %1554 = vmatprep.subr.mxu0 0.0
        %1555 = vmatpush1.msra.mxu0 %v1524
        %1556 = vmatprep.subr.mxu0 0.0
        %1557 = vmatpush1.msra.mxu0 %v1525
        %1558 = vmatprep.subr.mxu0 0.0
        %1559 = vmatpush1.msra.mxu0 %v1526
        %1560 = vmatprep.subr.mxu0 0.0
        %1561 = vmatpush1.msra.mxu0 %v1527
        %1562 = vmatprep.subr.mxu0 0.0
        %1563 = vmatpush1.msra.mxu0 %v1528
        %1564 = vmatprep.subr.mxu0 0.0
        %1565 = vmatpush1.msra.mxu0 %v1529
        %1566 = vmatprep.subr.mxu0 0.0
        %1567 = vmatpush1.msra.mxu0 %v1530
        %1568 = vmatprep.subr.mxu0 0.0
        %1569 = vmatpush1.msra.mxu0 %v1531
        %1570 = vmatprep.subr.mxu0 0.0
        %1571 = vmatpush1.msra.mxu0 %v1532
        %1572 = vmatprep.subr.mxu0 0.0
        %1573 = vmatpush1.msra.mxu0 0.0
        %1574 = vmatprep.subr.mxu0 0.0
        %1575 = vmatpush1.msra.mxu0 0.0
        %1576 = vmatprep.subr.mxu0 0.0
        %1577 = vmatpush1.msra.mxu0 0.0
        %1578 = vmatprep.subr.mxu0 0.0
        %1579 = vmatpush1.msra.mxu0 0.0
        %1580 = vmatprep.subr.mxu0 0.0
        %1581 = vmatpush1.msra.mxu0 0.0
        %1582 = vmatprep.subr.mxu0 0.0
        %1583 = vmatpush1.msra.mxu0 0.0
        %1584 = vmatprep.subr.mxu0 0.0
        %1585 = vmatpush1.msra.mxu0 0.0
        %1586 = vmatprep.subr.mxu0 0.0
        %1587 = vmatpush1.msra.mxu0 0.0
        %1588 = vmatprep.subr.mxu0 0.0
        %1589 = vmatpush1.msra.mxu0 0.0
        %1590 = vmatprep.subr.mxu0 0.0
        %1591 = vmatpush1.msra.mxu0 0.0
        %1592 = vmatprep.subr.mxu0 0.0
        %1593 = vmatpush1.msra.mxu0 0.0
        %1594 = vmatprep.subr.mxu0 0.0
        %1595 = vmatpush1.msra.mxu0 0.0
        %1596 = vmatprep.subr.mxu0 0.0
        %1597 = vmatpush1.msra.mxu0 0.0
        %1598 = vmatprep.subr.mxu0 0.0
        %1599 = vmatpush1.msra.mxu0 0.0
        %1600 = vmatprep.subr.mxu0 0.0
        %1601 = vmatpush1.msra.mxu0 0.0
        %1602 = vmatprep.subr.mxu0 0.0
        %1603 = vmatpush1.msra.mxu0 0.0
        %1604 = vmatprep.mubr.f32.mxu0 0.0
        %1605 = vmatmul.mubr.f32.gmra.mrb[0].mxu0 %v1514
        %v1606 = vpop.f32.mrb[0].mxu0
        %v1607 = vadd.f32 %v1538, %v1606
        %v1608 = vpop.f32.mrb[0].mxu0
        %1609 = vdwg.mxu0
        %s1610 = scalar_lea.vmem %s276, 24 [#allocation12]
        %1611 = vst.msk [vmem:[%s1610] sm:$0xff] %vm614, %v1607
        %s1612 = sand.u32 %s136, 1
        %s1613 = scalar_lea.sflag [#allocation6], %s1612
        %s1614 = sand.u32 %s136, 1
        %s1615 = smul.addr %s1614, 32
        %s1616 = scalar_lea.vmem [#allocation12], %s1615
        // Predicated region
        $region57: #{_lambda_.3} parent=35 // pred_check
          %p1617 = pneg %p146
        $region58: #{_lambda_.3} parent=35 // pred_check_branch
          %1619 = sbr.rel (%p1617) target = $region60
        $region59: #{_lambda_.3} parent=35 // pred_region
          %s1620 = smul.u32 4, %s28
          %s1622 = ssub.s32 512, 512
          %1623 = vsyncadd %s1613, %s1622
          %s1624 = sadd.s32 %s27, %s1620
          %s1625 = smul.addr %s1624, 128
          %s1626 = scalar_lea.hbm %s4, %s1625
          %s1627 = sshll.u32 %s1616, 4
          %s1628 = int_to_ptr.vmem [resolvable:$true] %s1627
          %1633 = dma.vmem_to_hbm [thread:$0]  %s1628, 512, %s1626, %s1613, 128, 128, 8
        $region60: #{_lambda_.3} parent=35 // pred_fallthru
          _
      $region36: #{_lambda_.3} parent=5 // pred_fallthru
        _
      %p1634 = scmp.le.s32.totalorder 2, %s18
      // Predicated region
      $region61: #{_lambda_.3} parent=5 // pred_check
        %p1635 = pneg %p1634
      $region62: #{_lambda_.3} parent=5 // pred_check_branch
        %1637 = sbr.rel (%p1635) target = $region64
      $region63: #{_lambda_.3} parent=5 // pred_region
        %s1638 = ssub.s32 %s18, 2
        // Predicated region
        $region65: #{_lambda_.3} parent=63 // pred_check
          %p1639 = pneg %p152
        $region66: #{_lambda_.3} parent=63 // pred_check_branch
          %1641 = sbr.rel (%p1639) target = $region68
        $region67: #{_lambda_.3} parent=63 // pred_region
          %s1642 = sand.u32 %s137, 1
          %s1643 = scalar_lea.sflag [#allocation6], %s1642
          %s1644 = sand.u32 %s137, 1
          %s1645 = smul.addr %s1644, 32
          %s1646 = scalar_lea.vmem [#allocation12], %s1645
          %1647 = dma.done %s1643, 512
        $region68: #{_lambda_.3} parent=63 // pred_fallthru
          _
      $region64: #{_lambda_.3} parent=5 // pred_fallthru
        _
    $region6: #{_lambda_.3} parent=1 // loop_footer
      %s22 = sadd.s32 1, %s18
    $region7: #{_lambda_.3} parent=1 // loop_footer_branch
      %17 = sbr.rel target = $region3
    $region8: #{_lambda_.3} parent=1 // loop_exit
      _
    %1648 = vsyncpa [#allocation5], 1
    %s1649 = scalar_lea.sflag [#allocation5], 1
    %1650 = vsyncpa %s1649, 1
    %1651 = vsyncpa [#allocation8], 1
    %1652 = vsyncpa [#allocation11], 1
    %1653 = vsyncpa [#allocation6], 1
    %s1654 = scalar_lea.sflag [#allocation6], 1
    %1655 = vsyncpa %s1654, 1

// kernel: _lambda_.2
$region0: #{_lambda_.2}
  #allocation0 [shape = 'u32[]', space=smem, size = 0x4, offset = 0x4, fixed_abs, tag = 'smem constant byte address 0x4 - core index']
  #allocation1 [shape = 'u32[144,128]{1,0:T(1,128)}', space=vmem, size = 0x12000, scoped, tag = 'internal scratch']
  %s0 = inlined_call_operand.hbm [shape: f32[64,4], index: 0, kind: input, shape index: {}]
  %s1 = inlined_call_operand.hbm [shape: f32[4,128], index: 1, kind: input, shape index: {}]
  %s2 = inlined_call_operand.hbm [shape: f32[1,128], index: 2, kind: input, shape index: {}]
  %s3 = inlined_call_operand.hbm [shape: f32[128,512], index: 3, kind: input, shape index: {}]
  %s4 = inlined_call_operand.hbm [shape: f32[1,512], index: 4, kind: input, shape index: {}]
  %s5 = inlined_call_operand.hbm [shape: f32[64,512], index: 5, kind: output, shape index: {}]
  %s6 = sld [smem:[#allocation0]]
  $region50: #{_lambda_.2} parent=0
    _
  %s8 = ssub.s32 1, %s6
  %s9 = scalar_select 0, %s8, %s6
  $region1: #{_lambda_.2} parent=0
    #allocation2 [shape = 'u8[32768]{0}', space=vmem, size = 0x8000, scoped, tag = 'input window, operand 0, single buffered']
    #allocation3 [shape = 's32[1]{0}', space=sflag, size = 0x4, scoped, tag = 'scoped memory for _lambda_.2']
    #allocation4 [shape = 's32[1]{0}', space=sflag, size = 0x4, scoped, tag = 'scoped memory for _lambda_.2']
    #allocation5 [shape = 'u8[2048]{0}', space=vmem, size = 0x800, scoped, tag = 'input window, operand 1, single buffered']
    #allocation6 [shape = 's32[1]{0}', space=sflag, size = 0x4, scoped, tag = 'scoped memory for _lambda_.2']
    #allocation7 [shape = 'u8[512]{0}', space=vmem, size = 0x400, scoped, tag = 'input window, operand 2, single buffered']
    #allocation8 [shape = 'u8[262144]{0}', space=vmem, size = 0x40000, scoped, tag = 'input window, operand 3, single buffered']
    #allocation9 [shape = 's32[1]{0}', space=sflag, size = 0x4, scoped, tag = 'scoped memory for _lambda_.2']
    #allocation10 [shape = 'u8[2048]{0}', space=vmem, size = 0x800, scoped, tag = 'input window, operand 4, single buffered']
    #allocation11 [shape = 'u8[131072]{0}', space=vmem, size = 0x20000, scoped, tag = 'output window, operand 0, single buffered']
    %10 = vsyncpa [#allocation3], 0
    %11 = vsyncpa [#allocation6], 0
    %12 = vsyncpa [#allocation9], 0
    %13 = vsyncpa [#allocation4], 0
    // Predicated region
    $region2: #{_lambda_.2} parent=1 // pred_check
      _
    $region3: #{_lambda_.2} parent=1 // pred_check_branch
      %15 = sbr.rel (0) target = $region5
    $region4: #{_lambda_.2} parent=1 // pred_region
      %s17 = ssub.s32 1024, 1024
      %18 = vsyncadd [#allocation3], %s17
      %s19 = sshll.u32 [#allocation2], 4
      %s20 = int_to_ptr.vmem [resolvable:$true] %s19
      %25 = dma.hbm_to_vmem [thread:$0]  %s0, 1024, %s20, [#allocation3], 128, 128, 8
    $region5: #{_lambda_.2} parent=1 // pred_fallthru
      _
    // Predicated region
    $region6: #{_lambda_.2} parent=1 // pred_check
      _
    $region7: #{_lambda_.2} parent=1 // pred_check_branch
      %27 = sbr.rel (0) target = $region9
    $region8: #{_lambda_.2} parent=1 // pred_region
      %s29 = ssub.s32 64, 64
      %30 = vsyncadd [#allocation6], %s29
      %s32 = sshll.u32 [#allocation5], 4
      %s33 = int_to_ptr.vmem [resolvable:$true] %s32
      %35 = dma.hbm_to_vmem [thread:$0]  %s1, 64, %s33, [#allocation6]
    $region9: #{_lambda_.2} parent=1 // pred_fallthru
      _
    // Predicated region
    $region10: #{_lambda_.2} parent=1 // pred_check
      _
    $region11: #{_lambda_.2} parent=1 // pred_check_branch
      %37 = sbr.rel (0) target = $region13
    $region12: #{_lambda_.2} parent=1 // pred_region
      %s39 = ssub.s32 16, 16
      %40 = vsyncadd [#allocation6], %s39
      %s42 = sshll.u32 [#allocation7], 4
      %s43 = int_to_ptr.vmem [resolvable:$true] %s42
      %45 = dma.hbm_to_vmem [thread:$0]  %s2, 16, %s43, [#allocation6]
    $region13: #{_lambda_.2} parent=1 // pred_fallthru
      _
    // Predicated region
    $region14: #{_lambda_.2} parent=1 // pred_check
      _
    $region15: #{_lambda_.2} parent=1 // pred_check_branch
      %47 = sbr.rel (0) target = $region17
    $region16: #{_lambda_.2} parent=1 // pred_region
      %s49 = ssub.s32 8192, 8192
      %50 = vsyncadd [#allocation9], %s49
      %s51 = sshll.u32 [#allocation8], 4
      %s52 = int_to_ptr.vmem [resolvable:$true] %s51
      %57 = dma.hbm_to_vmem [thread:$0]  %s3, 8192, %s52, [#allocation9], 512, 512, 32
    $region17: #{_lambda_.2} parent=1 // pred_fallthru
      _
    // Predicated region
    $region18: #{_lambda_.2} parent=1 // pred_check
      _
    $region19: #{_lambda_.2} parent=1 // pred_check_branch
      %59 = sbr.rel (0) target = $region21
    $region20: #{_lambda_.2} parent=1 // pred_region
      %s61 = ssub.s32 64, 64
      %62 = vsyncadd [#allocation9], %s61
      %s64 = sshll.u32 [#allocation10], 4
      %s65 = int_to_ptr.vmem [resolvable:$true] %s64
      %67 = dma.hbm_to_vmem [thread:$0]  %s4, 64, %s65, [#allocation9]
    $region21: #{_lambda_.2} parent=1 // pred_fallthru
      _
    // Predicated region
    $region22: #{_lambda_.2} parent=1 // pred_check
      _
    $region23: #{_lambda_.2} parent=1 // pred_check_branch
      %69 = sbr.rel (0) target = $region25
    $region24: #{_lambda_.2} parent=1 // pred_region
      %70 = dma.done [#allocation3], 1024
    $region25: #{_lambda_.2} parent=1 // pred_fallthru
      _
    // Predicated region
    $region26: #{_lambda_.2} parent=1 // pred_check
      _
    $region27: #{_lambda_.2} parent=1 // pred_check_branch
      %72 = sbr.rel (0) target = $region29
    $region28: #{_lambda_.2} parent=1 // pred_region
      %73 = dma.done [#allocation6], 64
    $region29: #{_lambda_.2} parent=1 // pred_fallthru
      _
    // Predicated region
    $region30: #{_lambda_.2} parent=1 // pred_check
      _
    $region31: #{_lambda_.2} parent=1 // pred_check_branch
      %75 = sbr.rel (0) target = $region33
    $region32: #{_lambda_.2} parent=1 // pred_region
      %76 = dma.done [#allocation6], 16
    $region33: #{_lambda_.2} parent=1 // pred_fallthru
      _
    // Predicated region
    $region34: #{_lambda_.2} parent=1 // pred_check
      _
    $region35: #{_lambda_.2} parent=1 // pred_check_branch
      %78 = sbr.rel (0) target = $region37
    $region36: #{_lambda_.2} parent=1 // pred_region
      %79 = dma.done [#allocation9], 8192
    $region37: #{_lambda_.2} parent=1 // pred_fallthru
      _
    // Predicated region
    $region38: #{_lambda_.2} parent=1 // pred_check
      _
    $region39: #{_lambda_.2} parent=1 // pred_check_branch
      %81 = sbr.rel (0) target = $region41
    $region40: #{_lambda_.2} parent=1 // pred_region
      %82 = dma.done [#allocation9], 64
    $region41: #{_lambda_.2} parent=1 // pred_fallthru
      _
    %v83 = vld [vmem:[#allocation2] sm:$0xff]
    %v84 = vld [vmem:[#allocation2 + $0x8] sm:$0xff]
    %v85 = vld [vmem:[#allocation2 + $0x10] sm:$0xff]
    %v86 = vld [vmem:[#allocation2 + $0x18] sm:$0xff]
    %v87 = vld [vmem:[#allocation2 + $0x20] sm:$0xff]
    %v88 = vld [vmem:[#allocation2 + $0x28] sm:$0xff]
    %v89 = vld [vmem:[#allocation2 + $0x30] sm:$0xff]
    %v90 = vld [vmem:[#allocation2 + $0x38] sm:$0xff]
    %v91 = vld [vmem:[#allocation5] sm:$0xf]
    %v92 = vld [vmem:[#allocation7] sm:$0x1]
    %v94 = vlaneseq
    %v95 = vshrl.u32 %v94, 7
    %v96 = vsub.s32 0, %v95
    %v97 = vrot.slane %v92, %v96
    %vm99 = vcmask 31744
    %v101 = vsel %vm99, %v83, 0
    %v104 = vsel %vm99, %v84, 0
    %v107 = vsel %vm99, %v85, 0
    %v110 = vsel %vm99, %v86, 0
    %v113 = vsel %vm99, %v87, 0
    %v116 = vsel %vm99, %v88, 0
    %v119 = vsel %vm99, %v89, 0
    %v122 = vsel %vm99, %v90, 0
    %vm124 = vcmask 1043456
    %v126 = vsel %vm124, %v91, 0
    %128 = vmatprep.subr.mxu0 0.0
    %129 = vmatpush1.msra.mxu0 %v126
    %130 = vmatprep.subr.mxu0 0.0
    %131 = vmatpush1.msra.mxu0 0.0
    %132 = vmatprep.subr.mxu0 0.0
    %133 = vmatpush1.msra.mxu0 0.0
    %134 = vmatprep.subr.mxu0 0.0
    %135 = vmatpush1.msra.mxu0 0.0
    %136 = vmatprep.subr.mxu0 0.0
    %137 = vmatpush1.msra.mxu0 0.0
    %138 = vmatprep.subr.mxu0 0.0
    %139 = vmatpush1.msra.mxu0 0.0
    %140 = vmatprep.subr.mxu0 0.0
    %141 = vmatpush1.msra.mxu0 0.0
    %142 = vmatprep.subr.mxu0 0.0
    %143 = vmatpush1.msra.mxu0 0.0
    %144 = vmatprep.subr.mxu0 0.0
    %145 = vmatpush1.msra.mxu0 0.0
    %146 = vmatprep.subr.mxu0 0.0
    %147 = vmatpush1.msra.mxu0 0.0
    %148 = vmatprep.subr.mxu0 0.0
    %149 = vmatpush1.msra.mxu0 0.0
    %150 = vmatprep.subr.mxu0 0.0
    %151 = vmatpush1.msra.mxu0 0.0
    %152 = vmatprep.subr.mxu0 0.0
    %153 = vmatpush1.msra.mxu0 0.0
    %154 = vmatprep.subr.mxu0 0.0
    %155 = vmatpush1.msra.mxu0 0.0
    %156 = vmatprep.subr.mxu0 0.0
    %157 = vmatpush1.msra.mxu0 0.0
    %158 = vmatprep.subr.mxu0 0.0
    %159 = vmatpush1.msra.mxu0 0.0
    %160 = vmatprep.subr.mxu0 0.0
    %161 = vmatpush1.msra.mxu0 0.0
    %162 = vmatprep.subr.mxu0 0.0
    %163 = vmatpush1.msra.mxu0 0.0
    %164 = vmatprep.subr.mxu0 0.0
    %165 = vmatpush1.msra.mxu0 0.0
    %166 = vmatprep.subr.mxu0 0.0
    %167 = vmatpush1.msra.mxu0 0.0
    %168 = vmatprep.subr.mxu0 0.0
    %169 = vmatpush1.msra.mxu0 0.0
    %170 = vmatprep.subr.mxu0 0.0
    %171 = vmatpush1.msra.mxu0 0.0
    %172 = vmatprep.subr.mxu0 0.0
    %173 = vmatpush1.msra.mxu0 0.0
    %174 = vmatprep.subr.mxu0 0.0
    %175 = vmatpush1.msra.mxu0 0.0
    %176 = vmatprep.subr.mxu0 0.0
    %177 = vmatpush1.msra.mxu0 0.0
    %178 = vmatprep.subr.mxu0 0.0
    %179 = vmatpush1.msra.mxu0 0.0
    %180 = vmatprep.subr.mxu0 0.0
    %181 = vmatpush1.msra.mxu0 0.0
    %182 = vmatprep.subr.mxu0 0.0
    %183 = vmatpush1.msra.mxu0 0.0
    %184 = vmatprep.subr.mxu0 0.0
    %185 = vmatpush1.msra.mxu0 0.0
    %186 = vmatprep.subr.mxu0 0.0
    %187 = vmatpush1.msra.mxu0 0.0
    %188 = vmatprep.subr.mxu0 0.0
    %189 = vmatpush1.msra.mxu0 0.0
    %190 = vmatprep.subr.mxu0 0.0
    %191 = vmatpush1.msra.mxu0 0.0
    %192 = vmatprep.mubr.f32.mxu0 0.0
    %193 = vmatmul.mubr.f32.gmra.mrb[0].mxu0 %v101
    %v194 = vpop.f32.mrb[0].mxu0
    %v195 = vadd.f32 %v97, %v194
    %v196 = vpop.f32.mrb[0].mxu0
    %197 = vmatprep.mubr.f32.mxu0 0.0
    %198 = vmatmul.mubr.f32.gmra.mrb[0].mxu0 %v104
    %v199 = vpop.f32.mrb[0].mxu0
    %v200 = vadd.f32 %v97, %v199
    %v201 = vpop.f32.mrb[0].mxu0
    %202 = vmatprep.mubr.f32.mxu0 0.0
    %203 = vmatmul.mubr.f32.gmra.mrb[0].mxu0 %v107
    %v204 = vpop.f32.mrb[0].mxu0
    %v205 = vadd.f32 %v97, %v204
    %v206 = vpop.f32.mrb[0].mxu0
    %207 = vmatprep.mubr.f32.mxu0 0.0
    %208 = vmatmul.mubr.f32.gmra.mrb[0].mxu0 %v110
    %v209 = vpop.f32.mrb[0].mxu0
    %v210 = vadd.f32 %v97, %v209
    %v211 = vpop.f32.mrb[0].mxu0
    %212 = vmatprep.mubr.f32.mxu0 0.0
    %213 = vmatmul.mubr.f32.gmra.mrb[0].mxu0 %v113
    %v214 = vpop.f32.mrb[0].mxu0
    %v215 = vadd.f32 %v97, %v214
    %v216 = vpop.f32.mrb[0].mxu0
    %217 = vmatprep.mubr.f32.mxu0 0.0
    %218 = vmatmul.mubr.f32.gmra.mrb[0].mxu0 %v116
    %v219 = vpop.f32.mrb[0].mxu0
    %v220 = vadd.f32 %v97, %v219
    %v221 = vpop.f32.mrb[0].mxu0
    %222 = vmatprep.mubr.f32.mxu0 0.0
    %223 = vmatmul.mubr.f32.gmra.mrb[0].mxu0 %v119
    %v224 = vpop.f32.mrb[0].mxu0
    %v225 = vadd.f32 %v97, %v224
    %v226 = vpop.f32.mrb[0].mxu0
    %227 = vmatprep.mubr.f32.mxu0 0.0
    %228 = vmatmul.mubr.f32.gmra.mrb[0].mxu0 %v122
    %v229 = vpop.f32.mrb[0].mxu0
    %v230 = vadd.f32 %v97, %v229
    %v231 = vpop.f32.mrb[0].mxu0
    %232 = vdwg.mxu0
    %v233 = vmax.f32 %v195, 0.0
    %v234 = vmax.f32 %v200, 0.0
    %v235 = vmax.f32 %v205, 0.0
    %v236 = vmax.f32 %v210, 0.0
    %v237 = vmax.f32 %v215, 0.0
    %v238 = vmax.f32 %v220, 0.0
    %v239 = vmax.f32 %v225, 0.0
    %v240 = vmax.f32 %v230, 0.0
    %v241 = vld [vmem:[#allocation8] sm:$0xff]
    %v242 = vld [vmem:[#allocation8 + $0x8] sm:$0xff]
    %v243 = vld [vmem:[#allocation8 + $0x10] sm:$0xff]
    %v244 = vld [vmem:[#allocation8 + $0x18] sm:$0xff]
    %v245 = vld [vmem:[#allocation8 + $0x20] sm:$0xff]
    %v246 = vld [vmem:[#allocation8 + $0x28] sm:$0xff]
    %v247 = vld [vmem:[#allocation8 + $0x30] sm:$0xff]
    %v248 = vld [vmem:[#allocation8 + $0x38] sm:$0xff]
    %v249 = vld [vmem:[#allocation8 + $0x40] sm:$0xff]
    %v250 = vld [vmem:[#allocation8 + $0x48] sm:$0xff]
    %v251 = vld [vmem:[#allocation8 + $0x50] sm:$0xff]
    %v252 = vld [vmem:[#allocation8 + $0x58] sm:$0xff]
    %v253 = vld [vmem:[#allocation8 + $0x60] sm:$0xff]
    %v254 = vld [vmem:[#allocation8 + $0x68] sm:$0xff]
    %v255 = vld [vmem:[#allocation8 + $0x70] sm:$0xff]
    %v256 = vld [vmem:[#allocation8 + $0x78] sm:$0xff]
    %v257 = vld [vmem:[#allocation8 + $0x80] sm:$0xff]
    %v258 = vld [vmem:[#allocation8 + $0x88] sm:$0xff]
    %v259 = vld [vmem:[#allocation8 + $0x90] sm:$0xff]
    %v260 = vld [vmem:[#allocation8 + $0x98] sm:$0xff]
    %v261 = vld [vmem:[#allocation8 + $0xa0] sm:$0xff]
    %v262 = vld [vmem:[#allocation8 + $0xa8] sm:$0xff]
    %v263 = vld [vmem:[#allocation8 + $0xb0] sm:$0xff]
    %v264 = vld [vmem:[#allocation8 + $0xb8] sm:$0xff]
    %v265 = vld [vmem:[#allocation8 + $0xc0] sm:$0xff]
    %v266 = vld [vmem:[#allocation8 + $0xc8] sm:$0xff]
    %v267 = vld [vmem:[#allocation8 + $0xd0] sm:$0xff]
    %v268 = vld [vmem:[#allocation8 + $0xd8] sm:$0xff]
    %v269 = vld [vmem:[#allocation8 + $0xe0] sm:$0xff]
    %v270 = vld [vmem:[#allocation8 + $0xe8] sm:$0xff]
    %v271 = vld [vmem:[#allocation8 + $0xf0] sm:$0xff]
    %v272 = vld [vmem:[#allocation8 + $0xf8] sm:$0xff]
    %v273 = vld [vmem:[#allocation8 + $0x100] sm:$0xff]
    %v274 = vld [vmem:[#allocation8 + $0x108] sm:$0xff]
    %v275 = vld [vmem:[#allocation8 + $0x110] sm:$0xff]
    %v276 = vld [vmem:[#allocation8 + $0x118] sm:$0xff]
    %v277 = vld [vmem:[#allocation8 + $0x120] sm:$0xff]
    %v278 = vld [vmem:[#allocation8 + $0x128] sm:$0xff]
    %v279 = vld [vmem:[#allocation8 + $0x130] sm:$0xff]
    %v280 = vld [vmem:[#allocation8 + $0x138] sm:$0xff]
    %v281 = vld [vmem:[#allocation8 + $0x140] sm:$0xff]
    %v282 = vld [vmem:[#allocation8 + $0x148] sm:$0xff]
    %v283 = vld [vmem:[#allocation8 + $0x150] sm:$0xff]
    %v284 = vld [vmem:[#allocation8 + $0x158] sm:$0xff]
    %v285 = vld [vmem:[#allocation8 + $0x160] sm:$0xff]
    %v286 = vld [vmem:[#allocation8 + $0x168] sm:$0xff]
    %v287 = vld [vmem:[#allocation8 + $0x170] sm:$0xff]
    %v288 = vld [vmem:[#allocation8 + $0x178] sm:$0xff]
    %v289 = vld [vmem:[#allocation8 + $0x180] sm:$0xff]
    %v290 = vld [vmem:[#allocation8 + $0x188] sm:$0xff]
    %v291 = vld [vmem:[#allocation8 + $0x190] sm:$0xff]
    %v292 = vld [vmem:[#allocation8 + $0x198] sm:$0xff]
    %v293 = vld [vmem:[#allocation8 + $0x1a0] sm:$0xff]
    %v294 = vld [vmem:[#allocation8 + $0x1a8] sm:$0xff]
    %v295 = vld [vmem:[#allocation8 + $0x1b0] sm:$0xff]
    %v296 = vld [vmem:[#allocation8 + $0x1b8] sm:$0xff]
    %v297 = vld [vmem:[#allocation8 + $0x1c0] sm:$0xff]
    %v298 = vld [vmem:[#allocation8 + $0x1c8] sm:$0xff]
    %v299 = vld [vmem:[#allocation8 + $0x1d0] sm:$0xff]
    %v300 = vld [vmem:[#allocation8 + $0x1d8] sm:$0xff]
    %v301 = vld [vmem:[#allocation8 + $0x1e0] sm:$0xff]
    %v302 = vld [vmem:[#allocation8 + $0x1e8] sm:$0xff]
    %v303 = vld [vmem:[#allocation8 + $0x1f0] sm:$0xff]
    %v304 = vld [vmem:[#allocation8 + $0x1f8] sm:$0xff]
    %v305 = vld [vmem:[#allocation10] sm:$0xf]
    %v307 = vlaneseq
    %v308 = vshrl.u32 %v307, 7
    %v309 = vsub.s32 0, %v308
    %v310 = vrot.slane %v305, %v309
    %v311 = vlaneseq
    %v312 = vshrl.u32 %v311, 7
    %v313 = vsub.s32 1, %v312
    %v314 = vrot.slane %v305, %v313
    %v315 = vlaneseq
    %v316 = vshrl.u32 %v315, 7
    %v317 = vsub.s32 2, %v316
    %v318 = vrot.slane %v305, %v317
    %v319 = vlaneseq
    %v320 = vshrl.u32 %v319, 7
    %v321 = vsub.s32 3, %v320
    %v322 = vrot.slane %v305, %v321
    %327 = vmatprep.subr.mxu0 %v242
    %328 = vmatpush1.msra.mxu0 %v241
    %329 = vmatprep.subr.mxu0 %v246
    %330 = vmatpush1.msra.mxu0 %v245
    %331 = vmatprep.subr.mxu0 %v250
    %332 = vmatpush1.msra.mxu0 %v249
    %333 = vmatprep.subr.mxu0 %v254
    %334 = vmatpush1.msra.mxu0 %v253
    %335 = vmatprep.subr.mxu0 %v258
    %336 = vmatpush1.msra.mxu0 %v257
    %337 = vmatprep.subr.mxu0 %v262
    %338 = vmatpush1.msra.mxu0 %v261
    %339 = vmatprep.subr.mxu0 %v266
    %340 = vmatpush1.msra.mxu0 %v265
    %341 = vmatprep.subr.mxu0 %v270
    %342 = vmatpush1.msra.mxu0 %v269
    %343 = vmatprep.subr.mxu0 %v274
    %344 = vmatpush1.msra.mxu0 %v273
    %345 = vmatprep.subr.mxu0 %v278
    %346 = vmatpush1.msra.mxu0 %v277
    %347 = vmatprep.subr.mxu0 %v282
    %348 = vmatpush1.msra.mxu0 %v281
    %349 = vmatprep.subr.mxu0 %v286
    %350 = vmatpush1.msra.mxu0 %v285
    %351 = vmatprep.subr.mxu0 %v290
    %352 = vmatpush1.msra.mxu0 %v289
    %353 = vmatprep.subr.mxu0 %v294
    %354 = vmatpush1.msra.mxu0 %v293
    %355 = vmatprep.subr.mxu0 %v298
    %356 = vmatpush1.msra.mxu0 %v297
    %357 = vmatprep.subr.mxu0 %v302
    %358 = vmatpush1.msra.mxu0 %v301
    %359 = vmatprep.subr.mxu0 0.0
    %360 = vmatpush1.msra.mxu0 0.0
    %361 = vmatprep.subr.mxu0 0.0
    %362 = vmatpush1.msra.mxu0 0.0
    %363 = vmatprep.subr.mxu0 0.0
    %364 = vmatpush1.msra.mxu0 0.0
    %365 = vmatprep.subr.mxu0 0.0
    %366 = vmatpush1.msra.mxu0 0.0
    %367 = vmatprep.subr.mxu0 0.0
    %368 = vmatpush1.msra.mxu0 0.0
    %369 = vmatprep.subr.mxu0 0.0
    %370 = vmatpush1.msra.mxu0 0.0
    %371 = vmatprep.subr.mxu0 0.0
    %372 = vmatpush1.msra.mxu0 0.0
    %373 = vmatprep.subr.mxu0 0.0
    %374 = vmatpush1.msra.mxu0 0.0
    %375 = vmatprep.subr.mxu0 0.0
    %376 = vmatpush1.msra.mxu0 0.0
    %377 = vmatprep.subr.mxu0 0.0
    %378 = vmatpush1.msra.mxu0 0.0
    %379 = vmatprep.subr.mxu0 0.0
    %380 = vmatpush1.msra.mxu0 0.0
    %381 = vmatprep.subr.mxu0 0.0
    %382 = vmatpush1.msra.mxu0 0.0
    %383 = vmatprep.subr.mxu0 0.0
    %384 = vmatpush1.msra.mxu0 0.0
    %385 = vmatprep.subr.mxu0 0.0
    %386 = vmatpush1.msra.mxu0 0.0
    %387 = vmatprep.subr.mxu0 0.0
    %388 = vmatpush1.msra.mxu0 0.0
    %389 = vmatprep.subr.mxu0 0.0
    %390 = vmatpush1.msra.mxu0 0.0
    %391 = vmatprep.mubr.f32.mxu0 0.0
    %392 = vmatmul.mubr.f32.gmra.mrb[0].mxu0 %v233
    %v393 = vpop.f32.mrb[0].mxu0
    %v394 = vadd.f32 %v310, %v393
    %v395 = vpop.f32.mrb[0].mxu0
    %v396 = vadd.f32 %v314, %v395
    %397 = vmatprep.mubr.f32.mxu0 0.0
    %398 = vmatmul.mubr.f32.gmra.mrb[0].mxu0 %v234
    %v399 = vpop.f32.mrb[0].mxu0
    %v400 = vadd.f32 %v310, %v399
    %v401 = vpop.f32.mrb[0].mxu0
    %v402 = vadd.f32 %v314, %v401
    %403 = vmatprep.mubr.f32.mxu0 0.0
    %404 = vmatmul.mubr.f32.gmra.mrb[0].mxu0 %v235
    %v405 = vpop.f32.mrb[0].mxu0
    %v406 = vadd.f32 %v310, %v405
    %v407 = vpop.f32.mrb[0].mxu0
    %v408 = vadd.f32 %v314, %v407
    %409 = vmatprep.mubr.f32.mxu0 0.0
    %410 = vmatmul.mubr.f32.gmra.mrb[0].mxu0 %v236
    %v411 = vpop.f32.mrb[0].mxu0
    %v412 = vadd.f32 %v310, %v411
    %v413 = vpop.f32.mrb[0].mxu0
    %v414 = vadd.f32 %v314, %v413
    %415 = vmatprep.mubr.f32.mxu0 0.0
    %416 = vmatmul.mubr.f32.gmra.mrb[0].mxu0 %v237
    %v417 = vpop.f32.mrb[0].mxu0
    %v418 = vadd.f32 %v310, %v417
    %v419 = vpop.f32.mrb[0].mxu0
    %v420 = vadd.f32 %v314, %v419
    %421 = vmatprep.mubr.f32.mxu0 0.0
    %422 = vmatmul.mubr.f32.gmra.mrb[0].mxu0 %v238
    %v423 = vpop.f32.mrb[0].mxu0
    %v424 = vadd.f32 %v310, %v423
    %v425 = vpop.f32.mrb[0].mxu0
    %v426 = vadd.f32 %v314, %v425
    %427 = vmatprep.mubr.f32.mxu0 0.0
    %428 = vmatmul.mubr.f32.gmra.mrb[0].mxu0 %v239
    %v429 = vpop.f32.mrb[0].mxu0
    %v430 = vadd.f32 %v310, %v429
    %v431 = vpop.f32.mrb[0].mxu0
    %v432 = vadd.f32 %v314, %v431
    %433 = vmatprep.mubr.f32.mxu0 0.0
    %434 = vmatmul.mubr.f32.gmra.mrb[0].mxu0 %v240
    %v435 = vpop.f32.mrb[0].mxu0
    %v436 = vadd.f32 %v310, %v435
    %v437 = vpop.f32.mrb[0].mxu0
    %v438 = vadd.f32 %v314, %v437
    %439 = vdwg.mxu0
    %440 = vmatprep.subr.mxu0 %v244
    %441 = vmatpush1.msra.mxu0 %v243
    %442 = vmatprep.subr.mxu0 %v248
    %443 = vmatpush1.msra.mxu0 %v247
    %444 = vmatprep.subr.mxu0 %v252
    %445 = vmatpush1.msra.mxu0 %v251
    %446 = vmatprep.subr.mxu0 %v256
    %447 = vmatpush1.msra.mxu0 %v255
    %448 = vmatprep.subr.mxu0 %v260
    %449 = vmatpush1.msra.mxu0 %v259
    %450 = vmatprep.subr.mxu0 %v264
    %451 = vmatpush1.msra.mxu0 %v263
    %452 = vmatprep.subr.mxu0 %v268
    %453 = vmatpush1.msra.mxu0 %v267
    %454 = vmatprep.subr.mxu0 %v272
    %455 = vmatpush1.msra.mxu0 %v271
    %456 = vmatprep.subr.mxu0 %v276
    %457 = vmatpush1.msra.mxu0 %v275
    %458 = vmatprep.subr.mxu0 %v280
    %459 = vmatpush1.msra.mxu0 %v279
    %460 = vmatprep.subr.mxu0 %v284
    %461 = vmatpush1.msra.mxu0 %v283
    %462 = vmatprep.subr.mxu0 %v288
    %463 = vmatpush1.msra.mxu0 %v287
    %464 = vmatprep.subr.mxu0 %v292
    %465 = vmatpush1.msra.mxu0 %v291
    %466 = vmatprep.subr.mxu0 %v296
    %467 = vmatpush1.msra.mxu0 %v295
    %468 = vmatprep.subr.mxu0 %v300
    %469 = vmatpush1.msra.mxu0 %v299
    %470 = vmatprep.subr.mxu0 %v304
    %471 = vmatpush1.msra.mxu0 %v303
    %472 = vmatprep.subr.mxu0 0.0
    %473 = vmatpush1.msra.mxu0 0.0
    %474 = vmatprep.subr.mxu0 0.0
    %475 = vmatpush1.msra.mxu0 0.0
    %476 = vmatprep.subr.mxu0 0.0
    %477 = vmatpush1.msra.mxu0 0.0
    %478 = vmatprep.subr.mxu0 0.0
    %479 = vmatpush1.msra.mxu0 0.0
    %480 = vmatprep.subr.mxu0 0.0
    %481 = vmatpush1.msra.mxu0 0.0
    %482 = vmatprep.subr.mxu0 0.0
    %483 = vmatpush1.msra.mxu0 0.0
    %484 = vmatprep.subr.mxu0 0.0
    %485 = vmatpush1.msra.mxu0 0.0
    %486 = vmatprep.subr.mxu0 0.0
    %487 = vmatpush1.msra.mxu0 0.0
    %488 = vmatprep.subr.mxu0 0.0
    %489 = vmatpush1.msra.mxu0 0.0
    %490 = vmatprep.subr.mxu0 0.0
    %491 = vmatpush1.msra.mxu0 0.0
    %492 = vmatprep.subr.mxu0 0.0
    %493 = vmatpush1.msra.mxu0 0.0
    %494 = vmatprep.subr.mxu0 0.0
    %495 = vmatpush1.msra.mxu0 0.0
    %496 = vmatprep.subr.mxu0 0.0
    %497 = vmatpush1.msra.mxu0 0.0
    %498 = vmatprep.subr.mxu0 0.0
    %499 = vmatpush1.msra.mxu0 0.0
    %500 = vmatprep.subr.mxu0 0.0
    %501 = vmatpush1.msra.mxu0 0.0
    %502 = vmatprep.subr.mxu0 0.0
    %503 = vmatpush1.msra.mxu0 0.0
    %504 = vmatprep.mubr.f32.mxu0 0.0
    %505 = vmatmul.mubr.f32.gmra.mrb[0].mxu0 %v233
    %v506 = vpop.f32.mrb[0].mxu0
    %v507 = vadd.f32 %v318, %v506
    %v508 = vpop.f32.mrb[0].mxu0
    %v509 = vadd.f32 %v322, %v508
    %510 = vmatprep.mubr.f32.mxu0 0.0
    %511 = vmatmul.mubr.f32.gmra.mrb[0].mxu0 %v234
    %v512 = vpop.f32.mrb[0].mxu0
    %v513 = vadd.f32 %v318, %v512
    %v514 = vpop.f32.mrb[0].mxu0
    %v515 = vadd.f32 %v322, %v514
    %516 = vmatprep.mubr.f32.mxu0 0.0
    %517 = vmatmul.mubr.f32.gmra.mrb[0].mxu0 %v235
    %v518 = vpop.f32.mrb[0].mxu0
    %v519 = vadd.f32 %v318, %v518
    %v520 = vpop.f32.mrb[0].mxu0
    %v521 = vadd.f32 %v322, %v520
    %522 = vmatprep.mubr.f32.mxu0 0.0
    %523 = vmatmul.mubr.f32.gmra.mrb[0].mxu0 %v236
    %v524 = vpop.f32.mrb[0].mxu0
    %v525 = vadd.f32 %v318, %v524
    %v526 = vpop.f32.mrb[0].mxu0
    %v527 = vadd.f32 %v322, %v526
    %528 = vmatprep.mubr.f32.mxu0 0.0
    %529 = vmatmul.mubr.f32.gmra.mrb[0].mxu0 %v237
    %v530 = vpop.f32.mrb[0].mxu0
    %v531 = vadd.f32 %v318, %v530
    %v532 = vpop.f32.mrb[0].mxu0
    %v533 = vadd.f32 %v322, %v532
    %534 = vmatprep.mubr.f32.mxu0 0.0
    %535 = vmatmul.mubr.f32.gmra.mrb[0].mxu0 %v238
    %v536 = vpop.f32.mrb[0].mxu0
    %v537 = vadd.f32 %v318, %v536
    %v538 = vpop.f32.mrb[0].mxu0
    %v539 = vadd.f32 %v322, %v538
    %540 = vmatprep.mubr.f32.mxu0 0.0
    %541 = vmatmul.mubr.f32.gmra.mrb[0].mxu0 %v239
    %v542 = vpop.f32.mrb[0].mxu0
    %v543 = vadd.f32 %v318, %v542
    %v544 = vpop.f32.mrb[0].mxu0
    %v545 = vadd.f32 %v322, %v544
    %546 = vmatprep.mubr.f32.mxu0 0.0
    %547 = vmatmul.mubr.f32.gmra.mrb[0].mxu0 %v240
    %v548 = vpop.f32.mrb[0].mxu0
    %v549 = vadd.f32 %v318, %v548
    %v550 = vpop.f32.mrb[0].mxu0
    %v551 = vadd.f32 %v322, %v550
    %552 = vdwg.mxu0
    %553 = vst [vmem:[#allocation11] sm:$0xff] %v394
    %554 = vst [vmem:[#allocation11 + $0x8] sm:$0xff] %v396
    %555 = vst [vmem:[#allocation11 + $0x10] sm:$0xff] %v507
    %556 = vst [vmem:[#allocation11 + $0x18] sm:$0xff] %v509
    %557 = vst [vmem:[#allocation11 + $0x20] sm:$0xff] %v400
    %558 = vst [vmem:[#allocation11 + $0x28] sm:$0xff] %v402
    %559 = vst [vmem:[#allocation11 + $0x30] sm:$0xff] %v513
    %560 = vst [vmem:[#allocation11 + $0x38] sm:$0xff] %v515
    %561 = vst [vmem:[#allocation11 + $0x40] sm:$0xff] %v406
    %562 = vst [vmem:[#allocation11 + $0x48] sm:$0xff] %v408
    %563 = vst [vmem:[#allocation11 + $0x50] sm:$0xff] %v519
    %564 = vst [vmem:[#allocation11 + $0x58] sm:$0xff] %v521
    %565 = vst [vmem:[#allocation11 + $0x60] sm:$0xff] %v412
    %566 = vst [vmem:[#allocation11 + $0x68] sm:$0xff] %v414
    %567 = vst [vmem:[#allocation11 + $0x70] sm:$0xff] %v525
    %568 = vst [vmem:[#allocation11 + $0x78] sm:$0xff] %v527
    %569 = vst [vmem:[#allocation11 + $0x80] sm:$0xff] %v418
    %570 = vst [vmem:[#allocation11 + $0x88] sm:$0xff] %v420
    %571 = vst [vmem:[#allocation11 + $0x90] sm:$0xff] %v531
    %572 = vst [vmem:[#allocation11 + $0x98] sm:$0xff] %v533
    %573 = vst [vmem:[#allocation11 + $0xa0] sm:$0xff] %v424
    %574 = vst [vmem:[#allocation11 + $0xa8] sm:$0xff] %v426
    %575 = vst [vmem:[#allocation11 + $0xb0] sm:$0xff] %v537
    %576 = vst [vmem:[#allocation11 + $0xb8] sm:$0xff] %v539
    %577 = vst [vmem:[#allocation11 + $0xc0] sm:$0xff] %v430
    %578 = vst [vmem:[#allocation11 + $0xc8] sm:$0xff] %v432
    %579 = vst [vmem:[#allocation11 + $0xd0] sm:$0xff] %v543
    %580 = vst [vmem:[#allocation11 + $0xd8] sm:$0xff] %v545
    %581 = vst [vmem:[#allocation11 + $0xe0] sm:$0xff] %v436
    %582 = vst [vmem:[#allocation11 + $0xe8] sm:$0xff] %v438
    %583 = vst [vmem:[#allocation11 + $0xf0] sm:$0xff] %v549
    %584 = vst [vmem:[#allocation11 + $0xf8] sm:$0xff] %v551
    // Predicated region
    $region42: #{_lambda_.2} parent=1 // pred_check
      _
    $region43: #{_lambda_.2} parent=1 // pred_check_branch
      %586 = sbr.rel (0) target = $region45
    $region44: #{_lambda_.2} parent=1 // pred_region
      %s588 = ssub.s32 4096, 4096
      %589 = vsyncadd [#allocation4], %s588
      %s590 = sshll.u32 [#allocation11], 4
      %s591 = int_to_ptr.vmem [resolvable:$true] %s590
      %596 = dma.vmem_to_hbm [thread:$0]  %s591, 4096, %s5, [#allocation4], 512, 512, 32
    $region45: #{_lambda_.2} parent=1 // pred_fallthru
      _
    // Predicated region
    $region46: #{_lambda_.2} parent=1 // pred_check
      _
    $region47: #{_lambda_.2} parent=1 // pred_check_branch
      %598 = sbr.rel (0) target = $region49
    $region48: #{_lambda_.2} parent=1 // pred_region
      %599 = dma.done [#allocation4], 4096
    $region49: #{_lambda_.2} parent=1 // pred_fallthru
      _
    %600 = vsyncpa [#allocation3], 1
    %601 = vsyncpa [#allocation6], 1
    %602 = vsyncpa [#allocation9], 1
    %603 = vsyncpa [#allocation4], 1

// kernel: _lambda_.3
$region0: #{_lambda_.3}
  #allocation0 [shape = 'u32[]', space=smem, size = 0x4, offset = 0x4, fixed_abs, tag = 'smem constant byte address 0x4 - core index']
  #allocation1 [shape = 'u32[144,128]{1,0:T(1,128)}', space=vmem, size = 0x12000, scoped, tag = 'internal scratch']
  #allocation2 [shape = 'f32[8,128]{1,0:T(8,128)}', space=vmem, size = 0x1000, scoped, tag = 'scratch operand']
  #allocation3 [shape = 'f32[8,128]{1,0:T(8,128)}', space=vmem, size = 0x1000, scoped, tag = 'scratch operand']
  %s0 = inlined_call_operand.hbm [shape: f32[8,8,512], index: 0, kind: input, shape index: {}]
  %s1 = inlined_call_operand.hbm [shape: f32[128,512], index: 1, kind: input, shape index: {}]
  %s2 = inlined_call_operand.hbm [shape: f32[128,2], index: 2, kind: input, shape index: {}]
  %s3 = inlined_call_operand.hbm [shape: f32[1,2], index: 3, kind: input, shape index: {}]
  %s4 = inlined_call_operand.hbm [shape: f32[8,8,2], index: 4, kind: output, shape index: {}]
  %s5 = sld [smem:[#allocation0]]
  $region69: #{_lambda_.3} parent=0
    _
  %s7 = ssub.s32 1, %s5
  %s8 = scalar_select 0, %s7, %s5
  $region1: #{_lambda_.3} parent=0
    #allocation4 [shape = 'u8[131072]{0}', space=vmem, size = 0x20000, scoped, tag = 'input window, operand 0']
    #allocation5 [shape = 's32[2]{0}', space=sflag, size = 0x8, scoped, tag = 'scoped memory for _lambda_.3']
    #allocation6 [shape = 's32[2]{0}', space=sflag, size = 0x8, scoped, tag = 'scoped memory for _lambda_.3']
    #allocation7 [shape = 'u8[262144]{0}', space=vmem, size = 0x40000, scoped, tag = 'input window, operand 1, single buffered']
    #allocation8 [shape = 's32[1]{0}', space=sflag, size = 0x4, scoped, tag = 'scoped memory for _lambda_.3']
    #allocation9 [shape = 'u8[65536]{0}', space=vmem, size = 0x10000, scoped, tag = 'input window, operand 2, single buffered']
    #allocation10 [shape = 'u8[512]{0}', space=vmem, size = 0x400, scoped, tag = 'input window, operand 3, single buffered']
    #allocation11 [shape = 's32[1]{0}', space=sflag, size = 0x4, scoped, tag = 'scoped memory for _lambda_.3']
    #allocation12 [shape = 'u8[32768]{0}', space=vmem, size = 0x8000, scoped, tag = 'output window, operand 0']
    %9 = vsyncpa [#allocation5], 0
    %s10 = scalar_lea.sflag [#allocation5], 1
    %11 = vsyncpa %s10, 0
    %12 = vsyncpa [#allocation8], 0
    %13 = vsyncpa [#allocation11], 0
    %14 = vsyncpa [#allocation6], 0
    %s15 = scalar_lea.sflag [#allocation6], 1
    %16 = vsyncpa %s15, 0
    loop: start=0, step=1, limit=4
    $region2: #{_lambda_.3} parent=1 // loop_pre_header
      _
    $region3: #{_lambda_.3} parent=1 // loop_header
      %s18 = sphi 0, %s22
      %p19 = scmp.ge.s32.totalorder %s18, 4
      %s25 = sphi 0, %s37
      %s26 = sphi 0, %s33
      %s27 = sphi 0, %s25
      %s28 = sphi 0, %s26
      %s29 = sphi 0, %s27
      %s30 = sphi 0, %s28
      %s42 = sphi 0, %s44
      %s45 = sphi 0, %s42
      %s46 = sphi 0, %s45
      %s62 = sphi 0, %s46
      %s66 = sphi 0, %s66
      %s68 = sphi 0, %s66
      %s69 = sphi 0, %s68
      %s83 = sphi 0, %s69
      %s87 = sphi 0, %s87
      %s89 = sphi 0, %s87
      %s90 = sphi 0, %s89
      %s104 = sphi 0, %s90
      %s108 = sphi 0, %s108
      %s110 = sphi 0, %s108
      %s111 = sphi 0, %s110
      %s125 = sphi 0, %s111
      %s133 = sphi 0, %s135
      %s136 = sphi 0, %s133
      %s137 = sphi 0, %s136
      %s153 = sphi 0, %s137
    $region4: #{_lambda_.3} parent=1 // loop_header_branch
      %21 = sbr.rel (%p19) target = $region8
    $region5: #{_lambda_.3} parent=1 // loop_body
      %s23 = ssub.s32 %s18, 1
      %s24 = ssub.s32 %s18, 2
      %s31 = sadd.s32 1, %s26
      %p32 = scmp.ge.s32.totalorder %s31, 2
      %s33 = scalar_select %p32, 0, %s31
      %s34 = sadd.s32 1, %s25
      %s35 = scalar_select %p32, %s34, %s25
      %p36 = scmp.ge.s32.totalorder %s35, 1
      %s37 = scalar_select %p36, 0, %s35
      %s38 = ssub.s32 %s26, %s33
      %s39 = ssub.s32 %s25, %s37
      %s40 = sor.u32 %s38, %s39
      %p41 = scmp.eq.s32.totalorder %s40, 0
      %s43 = sadd.s32 %s42, 1
      %s44 = scalar_select %p41, %s42, %s43
      %p47 = pneg %p41
      %p48 = scmp.eq.s32.totalorder %s18, 1
      %p49 = por %p47, %p48
      %p50 = scmp.ne.s32.totalorder %s42, %s45
      %p51 = scmp.eq.s32.totalorder %s18, 0
      %p52 = por %p50, %p51
      %p53 = scmp.ne.s32.totalorder %s42, %s45
      %p54 = scmp.eq.s32.totalorder %s23, 1
      %p55 = por %p53, %p54
      %p56 = scmp.ne.s32.totalorder %s45, %s46
      %p57 = scmp.eq.s32.totalorder %s23, 0
      %p58 = por %p56, %p57
      %p59 = scmp.ne.s32.totalorder %s45, %s46
      %p60 = scmp.eq.s32.totalorder %s24, 1
      %p61 = por %p59, %p60
      %p63 = scmp.ne.s32.totalorder %s46, %s62
      %p64 = scmp.eq.s32.totalorder %s24, 0
      %p65 = por %p63, %p64
      %s67 = sadd.s32 %s66, 1
      %p70 = scmp.eq.s32.totalorder %s18, 1
      %p71 = scmp.ne.s32.totalorder %s66, %s68
      %p72 = scmp.eq.s32.totalorder %s18, 0
      %p73 = por %p71, %p72
      %p74 = scmp.ne.s32.totalorder %s66, %s68
      %p75 = scmp.eq.s32.totalorder %s23, 1
      %p76 = por %p74, %p75
      %p77 = scmp.ne.s32.totalorder %s68, %s69
      %p78 = scmp.eq.s32.totalorder %s23, 0
      %p79 = por %p77, %p78
      %p80 = scmp.ne.s32.totalorder %s68, %s69
      %p81 = scmp.eq.s32.totalorder %s24, 1
      %p82 = por %p80, %p81
      %p84 = scmp.ne.s32.totalorder %s69, %s83
      %p85 = scmp.eq.s32.totalorder %s24, 0
      %p86 = por %p84, %p85
      %s88 = sadd.s32 %s87, 1
      %p91 = scmp.eq.s32.totalorder %s18, 1
      %p92 = scmp.ne.s32.totalorder %s87, %s89
      %p93 = scmp.eq.s32.totalorder %s18, 0
      %p94 = por %p92, %p93
      %p95 = scmp.ne.s32.totalorder %s87, %s89
      %p96 = scmp.eq.s32.totalorder %s23, 1
      %p97 = por %p95, %p96
      %p98 = scmp.ne.s32.totalorder %s89, %s90
      %p99 = scmp.eq.s32.totalorder %s23, 0
      %p100 = por %p98, %p99
      %p101 = scmp.ne.s32.totalorder %s89, %s90
      %p102 = scmp.eq.s32.totalorder %s24, 1
      %p103 = por %p101, %p102
      %p105 = scmp.ne.s32.totalorder %s90, %s104
      %p106 = scmp.eq.s32.totalorder %s24, 0
      %p107 = por %p105, %p106
      %s109 = sadd.s32 %s108, 1
      %p112 = scmp.eq.s32.totalorder %s18, 1
      %p113 = scmp.ne.s32.totalorder %s108, %s110
      %p114 = scmp.eq.s32.totalorder %s18, 0
      %p115 = por %p113, %p114
      %p116 = scmp.ne.s32.totalorder %s108, %s110
      %p117 = scmp.eq.s32.totalorder %s23, 1
      %p118 = por %p116, %p117
      %p119 = scmp.ne.s32.totalorder %s110, %s111
      %p120 = scmp.eq.s32.totalorder %s23, 0
      %p121 = por %p119, %p120
      %p122 = scmp.ne.s32.totalorder %s110, %s111
      %p123 = scmp.eq.s32.totalorder %s24, 1
      %p124 = por %p122, %p123
      %p126 = scmp.ne.s32.totalorder %s111, %s125
      %p127 = scmp.eq.s32.totalorder %s24, 0
      %p128 = por %p126, %p127
      %s129 = ssub.s32 %s26, %s33
      %s130 = ssub.s32 %s25, %s37
      %s131 = sor.u32 %s129, %s130
      %p132 = scmp.eq.s32.totalorder %s131, 0
      %s134 = sadd.s32 %s133, 1
      %s135 = scalar_select %p132, %s133, %s134
      %p138 = pneg %p132
      %p139 = scmp.eq.s32.totalorder %s18, 1
      %p140 = por %p138, %p139
      %p141 = scmp.ne.s32.totalorder %s133, %s136
      %p142 = scmp.eq.s32.totalorder %s18, 0
      %p143 = por %p141, %p142
      %p144 = scmp.ne.s32.totalorder %s133, %s136
      %p145 = scmp.eq.s32.totalorder %s23, 1
      %p146 = por %p144, %p145
      %p147 = scmp.ne.s32.totalorder %s136, %s137
      %p148 = scmp.eq.s32.totalorder %s23, 0
      %p149 = por %p147, %p148
      %p150 = scmp.ne.s32.totalorder %s136, %s137
      %p151 = scmp.eq.s32.totalorder %s24, 1
      %p152 = por %p150, %p151
      %p154 = scmp.ne.s32.totalorder %s137, %s153
      %p155 = scmp.eq.s32.totalorder %s24, 0
      %p156 = por %p154, %p155
      %p157 = scmp.le.s32.totalorder 1, %s18
      %p158 = scmp.lt.s32.totalorder %s18, 3
      %p159 = pnand %p157, %p158
      %p160 = pneg %p159
      // Predicated region
      $region9: #{_lambda_.3} parent=5 // pred_check
        _
      $region10: #{_lambda_.3} parent=5 // pred_check_branch
        %162 = sbr.rel (%p159) target = $region12
      $region11: #{_lambda_.3} parent=5 // pred_region
        %s163 = ssub.s32 %s18, 1
        // Predicated region
        $region13: #{_lambda_.3} parent=11 // pred_check
          %p164 = pneg %p79
        $region14: #{_lambda_.3} parent=11 // pred_check_branch
          %166 = sbr.rel (%p164) target = $region16
        $region15: #{_lambda_.3} parent=11 // pred_region
          %s168 = ssub.s32 8192, 8192
          %169 = vsyncadd [#allocation8], %s168
          %s170 = sshll.u32 [#allocation7], 4
          %s171 = int_to_ptr.vmem [resolvable:$true] %s170
          %176 = dma.hbm_to_vmem [thread:$0]  %s1, 8192, %s171, [#allocation8], 512, 512, 32
        $region16: #{_lambda_.3} parent=11 // pred_fallthru
          _
        // Predicated region
        $region17: #{_lambda_.3} parent=11 // pred_check
          %p177 = pneg %p100
        $region18: #{_lambda_.3} parent=11 // pred_check_branch
          %179 = sbr.rel (%p177) target = $region20
        $region19: #{_lambda_.3} parent=11 // pred_region
          %s181 = ssub.s32 2048, 2048
          %182 = vsyncadd [#allocation8], %s181
          %s183 = sshll.u32 [#allocation9], 4
          %s184 = int_to_ptr.vmem [resolvable:$true] %s183
          %189 = dma.hbm_to_vmem [thread:$0]  %s2, 2048, %s184, [#allocation8], 128, 128, 8
        $region20: #{_lambda_.3} parent=11 // pred_fallthru
          _
        // Predicated region
        $region21: #{_lambda_.3} parent=11 // pred_check
          %p190 = pneg %p121
        $region22: #{_lambda_.3} parent=11 // pred_check_branch
          %192 = sbr.rel (%p190) target = $region24
        $region23: #{_lambda_.3} parent=11 // pred_region
          %s194 = ssub.s32 16, 16
          %195 = vsyncadd [#allocation11], %s194
          %s197 = sshll.u32 [#allocation10], 4
          %s198 = int_to_ptr.vmem [resolvable:$true] %s197
          %200 = dma.hbm_to_vmem [thread:$0]  %s3, 16, %s198, [#allocation11]
        $region24: #{_lambda_.3} parent=11 // pred_fallthru
          _
      $region12: #{_lambda_.3} parent=5 // pred_fallthru
        _
      %p201 = scmp.lt.s32.totalorder %s18, 2
      // Predicated region
      $region25: #{_lambda_.3} parent=5 // pred_check
        %p202 = pneg %p201
      $region26: #{_lambda_.3} parent=5 // pred_check_branch
        %204 = sbr.rel (%p202) target = $region28
      $region27: #{_lambda_.3} parent=5 // pred_region
        // Predicated region
        $region29: #{_lambda_.3} parent=27 // pred_check
          %p205 = pneg %p52
        $region30: #{_lambda_.3} parent=27 // pred_check_branch
          %207 = sbr.rel (%p205) target = $region32
        $region31: #{_lambda_.3} parent=27 // pred_region
          %s208 = sand.u32 %s42, 1
          %s209 = scalar_lea.sflag [#allocation5], %s208
          %s210 = sand.u32 %s42, 1
          %s211 = smul.addr %s210, 128
          %s212 = scalar_lea.vmem [#allocation4], %s211
          %s213 = smul.u32 4, %s26
          %s215 = ssub.s32 2048, 2048
          %216 = vsyncadd %s209, %s215
          %s217 = smul.addr %s25, 4
          %s218 = smul.addr %s213, 4
          %s219 = sadd.s32 %s217, %s218
          %s220 = smul.addr %s219, 128
          %s221 = scalar_lea.hbm %s0, %s220
          %s222 = sshll.u32 %s212, 4
          %s223 = int_to_ptr.vmem [resolvable:$true] %s222
          %228 = dma.hbm_to_vmem [thread:$0]  %s221, 2048, %s223, %s209, 512, 512, 32
        $region32: #{_lambda_.3} parent=27 // pred_fallthru
          _
      $region28: #{_lambda_.3} parent=5 // pred_fallthru
        _
      %p229 = scmp.le.s32.totalorder 1, %s18
      %p230 = scmp.lt.s32.totalorder %s18, 3
      %p231 = pnand %p229, %p230
      %p232 = pneg %p231
      // Predicated region
      $region33: #{_lambda_.3} parent=5 // pred_check
        _
      $region34: #{_lambda_.3} parent=5 // pred_check_branch
        %234 = sbr.rel (%p231) target = $region36
      $region35: #{_lambda_.3} parent=5 // pred_region
        %s235 = ssub.s32 %s18, 1
        %s236 = sand.u32 %s45, 1
        %s237 = scalar_lea.sflag [#allocation5], %s236
        %s238 = sand.u32 %s45, 1
        %s239 = smul.addr %s238, 128
        %s240 = scalar_lea.vmem [#allocation4], %s239
        // Predicated region
        $region37: #{_lambda_.3} parent=35 // pred_check
          %p241 = pneg %p58
        $region38: #{_lambda_.3} parent=35 // pred_check_branch
          %243 = sbr.rel (%p241) target = $region40
        $region39: #{_lambda_.3} parent=35 // pred_region
          %244 = dma.done %s237, 2048
        $region40: #{_lambda_.3} parent=35 // pred_fallthru
          _
        // Predicated region
        $region41: #{_lambda_.3} parent=35 // pred_check
          %p245 = pneg %p79
        $region42: #{_lambda_.3} parent=35 // pred_check_branch
          %247 = sbr.rel (%p245) target = $region44
        $region43: #{_lambda_.3} parent=35 // pred_region
          %248 = dma.done [#allocation8], 8192
        $region44: #{_lambda_.3} parent=35 // pred_fallthru
          _
        // Predicated region
        $region45: #{_lambda_.3} parent=35 // pred_check
          %p249 = pneg %p100
        $region46: #{_lambda_.3} parent=35 // pred_check_branch
          %251 = sbr.rel (%p249) target = $region48
        $region47: #{_lambda_.3} parent=35 // pred_region
          %252 = dma.done [#allocation8], 2048
        $region48: #{_lambda_.3} parent=35 // pred_fallthru
          _
        // Predicated region
        $region49: #{_lambda_.3} parent=35 // pred_check
          %p253 = pneg %p121
        $region50: #{_lambda_.3} parent=35 // pred_check_branch
          %255 = sbr.rel (%p253) target = $region52
        $region51: #{_lambda_.3} parent=35 // pred_region
          %256 = dma.done [#allocation11], 16
        $region52: #{_lambda_.3} parent=35 // pred_fallthru
          _
        %s257 = sand.u32 %s45, 1
        %s258 = scalar_lea.sflag [#allocation5], %s257
        %s259 = sand.u32 %s45, 1
        %s260 = smul.addr %s259, 128
        %s261 = scalar_lea.vmem [#allocation4], %s260
        %p262 = pneg %p58
        %p263 = pneg %p55
        %p264 = pneg %p79
        %p265 = pneg %p76
        %p266 = pneg %p100
        %p267 = pneg %p97
        %p268 = pneg %p121
        %p269 = pneg %p118
        %p270 = pneg %p149
        %p271 = pneg %p146
        %s272 = sand.u32 %s136, 1
        %s273 = scalar_lea.sflag [#allocation6], %s272
        %s274 = sand.u32 %s136, 1
        %s275 = smul.addr %s274, 32
        %s276 = scalar_lea.vmem [#allocation12], %s275
        %s277 = smul.u32 4, %s28
        %s278 = smul.u32 4, %s28
        %p279 = scmp.eq.s32.totalorder %s28, 0
        // Predicated region
        $region53: #{_lambda_.3} parent=35 // pred_check
          %p280 = pneg %p279
        $region54: #{_lambda_.3} parent=35 // pred_check_branch
          %282 = sbr.rel (%p280) target = $region56
        $region55: #{_lambda_.3} parent=35 // pred_region
          %283 = vst [vmem:[#allocation2] sm:$0xff] 0.0
          %284 = vst [vmem:[#allocation3] sm:$0xff] 0.0
        $region56: #{_lambda_.3} parent=35 // pred_fallthru
          _
        %v285 = vld [vmem:[%s240] sm:$0xff]
        %v286 = vld [vmem:[%s240 + $0x8] sm:$0xff]
        %v287 = vld [vmem:[%s240 + $0x10] sm:$0xff]
        %v288 = vld [vmem:[%s240 + $0x18] sm:$0xff]
        %v289 = vld [vmem:[#allocation2] sm:$0xff]
        %v290 = vld [vmem:[#allocation7] sm:$0xff]
        %v291 = vld [vmem:[#allocation7 + $0x8] sm:$0xff]
        %v292 = vld [vmem:[#allocation7 + $0x10] sm:$0xff]
        %v293 = vld [vmem:[#allocation7 + $0x18] sm:$0xff]
        %v294 = vld [vmem:[#allocation7 + $0x20] sm:$0xff]
        %v295 = vld [vmem:[#allocation7 + $0x28] sm:$0xff]
        %v296 = vld [vmem:[#allocation7 + $0x30] sm:$0xff]
        %v297 = vld [vmem:[#allocation7 + $0x38] sm:$0xff]
        %v298 = vld [vmem:[#allocation7 + $0x40] sm:$0xff]
        %v299 = vld [vmem:[#allocation7 + $0x48] sm:$0xff]
        %v300 = vld [vmem:[#allocation7 + $0x50] sm:$0xff]
        %v301 = vld [vmem:[#allocation7 + $0x58] sm:$0xff]
        %v302 = vld [vmem:[#allocation7 + $0x60] sm:$0xff]
        %v303 = vld [vmem:[#allocation7 + $0x68] sm:$0xff]
        %v304 = vld [vmem:[#allocation7 + $0x70] sm:$0xff]
        %v305 = vld [vmem:[#allocation7 + $0x78] sm:$0xff]
        %v306 = vld [vmem:[#allocation7 + $0x80] sm:$0xff]
        %v307 = vld [vmem:[#allocation7 + $0x88] sm:$0xff]
        %v308 = vld [vmem:[#allocation7 + $0x90] sm:$0xff]
        %v309 = vld [vmem:[#allocation7 + $0x98] sm:$0xff]
        %v310 = vld [vmem:[#allocation7 + $0xa0] sm:$0xff]
        %v311 = vld [vmem:[#allocation7 + $0xa8] sm:$0xff]
        %v312 = vld [vmem:[#allocation7 + $0xb0] sm:$0xff]
        %v313 = vld [vmem:[#allocation7 + $0xb8] sm:$0xff]
        %v314 = vld [vmem:[#allocation7 + $0xc0] sm:$0xff]
        %v315 = vld [vmem:[#allocation7 + $0xc8] sm:$0xff]
        %v316 = vld [vmem:[#allocation7 + $0xd0] sm:$0xff]
        %v317 = vld [vmem:[#allocation7 + $0xd8] sm:$0xff]
        %v318 = vld [vmem:[#allocation7 + $0xe0] sm:$0xff]
        %v319 = vld [vmem:[#allocation7 + $0xe8] sm:$0xff]
        %v320 = vld [vmem:[#allocation7 + $0xf0] sm:$0xff]
        %v321 = vld [vmem:[#allocation7 + $0xf8] sm:$0xff]
        %v322 = vld [vmem:[#allocation7 + $0x100] sm:$0xff]
        %v323 = vld [vmem:[#allocation7 + $0x108] sm:$0xff]
        %v324 = vld [vmem:[#allocation7 + $0x110] sm:$0xff]
        %v325 = vld [vmem:[#allocation7 + $0x118] sm:$0xff]
        %v326 = vld [vmem:[#allocation7 + $0x120] sm:$0xff]
        %v327 = vld [vmem:[#allocation7 + $0x128] sm:$0xff]
        %v328 = vld [vmem:[#allocation7 + $0x130] sm:$0xff]
        %v329 = vld [vmem:[#allocation7 + $0x138] sm:$0xff]
        %v330 = vld [vmem:[#allocation7 + $0x140] sm:$0xff]
        %v331 = vld [vmem:[#allocation7 + $0x148] sm:$0xff]
        %v332 = vld [vmem:[#allocation7 + $0x150] sm:$0xff]
        %v333 = vld [vmem:[#allocation7 + $0x158] sm:$0xff]
        %v334 = vld [vmem:[#allocation7 + $0x160] sm:$0xff]
        %v335 = vld [vmem:[#allocation7 + $0x168] sm:$0xff]
        %v336 = vld [vmem:[#allocation7 + $0x170] sm:$0xff]
        %v337 = vld [vmem:[#allocation7 + $0x178] sm:$0xff]
        %v338 = vld [vmem:[#allocation7 + $0x180] sm:$0xff]
        %v339 = vld [vmem:[#allocation7 + $0x188] sm:$0xff]
        %v340 = vld [vmem:[#allocation7 + $0x190] sm:$0xff]
        %v341 = vld [vmem:[#allocation7 + $0x198] sm:$0xff]
        %v342 = vld [vmem:[#allocation7 + $0x1a0] sm:$0xff]
        %v343 = vld [vmem:[#allocation7 + $0x1a8] sm:$0xff]
        %v344 = vld [vmem:[#allocation7 + $0x1b0] sm:$0xff]
        %v345 = vld [vmem:[#allocation7 + $0x1b8] sm:$0xff]
        %v346 = vld [vmem:[#allocation7 + $0x1c0] sm:$0xff]
        %v347 = vld [vmem:[#allocation7 + $0x1c8] sm:$0xff]
        %v348 = vld [vmem:[#allocation7 + $0x1d0] sm:$0xff]
        %v349 = vld [vmem:[#allocation7 + $0x1d8] sm:$0xff]
        %v350 = vld [vmem:[#allocation7 + $0x1e0] sm:$0xff]
        %v351 = vld [vmem:[#allocation7 + $0x1e8] sm:$0xff]
        %v352 = vld [vmem:[#allocation7 + $0x1f0] sm:$0xff]
        %v353 = vld [vmem:[#allocation7 + $0x1f8] sm:$0xff]
        %354 = vmatprep.subr.mxu0 %v291
        %355 = vmatpush1.msra.mxu0 %v290
        %356 = vmatprep.subr.mxu0 %v295
        %357 = vmatpush1.msra.mxu0 %v294
        %358 = vmatprep.subr.mxu0 %v299
        %359 = vmatpush1.msra.mxu0 %v298
        %360 = vmatprep.subr.mxu0 %v303
        %361 = vmatpush1.msra.mxu0 %v302
        %362 = vmatprep.subr.mxu0 %v307
        %363 = vmatpush1.msra.mxu0 %v306
        %364 = vmatprep.subr.mxu0 %v311
        %365 = vmatpush1.msra.mxu0 %v310
        %366 = vmatprep.subr.mxu0 %v315
        %367 = vmatpush1.msra.mxu0 %v314
        %368 = vmatprep.subr.mxu0 %v319
        %369 = vmatpush1.msra.mxu0 %v318
        %370 = vmatprep.subr.mxu0 %v323
        %371 = vmatpush1.msra.mxu0 %v322
        %372 = vmatprep.subr.mxu0 %v327
        %373 = vmatpush1.msra.mxu0 %v326
        %374 = vmatprep.subr.mxu0 %v331
        %375 = vmatpush1.msra.mxu0 %v330
        %376 = vmatprep.subr.mxu0 %v335
        %377 = vmatpush1.msra.mxu0 %v334
        %378 = vmatprep.subr.mxu0 %v339
        %379 = vmatpush1.msra.mxu0 %v338
        %380 = vmatprep.subr.mxu0 %v343
        %381 = vmatpush1.msra.mxu0 %v342
        %382 = vmatprep.subr.mxu0 %v347
        %383 = vmatpush1.msra.mxu0 %v346
        %384 = vmatprep.subr.mxu0 %v351
        %385 = vmatpush1.msra.mxu0 %v350
        %386 = vmatprep.subr.mxu0 0.0
        %387 = vmatpush1.msra.mxu0 0.0
        %388 = vmatprep.subr.mxu0 0.0
        %389 = vmatpush1.msra.mxu0 0.0
        %390 = vmatprep.subr.mxu0 0.0
        %391 = vmatpush1.msra.mxu0 0.0
        %392 = vmatprep.subr.mxu0 0.0
        %393 = vmatpush1.msra.mxu0 0.0
        %394 = vmatprep.subr.mxu0 0.0
        %395 = vmatpush1.msra.mxu0 0.0
        %396 = vmatprep.subr.mxu0 0.0
        %397 = vmatpush1.msra.mxu0 0.0
        %398 = vmatprep.subr.mxu0 0.0
        %399 = vmatpush1.msra.mxu0 0.0
        %400 = vmatprep.subr.mxu0 0.0
        %401 = vmatpush1.msra.mxu0 0.0
        %402 = vmatprep.subr.mxu0 0.0
        %403 = vmatpush1.msra.mxu0 0.0
        %404 = vmatprep.subr.mxu0 0.0
        %405 = vmatpush1.msra.mxu0 0.0
        %406 = vmatprep.subr.mxu0 0.0
        %407 = vmatpush1.msra.mxu0 0.0
        %408 = vmatprep.subr.mxu0 0.0
        %409 = vmatpush1.msra.mxu0 0.0
        %410 = vmatprep.subr.mxu0 0.0
        %411 = vmatpush1.msra.mxu0 0.0
        %412 = vmatprep.subr.mxu0 0.0
        %413 = vmatpush1.msra.mxu0 0.0
        %414 = vmatprep.subr.mxu0 0.0
        %415 = vmatpush1.msra.mxu0 0.0
        %416 = vmatprep.subr.mxu0 0.0
        %417 = vmatpush1.msra.mxu0 0.0
        %418 = vmatprep.mubr.f32.mxu0 0.0
        %419 = vmatmul.mubr.f32.gmra.mrb[0].mxu0 %v289
        %v420 = vpop.f32.mrb[0].mxu0
        %v421 = vadd.f32 0.0, %v420
        %v422 = vpop.f32.mrb[0].mxu0
        %v423 = vadd.f32 0.0, %v422
        %424 = vdwg.mxu0
        %425 = vmatprep.subr.mxu0 %v293
        %426 = vmatpush1.msra.mxu0 %v292
        %427 = vmatprep.subr.mxu0 %v297
        %428 = vmatpush1.msra.mxu0 %v296
        %429 = vmatprep.subr.mxu0 %v301
        %430 = vmatpush1.msra.mxu0 %v300
        %431 = vmatprep.subr.mxu0 %v305
        %432 = vmatpush1.msra.mxu0 %v304
        %433 = vmatprep.subr.mxu0 %v309
        %434 = vmatpush1.msra.mxu0 %v308
        %435 = vmatprep.subr.mxu0 %v313
        %436 = vmatpush1.msra.mxu0 %v312
        %437 = vmatprep.subr.mxu0 %v317
        %438 = vmatpush1.msra.mxu0 %v316
        %439 = vmatprep.subr.mxu0 %v321
        %440 = vmatpush1.msra.mxu0 %v320
        %441 = vmatprep.subr.mxu0 %v325
        %442 = vmatpush1.msra.mxu0 %v324
        %443 = vmatprep.subr.mxu0 %v329
        %444 = vmatpush1.msra.mxu0 %v328
        %445 = vmatprep.subr.mxu0 %v333
        %446 = vmatpush1.msra.mxu0 %v332
        %447 = vmatprep.subr.mxu0 %v337
        %448 = vmatpush1.msra.mxu0 %v336
        %449 = vmatprep.subr.mxu0 %v341
        %450 = vmatpush1.msra.mxu0 %v340
        %451 = vmatprep.subr.mxu0 %v345
        %452 = vmatpush1.msra.mxu0 %v344
        %453 = vmatprep.subr.mxu0 %v349
        %454 = vmatpush1.msra.mxu0 %v348
        %455 = vmatprep.subr.mxu0 %v353
        %456 = vmatpush1.msra.mxu0 %v352
        %457 = vmatprep.subr.mxu0 0.0
        %458 = vmatpush1.msra.mxu0 0.0
        %459 = vmatprep.subr.mxu0 0.0
        %460 = vmatpush1.msra.mxu0 0.0
        %461 = vmatprep.subr.mxu0 0.0
        %462 = vmatpush1.msra.mxu0 0.0
        %463 = vmatprep.subr.mxu0 0.0
        %464 = vmatpush1.msra.mxu0 0.0
        %465 = vmatprep.subr.mxu0 0.0
        %466 = vmatpush1.msra.mxu0 0.0
        %467 = vmatprep.subr.mxu0 0.0
        %468 = vmatpush1.msra.mxu0 0.0
        %469 = vmatprep.subr.mxu0 0.0
        %470 = vmatpush1.msra.mxu0 0.0
        %471 = vmatprep.subr.mxu0 0.0
        %472 = vmatpush1.msra.mxu0 0.0
        %473 = vmatprep.subr.mxu0 0.0
        %474 = vmatpush1.msra.mxu0 0.0
        %475 = vmatprep.subr.mxu0 0.0
        %476 = vmatpush1.msra.mxu0 0.0
        %477 = vmatprep.subr.mxu0 0.0
        %478 = vmatpush1.msra.mxu0 0.0
        %479 = vmatprep.subr.mxu0 0.0
        %480 = vmatpush1.msra.mxu0 0.0
        %481 = vmatprep.subr.mxu0 0.0
        %482 = vmatpush1.msra.mxu0 0.0
        %483 = vmatprep.subr.mxu0 0.0
        %484 = vmatpush1.msra.mxu0 0.0
        %485 = vmatprep.subr.mxu0 0.0
        %486 = vmatpush1.msra.mxu0 0.0
        %487 = vmatprep.subr.mxu0 0.0
        %488 = vmatpush1.msra.mxu0 0.0
        %489 = vmatprep.mubr.f32.mxu0 0.0
        %490 = vmatmul.mubr.f32.gmra.mrb[0].mxu0 %v289
        %v491 = vpop.f32.mrb[0].mxu0
        %v492 = vadd.f32 0.0, %v491
        %v493 = vpop.f32.mrb[0].mxu0
        %v494 = vadd.f32 0.0, %v493
        %495 = vdwg.mxu0
        %v496 = vadd.f32 %v285, %v421
        %v497 = vadd.f32 %v286, %v423
        %v498 = vadd.f32 %v287, %v492
        %v499 = vadd.f32 %v288, %v494
        %v500 = vmul.f32 %v496, 0.5
        %v501 = vtanh.pop %v500
        %v502 = vmul.f32 %v501, 0.5
        %v503 = vadd.f32 %v502, 0.5
        %v504 = vmul.f32 %v497, 0.5
        %v505 = vtanh.pop %v504
        %v506 = vmul.f32 %v505, 0.5
        %v507 = vadd.f32 %v506, 0.5
        %v508 = vtanh.pop %v498
        %v509 = vmul.f32 %v499, 0.5
        %v510 = vtanh.pop %v509
        %v511 = vmul.f32 %v510, 0.5
        %v512 = vadd.f32 %v511, 0.5
        %v513 = vld [vmem:[#allocation3] sm:$0xff]
        %v514 = vmul.f32 %v507, %v513
        %v515 = vmul.f32 %v503, %v508
        %v516 = vadd.f32 %v514, %v515
        %v517 = vtanh.pop %v516
        %v518 = vmul.f32 %v512, %v517
        %519 = vst [vmem:[#allocation3] sm:$0xff] %v516
        %520 = vst [vmem:[#allocation2] sm:$0xff] %v518
        %v521 = vld [vmem:[#allocation9] sm:$0xff]
        %v522 = vld [vmem:[#allocation9 + $0x8] sm:$0xff]
        %v523 = vld [vmem:[#allocation9 + $0x10] sm:$0xff]
        %v524 = vld [vmem:[#allocation9 + $0x18] sm:$0xff]
        %v525 = vld [vmem:[#allocation9 + $0x20] sm:$0xff]
        %v526 = vld [vmem:[#allocation9 + $0x28] sm:$0xff]
        %v527 = vld [vmem:[#allocation9 + $0x30] sm:$0xff]
        %v528 = vld [vmem:[#allocation9 + $0x38] sm:$0xff]
        %v529 = vld [vmem:[#allocation9 + $0x40] sm:$0xff]
        %v530 = vld [vmem:[#allocation9 + $0x48] sm:$0xff]
        %v531 = vld [vmem:[#allocation9 + $0x50] sm:$0xff]
        %v532 = vld [vmem:[#allocation9 + $0x58] sm:$0xff]
        %v533 = vld [vmem:[#allocation9 + $0x60] sm:$0xff]
        %v534 = vld [vmem:[#allocation9 + $0x68] sm:$0xff]
        %v535 = vld [vmem:[#allocation9 + $0x70] sm:$0xff]
        %v536 = vld [vmem:[#allocation9 + $0x78] sm:$0xff]
        %v537 = vld [vmem:[#allocation10] sm:$0x1]
        %v539 = vlaneseq
        %v540 = vshrl.u32 %v539, 7
        %v541 = vsub.s32 0, %v540
        %v542 = vrot.slane %v537, %v541
        %544 = vmatprep.subr.mxu0 0.0
        %545 = vmatpush1.msra.mxu0 %v521
        %546 = vmatprep.subr.mxu0 0.0
        %547 = vmatpush1.msra.mxu0 %v522
        %548 = vmatprep.subr.mxu0 0.0
        %549 = vmatpush1.msra.mxu0 %v523
        %550 = vmatprep.subr.mxu0 0.0
        %551 = vmatpush1.msra.mxu0 %v524
        %552 = vmatprep.subr.mxu0 0.0
        %553 = vmatpush1.msra.mxu0 %v525
        %554 = vmatprep.subr.mxu0 0.0
        %555 = vmatpush1.msra.mxu0 %v526
        %556 = vmatprep.subr.mxu0 0.0
        %557 = vmatpush1.msra.mxu0 %v527
        %558 = vmatprep.subr.mxu0 0.0
        %559 = vmatpush1.msra.mxu0 %v528
        %560 = vmatprep.subr.mxu0 0.0
        %561 = vmatpush1.msra.mxu0 %v529
        %562 = vmatprep.subr.mxu0 0.0
        %563 = vmatpush1.msra.mxu0 %v530
        %564 = vmatprep.subr.mxu0 0.0
        %565 = vmatpush1.msra.mxu0 %v531
        %566 = vmatprep.subr.mxu0 0.0
        %567 = vmatpush1.msra.mxu0 %v532
        %568 = vmatprep.subr.mxu0 0.0
        %569 = vmatpush1.msra.mxu0 %v533
        %570 = vmatprep.subr.mxu0 0.0
        %571 = vmatpush1.msra.mxu0 %v534
        %572 = vmatprep.subr.mxu0 0.0
        %573 = vmatpush1.msra.mxu0 %v535
        %574 = vmatprep.subr.mxu0 0.0
        %575 = vmatpush1.msra.mxu0 %v536
        %576 = vmatprep.subr.mxu0 0.0
        %577 = vmatpush1.msra.mxu0 0.0
        %578 = vmatprep.subr.mxu0 0.0
        %579 = vmatpush1.msra.mxu0 0.0
        %580 = vmatprep.subr.mxu0 0.0
        %581 = vmatpush1.msra.mxu0 0.0
        %582 = vmatprep.subr.mxu0 0.0
        %583 = vmatpush1.msra.mxu0 0.0
        %584 = vmatprep.subr.mxu0 0.0
        %585 = vmatpush1.msra.mxu0 0.0
        %586 = vmatprep.subr.mxu0 0.0
        %587 = vmatpush1.msra.mxu0 0.0
        %588 = vmatprep.subr.mxu0 0.0
        %589 = vmatpush1.msra.mxu0 0.0
        %590 = vmatprep.subr.mxu0 0.0
        %591 = vmatpush1.msra.mxu0 0.0
        %592 = vmatprep.subr.mxu0 0.0
        %593 = vmatpush1.msra.mxu0 0.0
        %594 = vmatprep.subr.mxu0 0.0
        %595 = vmatpush1.msra.mxu0 0.0
        %596 = vmatprep.subr.mxu0 0.0
        %597 = vmatpush1.msra.mxu0 0.0
        %598 = vmatprep.subr.mxu0 0.0
        %599 = vmatpush1.msra.mxu0 0.0
        %600 = vmatprep.subr.mxu0 0.0
        %601 = vmatpush1.msra.mxu0 0.0
        %602 = vmatprep.subr.mxu0 0.0
        %603 = vmatpush1.msra.mxu0 0.0
        %604 = vmatprep.subr.mxu0 0.0
        %605 = vmatpush1.msra.mxu0 0.0
        %606 = vmatprep.subr.mxu0 0.0
        %607 = vmatpush1.msra.mxu0 0.0
        %608 = vmatprep.mubr.f32.mxu0 0.0
        %609 = vmatmul.mubr.f32.gmra.mrb[0].mxu0 %v518
        %v610 = vpop.f32.mrb[0].mxu0
        %v611 = vadd.f32 %v542, %v610
        %v612 = vpop.f32.mrb[0].mxu0
        %613 = vdwg.mxu0
        %vm614 = vcmask 15360
        %615 = vst.msk [vmem:[%s276] sm:$0xff] %vm614, %v611
        %s616 = scalar_lea.vmem %s240, 32 [#allocation4]
        %v617 = vld [vmem:[%s616] sm:$0xff]
        %v618 = vld [vmem:[%s616 + $0x8] sm:$0xff]
        %v619 = vld [vmem:[%s616 + $0x10] sm:$0xff]
        %v620 = vld [vmem:[%s616 + $0x18] sm:$0xff]
        %v621 = vld [vmem:[#allocation2] sm:$0xff]
        %v622 = vld [vmem:[#allocation7] sm:$0xff]
        %v623 = vld [vmem:[#allocation7 + $0x8] sm:$0xff]
        %v624 = vld [vmem:[#allocation7 + $0x10] sm:$0xff]
        %v625 = vld [vmem:[#allocation7 + $0x18] sm:$0xff]
        %v626 = vld [vmem:[#allocation7 + $0x20] sm:$0xff]
        %v627 = vld [vmem:[#allocation7 + $0x28] sm:$0xff]
        %v628 = vld [vmem:[#allocation7 + $0x30] sm:$0xff]
        %v629 = vld [vmem:[#allocation7 + $0x38] sm:$0xff]
        %v630 = vld [vmem:[#allocation7 + $0x40] sm:$0xff]
        %v631 = vld [vmem:[#allocation7 + $0x48] sm:$0xff]
        %v632 = vld [vmem:[#allocation7 + $0x50] sm:$0xff]
        %v633 = vld [vmem:[#allocation7 + $0x58] sm:$0xff]
        %v634 = vld [vmem:[#allocation7 + $0x60] sm:$0xff]
        %v635 = vld [vmem:[#allocation7 + $0x68] sm:$0xff]
        %v636 = vld [vmem:[#allocation7 + $0x70] sm:$0xff]
        %v637 = vld [vmem:[#allocation7 + $0x78] sm:$0xff]
        %v638 = vld [vmem:[#allocation7 + $0x80] sm:$0xff]
        %v639 = vld [vmem:[#allocation7 + $0x88] sm:$0xff]
        %v640 = vld [vmem:[#allocation7 + $0x90] sm:$0xff]
        %v641 = vld [vmem:[#allocation7 + $0x98] sm:$0xff]
        %v642 = vld [vmem:[#allocation7 + $0xa0] sm:$0xff]
        %v643 = vld [vmem:[#allocation7 + $0xa8] sm:$0xff]
        %v644 = vld [vmem:[#allocation7 + $0xb0] sm:$0xff]
        %v645 = vld [vmem:[#allocation7 + $0xb8] sm:$0xff]
        %v646 = vld [vmem:[#allocation7 + $0xc0] sm:$0xff]
        %v647 = vld [vmem:[#allocation7 + $0xc8] sm:$0xff]
        %v648 = vld [vmem:[#allocation7 + $0xd0] sm:$0xff]
        %v649 = vld [vmem:[#allocation7 + $0xd8] sm:$0xff]
        %v650 = vld [vmem:[#allocation7 + $0xe0] sm:$0xff]
        %v651 = vld [vmem:[#allocation7 + $0xe8] sm:$0xff]
        %v652 = vld [vmem:[#allocation7 + $0xf0] sm:$0xff]
        %v653 = vld [vmem:[#allocation7 + $0xf8] sm:$0xff]
        %v654 = vld [vmem:[#allocation7 + $0x100] sm:$0xff]
        %v655 = vld [vmem:[#allocation7 + $0x108] sm:$0xff]
        %v656 = vld [vmem:[#allocation7 + $0x110] sm:$0xff]
        %v657 = vld [vmem:[#allocation7 + $0x118] sm:$0xff]
        %v658 = vld [vmem:[#allocation7 + $0x120] sm:$0xff]
        %v659 = vld [vmem:[#allocation7 + $0x128] sm:$0xff]
        %v660 = vld [vmem:[#allocation7 + $0x130] sm:$0xff]
        %v661 = vld [vmem:[#allocation7 + $0x138] sm:$0xff]
        %v662 = vld [vmem:[#allocation7 + $0x140] sm:$0xff]
        %v663 = vld [vmem:[#allocation7 + $0x148] sm:$0xff]
        %v664 = vld [vmem:[#allocation7 + $0x150] sm:$0xff]
        %v665 = vld [vmem:[#allocation7 + $0x158] sm:$0xff]
        %v666 = vld [vmem:[#allocation7 + $0x160] sm:$0xff]
        %v667 = vld [vmem:[#allocation7 + $0x168] sm:$0xff]
        %v668 = vld [vmem:[#allocation7 + $0x170] sm:$0xff]
        %v669 = vld [vmem:[#allocation7 + $0x178] sm:$0xff]
        %v670 = vld [vmem:[#allocation7 + $0x180] sm:$0xff]
        %v671 = vld [vmem:[#allocation7 + $0x188] sm:$0xff]
        %v672 = vld [vmem:[#allocation7 + $0x190] sm:$0xff]
        %v673 = vld [vmem:[#allocation7 + $0x198] sm:$0xff]
        %v674 = vld [vmem:[#allocation7 + $0x1a0] sm:$0xff]
        %v675 = vld [vmem:[#allocation7 + $0x1a8] sm:$0xff]
        %v676 = vld [vmem:[#allocation7 + $0x1b0] sm:$0xff]
        %v677 = vld [vmem:[#allocation7 + $0x1b8] sm:$0xff]
        %v678 = vld [vmem:[#allocation7 + $0x1c0] sm:$0xff]
        %v679 = vld [vmem:[#allocation7 + $0x1c8] sm:$0xff]
        %v680 = vld [vmem:[#allocation7 + $0x1d0] sm:$0xff]
        %v681 = vld [vmem:[#allocation7 + $0x1d8] sm:$0xff]
        %v682 = vld [vmem:[#allocation7 + $0x1e0] sm:$0xff]
        %v683 = vld [vmem:[#allocation7 + $0x1e8] sm:$0xff]
        %v684 = vld [vmem:[#allocation7 + $0x1f0] sm:$0xff]
        %v685 = vld [vmem:[#allocation7 + $0x1f8] sm:$0xff]
        %686 = vmatprep.subr.mxu0 %v623
        %687 = vmatpush1.msra.mxu0 %v622
        %688 = vmatprep.subr.mxu0 %v627
        %689 = vmatpush1.msra.mxu0 %v626
        %690 = vmatprep.subr.mxu0 %v631
        %691 = vmatpush1.msra.mxu0 %v630
        %692 = vmatprep.subr.mxu0 %v635
        %693 = vmatpush1.msra.mxu0 %v634
        %694 = vmatprep.subr.mxu0 %v639
        %695 = vmatpush1.msra.mxu0 %v638
        %696 = vmatprep.subr.mxu0 %v643
        %697 = vmatpush1.msra.mxu0 %v642
        %698 = vmatprep.subr.mxu0 %v647
        %699 = vmatpush1.msra.mxu0 %v646
        %700 = vmatprep.subr.mxu0 %v651
        %701 = vmatpush1.msra.mxu0 %v650
        %702 = vmatprep.subr.mxu0 %v655
        %703 = vmatpush1.msra.mxu0 %v654
        %704 = vmatprep.subr.mxu0 %v659
        %705 = vmatpush1.msra.mxu0 %v658
        %706 = vmatprep.subr.mxu0 %v663
        %707 = vmatpush1.msra.mxu0 %v662
        %708 = vmatprep.subr.mxu0 %v667
        %709 = vmatpush1.msra.mxu0 %v666
        %710 = vmatprep.subr.mxu0 %v671
        %711 = vmatpush1.msra.mxu0 %v670
        %712 = vmatprep.subr.mxu0 %v675
        %713 = vmatpush1.msra.mxu0 %v674
        %714 = vmatprep.subr.mxu0 %v679
        %715 = vmatpush1.msra.mxu0 %v678
        %716 = vmatprep.subr.mxu0 %v683
        %717 = vmatpush1.msra.mxu0 %v682
        %718 = vmatprep.subr.mxu0 0.0
        %719 = vmatpush1.msra.mxu0 0.0
        %720 = vmatprep.subr.mxu0 0.0
        %721 = vmatpush1.msra.mxu0 0.0
        %722 = vmatprep.subr.mxu0 0.0
        %723 = vmatpush1.msra.mxu0 0.0
        %724 = vmatprep.subr.mxu0 0.0
        %725 = vmatpush1.msra.mxu0 0.0
        %726 = vmatprep.subr.mxu0 0.0
        %727 = vmatpush1.msra.mxu0 0.0
        %728 = vmatprep.subr.mxu0 0.0
        %729 = vmatpush1.msra.mxu0 0.0
        %730 = vmatprep.subr.mxu0 0.0
        %731 = vmatpush1.msra.mxu0 0.0
        %732 = vmatprep.subr.mxu0 0.0
        %733 = vmatpush1.msra.mxu0 0.0
        %734 = vmatprep.subr.mxu0 0.0
        %735 = vmatpush1.msra.mxu0 0.0
        %736 = vmatprep.subr.mxu0 0.0
        %737 = vmatpush1.msra.mxu0 0.0
        %738 = vmatprep.subr.mxu0 0.0
        %739 = vmatpush1.msra.mxu0 0.0
        %740 = vmatprep.subr.mxu0 0.0
        %741 = vmatpush1.msra.mxu0 0.0
        %742 = vmatprep.subr.mxu0 0.0
        %743 = vmatpush1.msra.mxu0 0.0
        %744 = vmatprep.subr.mxu0 0.0
        %745 = vmatpush1.msra.mxu0 0.0
        %746 = vmatprep.subr.mxu0 0.0
        %747 = vmatpush1.msra.mxu0 0.0
        %748 = vmatprep.subr.mxu0 0.0
        %749 = vmatpush1.msra.mxu0 0.0
        %750 = vmatprep.mubr.f32.mxu0 0.0
        %751 = vmatmul.mubr.f32.gmra.mrb[0].mxu0 %v621
        %v752 = vpop.f32.mrb[0].mxu0
        %v753 = vadd.f32 0.0, %v752
        %v754 = vpop.f32.mrb[0].mxu0
        %v755 = vadd.f32 0.0, %v754
        %756 = vdwg.mxu0
        %757 = vmatprep.subr.mxu0 %v625
        %758 = vmatpush1.msra.mxu0 %v624
        %759 = vmatprep.subr.mxu0 %v629
        %760 = vmatpush1.msra.mxu0 %v628
        %761 = vmatprep.subr.mxu0 %v633
        %762 = vmatpush1.msra.mxu0 %v632
        %763 = vmatprep.subr.mxu0 %v637
        %764 = vmatpush1.msra.mxu0 %v636
        %765 = vmatprep.subr.mxu0 %v641
        %766 = vmatpush1.msra.mxu0 %v640
        %767 = vmatprep.subr.mxu0 %v645
        %768 = vmatpush1.msra.mxu0 %v644
        %769 = vmatprep.subr.mxu0 %v649
        %770 = vmatpush1.msra.mxu0 %v648
        %771 = vmatprep.subr.mxu0 %v653
        %772 = vmatpush1.msra.mxu0 %v652
        %773 = vmatprep.subr.mxu0 %v657
        %774 = vmatpush1.msra.mxu0 %v656
        %775 = vmatprep.subr.mxu0 %v661
        %776 = vmatpush1.msra.mxu0 %v660
        %777 = vmatprep.subr.mxu0 %v665
        %778 = vmatpush1.msra.mxu0 %v664
        %779 = vmatprep.subr.mxu0 %v669
        %780 = vmatpush1.msra.mxu0 %v668
        %781 = vmatprep.subr.mxu0 %v673
        %782 = vmatpush1.msra.mxu0 %v672
        %783 = vmatprep.subr.mxu0 %v677
        %784 = vmatpush1.msra.mxu0 %v676
        %785 = vmatprep.subr.mxu0 %v681
        %786 = vmatpush1.msra.mxu0 %v680
        %787 = vmatprep.subr.mxu0 %v685
        %788 = vmatpush1.msra.mxu0 %v684
        %789 = vmatprep.subr.mxu0 0.0
        %790 = vmatpush1.msra.mxu0 0.0
        %791 = vmatprep.subr.mxu0 0.0
        %792 = vmatpush1.msra.mxu0 0.0
        %793 = vmatprep.subr.mxu0 0.0
        %794 = vmatpush1.msra.mxu0 0.0
        %795 = vmatprep.subr.mxu0 0.0
        %796 = vmatpush1.msra.mxu0 0.0
        %797 = vmatprep.subr.mxu0 0.0
        %798 = vmatpush1.msra.mxu0 0.0
        %799 = vmatprep.subr.mxu0 0.0
        %800 = vmatpush1.msra.mxu0 0.0
        %801 = vmatprep.subr.mxu0 0.0
        %802 = vmatpush1.msra.mxu0 0.0
        %803 = vmatprep.subr.mxu0 0.0
        %804 = vmatpush1.msra.mxu0 0.0
        %805 = vmatprep.subr.mxu0 0.0
        %806 = vmatpush1.msra.mxu0 0.0
        %807 = vmatprep.subr.mxu0 0.0
        %808 = vmatpush1.msra.mxu0 0.0
        %809 = vmatprep.subr.mxu0 0.0
        %810 = vmatpush1.msra.mxu0 0.0
        %811 = vmatprep.subr.mxu0 0.0
        %812 = vmatpush1.msra.mxu0 0.0
        %813 = vmatprep.subr.mxu0 0.0
        %814 = vmatpush1.msra.mxu0 0.0
        %815 = vmatprep.subr.mxu0 0.0
        %816 = vmatpush1.msra.mxu0 0.0
        %817 = vmatprep.subr.mxu0 0.0
        %818 = vmatpush1.msra.mxu0 0.0
        %819 = vmatprep.subr.mxu0 0.0
        %820 = vmatpush1.msra.mxu0 0.0
        %821 = vmatprep.mubr.f32.mxu0 0.0
        %822 = vmatmul.mubr.f32.gmra.mrb[0].mxu0 %v621
        %v823 = vpop.f32.mrb[0].mxu0
        %v824 = vadd.f32 0.0, %v823
        %v825 = vpop.f32.mrb[0].mxu0
        %v826 = vadd.f32 0.0, %v825
        %827 = vdwg.mxu0
        %v828 = vadd.f32 %v617, %v753
        %v829 = vadd.f32 %v618, %v755
        %v830 = vadd.f32 %v619, %v824
        %v831 = vadd.f32 %v620, %v826
        %v832 = vmul.f32 %v828, 0.5
        %v833 = vtanh.pop %v832
        %v834 = vmul.f32 %v833, 0.5
        %v835 = vadd.f32 %v834, 0.5
        %v836 = vmul.f32 %v829, 0.5
        %v837 = vtanh.pop %v836
        %v838 = vmul.f32 %v837, 0.5
        %v839 = vadd.f32 %v838, 0.5
        %v840 = vtanh.pop %v830
        %v841 = vmul.f32 %v831, 0.5
        %v842 = vtanh.pop %v841
        %v843 = vmul.f32 %v842, 0.5
        %v844 = vadd.f32 %v843, 0.5
        %v845 = vld [vmem:[#allocation3] sm:$0xff]
        %v846 = vmul.f32 %v839, %v845
        %v847 = vmul.f32 %v835, %v840
        %v848 = vadd.f32 %v846, %v847
        %v849 = vtanh.pop %v848
        %v850 = vmul.f32 %v844, %v849
        %851 = vst [vmem:[#allocation3] sm:$0xff] %v848
        %852 = vst [vmem:[#allocation2] sm:$0xff] %v850
        %v853 = vld [vmem:[#allocation9] sm:$0xff]
        %v854 = vld [vmem:[#allocation9 + $0x8] sm:$0xff]
        %v855 = vld [vmem:[#allocation9 + $0x10] sm:$0xff]
        %v856 = vld [vmem:[#allocation9 + $0x18] sm:$0xff]
        %v857 = vld [vmem:[#allocation9 + $0x20] sm:$0xff]
        %v858 = vld [vmem:[#allocation9 + $0x28] sm:$0xff]
        %v859 = vld [vmem:[#allocation9 + $0x30] sm:$0xff]
        %v860 = vld [vmem:[#allocation9 + $0x38] sm:$0xff]
        %v861 = vld [vmem:[#allocation9 + $0x40] sm:$0xff]
        %v862 = vld [vmem:[#allocation9 + $0x48] sm:$0xff]
        %v863 = vld [vmem:[#allocation9 + $0x50] sm:$0xff]
        %v864 = vld [vmem:[#allocation9 + $0x58] sm:$0xff]
        %v865 = vld [vmem:[#allocation9 + $0x60] sm:$0xff]
        %v866 = vld [vmem:[#allocation9 + $0x68] sm:$0xff]
        %v867 = vld [vmem:[#allocation9 + $0x70] sm:$0xff]
        %v868 = vld [vmem:[#allocation9 + $0x78] sm:$0xff]
        %v869 = vld [vmem:[#allocation10] sm:$0x1]
        %v871 = vlaneseq
        %v872 = vshrl.u32 %v871, 7
        %v873 = vsub.s32 0, %v872
        %v874 = vrot.slane %v869, %v873
        %876 = vmatprep.subr.mxu0 0.0
        %877 = vmatpush1.msra.mxu0 %v853
        %878 = vmatprep.subr.mxu0 0.0
        %879 = vmatpush1.msra.mxu0 %v854
        %880 = vmatprep.subr.mxu0 0.0
        %881 = vmatpush1.msra.mxu0 %v855
        %882 = vmatprep.subr.mxu0 0.0
        %883 = vmatpush1.msra.mxu0 %v856
        %884 = vmatprep.subr.mxu0 0.0
        %885 = vmatpush1.msra.mxu0 %v857
        %886 = vmatprep.subr.mxu0 0.0
        %887 = vmatpush1.msra.mxu0 %v858
        %888 = vmatprep.subr.mxu0 0.0
        %889 = vmatpush1.msra.mxu0 %v859
        %890 = vmatprep.subr.mxu0 0.0
        %891 = vmatpush1.msra.mxu0 %v860
        %892 = vmatprep.subr.mxu0 0.0
        %893 = vmatpush1.msra.mxu0 %v861
        %894 = vmatprep.subr.mxu0 0.0
        %895 = vmatpush1.msra.mxu0 %v862
        %896 = vmatprep.subr.mxu0 0.0
        %897 = vmatpush1.msra.mxu0 %v863
        %898 = vmatprep.subr.mxu0 0.0
        %899 = vmatpush1.msra.mxu0 %v864
        %900 = vmatprep.subr.mxu0 0.0
        %901 = vmatpush1.msra.mxu0 %v865
        %902 = vmatprep.subr.mxu0 0.0
        %903 = vmatpush1.msra.mxu0 %v866
        %904 = vmatprep.subr.mxu0 0.0
        %905 = vmatpush1.msra.mxu0 %v867
        %906 = vmatprep.subr.mxu0 0.0
        %907 = vmatpush1.msra.mxu0 %v868
        %908 = vmatprep.subr.mxu0 0.0
        %909 = vmatpush1.msra.mxu0 0.0
        %910 = vmatprep.subr.mxu0 0.0
        %911 = vmatpush1.msra.mxu0 0.0
        %912 = vmatprep.subr.mxu0 0.0
        %913 = vmatpush1.msra.mxu0 0.0
        %914 = vmatprep.subr.mxu0 0.0
        %915 = vmatpush1.msra.mxu0 0.0
        %916 = vmatprep.subr.mxu0 0.0
        %917 = vmatpush1.msra.mxu0 0.0
        %918 = vmatprep.subr.mxu0 0.0
        %919 = vmatpush1.msra.mxu0 0.0
        %920 = vmatprep.subr.mxu0 0.0
        %921 = vmatpush1.msra.mxu0 0.0
        %922 = vmatprep.subr.mxu0 0.0
        %923 = vmatpush1.msra.mxu0 0.0
        %924 = vmatprep.subr.mxu0 0.0
        %925 = vmatpush1.msra.mxu0 0.0
        %926 = vmatprep.subr.mxu0 0.0
        %927 = vmatpush1.msra.mxu0 0.0
        %928 = vmatprep.subr.mxu0 0.0
        %929 = vmatpush1.msra.mxu0 0.0
        %930 = vmatprep.subr.mxu0 0.0
        %931 = vmatpush1.msra.mxu0 0.0
        %932 = vmatprep.subr.mxu0 0.0
        %933 = vmatpush1.msra.mxu0 0.0
        %934 = vmatprep.subr.mxu0 0.0
        %935 = vmatpush1.msra.mxu0 0.0
        %936 = vmatprep.subr.mxu0 0.0
        %937 = vmatpush1.msra.mxu0 0.0
        %938 = vmatprep.subr.mxu0 0.0
        %939 = vmatpush1.msra.mxu0 0.0
        %940 = vmatprep.mubr.f32.mxu0 0.0
        %941 = vmatmul.mubr.f32.gmra.mrb[0].mxu0 %v850
        %v942 = vpop.f32.mrb[0].mxu0
        %v943 = vadd.f32 %v874, %v942
        %v944 = vpop.f32.mrb[0].mxu0
        %945 = vdwg.mxu0
        %s946 = scalar_lea.vmem %s276, 8 [#allocation12]
        %947 = vst.msk [vmem:[%s946] sm:$0xff] %vm614, %v943
        %s948 = scalar_lea.vmem %s240, 64 [#allocation4]
        %v949 = vld [vmem:[%s948] sm:$0xff]
        %v950 = vld [vmem:[%s948 + $0x8] sm:$0xff]
        %v951 = vld [vmem:[%s948 + $0x10] sm:$0xff]
        %v952 = vld [vmem:[%s948 + $0x18] sm:$0xff]
        %v953 = vld [vmem:[#allocation2] sm:$0xff]
        %v954 = vld [vmem:[#allocation7] sm:$0xff]
        %v955 = vld [vmem:[#allocation7 + $0x8] sm:$0xff]
        %v956 = vld [vmem:[#allocation7 + $0x10] sm:$0xff]
        %v957 = vld [vmem:[#allocation7 + $0x18] sm:$0xff]
        %v958 = vld [vmem:[#allocation7 + $0x20] sm:$0xff]
        %v959 = vld [vmem:[#allocation7 + $0x28] sm:$0xff]
        %v960 = vld [vmem:[#allocation7 + $0x30] sm:$0xff]
        %v961 = vld [vmem:[#allocation7 + $0x38] sm:$0xff]
        %v962 = vld [vmem:[#allocation7 + $0x40] sm:$0xff]
        %v963 = vld [vmem:[#allocation7 + $0x48] sm:$0xff]
        %v964 = vld [vmem:[#allocation7 + $0x50] sm:$0xff]
        %v965 = vld [vmem:[#allocation7 + $0x58] sm:$0xff]
        %v966 = vld [vmem:[#allocation7 + $0x60] sm:$0xff]
        %v967 = vld [vmem:[#allocation7 + $0x68] sm:$0xff]
        %v968 = vld [vmem:[#allocation7 + $0x70] sm:$0xff]
        %v969 = vld [vmem:[#allocation7 + $0x78] sm:$0xff]
        %v970 = vld [vmem:[#allocation7 + $0x80] sm:$0xff]
        %v971 = vld [vmem:[#allocation7 + $0x88] sm:$0xff]
        %v972 = vld [vmem:[#allocation7 + $0x90] sm:$0xff]
        %v973 = vld [vmem:[#allocation7 + $0x98] sm:$0xff]
        %v974 = vld [vmem:[#allocation7 + $0xa0] sm:$0xff]
        %v975 = vld [vmem:[#allocation7 + $0xa8] sm:$0xff]
        %v976 = vld [vmem:[#allocation7 + $0xb0] sm:$0xff]
        %v977 = vld [vmem:[#allocation7 + $0xb8] sm:$0xff]
        %v978 = vld [vmem:[#allocation7 + $0xc0] sm:$0xff]
        %v979 = vld [vmem:[#allocation7 + $0xc8] sm:$0xff]
        %v980 = vld [vmem:[#allocation7 + $0xd0] sm:$0xff]
        %v981 = vld [vmem:[#allocation7 + $0xd8] sm:$0xff]
        %v982 = vld [vmem:[#allocation7 + $0xe0] sm:$0xff]
        %v983 = vld [vmem:[#allocation7 + $0xe8] sm:$0xff]
        %v984 = vld [vmem:[#allocation7 + $0xf0] sm:$0xff]
        %v985 = vld [vmem:[#allocation7 + $0xf8] sm:$0xff]
        %v986 = vld [vmem:[#allocation7 + $0x100] sm:$0xff]
        %v987 = vld [vmem:[#allocation7 + $0x108] sm:$0xff]
        %v988 = vld [vmem:[#allocation7 + $0x110] sm:$0xff]
        %v989 = vld [vmem:[#allocation7 + $0x118] sm:$0xff]
        %v990 = vld [vmem:[#allocation7 + $0x120] sm:$0xff]
        %v991 = vld [vmem:[#allocation7 + $0x128] sm:$0xff]
        %v992 = vld [vmem:[#allocation7 + $0x130] sm:$0xff]
        %v993 = vld [vmem:[#allocation7 + $0x138] sm:$0xff]
        %v994 = vld [vmem:[#allocation7 + $0x140] sm:$0xff]
        %v995 = vld [vmem:[#allocation7 + $0x148] sm:$0xff]
        %v996 = vld [vmem:[#allocation7 + $0x150] sm:$0xff]
        %v997 = vld [vmem:[#allocation7 + $0x158] sm:$0xff]
        %v998 = vld [vmem:[#allocation7 + $0x160] sm:$0xff]
        %v999 = vld [vmem:[#allocation7 + $0x168] sm:$0xff]
        %v1000 = vld [vmem:[#allocation7 + $0x170] sm:$0xff]
        %v1001 = vld [vmem:[#allocation7 + $0x178] sm:$0xff]
        %v1002 = vld [vmem:[#allocation7 + $0x180] sm:$0xff]
        %v1003 = vld [vmem:[#allocation7 + $0x188] sm:$0xff]
        %v1004 = vld [vmem:[#allocation7 + $0x190] sm:$0xff]
        %v1005 = vld [vmem:[#allocation7 + $0x198] sm:$0xff]
        %v1006 = vld [vmem:[#allocation7 + $0x1a0] sm:$0xff]
        %v1007 = vld [vmem:[#allocation7 + $0x1a8] sm:$0xff]
        %v1008 = vld [vmem:[#allocation7 + $0x1b0] sm:$0xff]
        %v1009 = vld [vmem:[#allocation7 + $0x1b8] sm:$0xff]
        %v1010 = vld [vmem:[#allocation7 + $0x1c0] sm:$0xff]
        %v1011 = vld [vmem:[#allocation7 + $0x1c8] sm:$0xff]
        %v1012 = vld [vmem:[#allocation7 + $0x1d0] sm:$0xff]
        %v1013 = vld [vmem:[#allocation7 + $0x1d8] sm:$0xff]
        %v1014 = vld [vmem:[#allocation7 + $0x1e0] sm:$0xff]
        %v1015 = vld [vmem:[#allocation7 + $0x1e8] sm:$0xff]
        %v1016 = vld [vmem:[#allocation7 + $0x1f0] sm:$0xff]
        %v1017 = vld [vmem:[#allocation7 + $0x1f8] sm:$0xff]
        %1018 = vmatprep.subr.mxu0 %v955
        %1019 = vmatpush1.msra.mxu0 %v954
        %1020 = vmatprep.subr.mxu0 %v959
        %1021 = vmatpush1.msra.mxu0 %v958
        %1022 = vmatprep.subr.mxu0 %v963
        %1023 = vmatpush1.msra.mxu0 %v962
        %1024 = vmatprep.subr.mxu0 %v967
        %1025 = vmatpush1.msra.mxu0 %v966
        %1026 = vmatprep.subr.mxu0 %v971
        %1027 = vmatpush1.msra.mxu0 %v970
        %1028 = vmatprep.subr.mxu0 %v975
        %1029 = vmatpush1.msra.mxu0 %v974
        %1030 = vmatprep.subr.mxu0 %v979
        %1031 = vmatpush1.msra.mxu0 %v978
        %1032 = vmatprep.subr.mxu0 %v983
        %1033 = vmatpush1.msra.mxu0 %v982
        %1034 = vmatprep.subr.mxu0 %v987
        %1035 = vmatpush1.msra.mxu0 %v986
        %1036 = vmatprep.subr.mxu0 %v991
        %1037 = vmatpush1.msra.mxu0 %v990
        %1038 = vmatprep.subr.mxu0 %v995
        %1039 = vmatpush1.msra.mxu0 %v994
        %1040 = vmatprep.subr.mxu0 %v999
        %1041 = vmatpush1.msra.mxu0 %v998
        %1042 = vmatprep.subr.mxu0 %v1003
        %1043 = vmatpush1.msra.mxu0 %v1002
        %1044 = vmatprep.subr.mxu0 %v1007
        %1045 = vmatpush1.msra.mxu0 %v1006
        %1046 = vmatprep.subr.mxu0 %v1011
        %1047 = vmatpush1.msra.mxu0 %v1010
        %1048 = vmatprep.subr.mxu0 %v1015
        %1049 = vmatpush1.msra.mxu0 %v1014
        %1050 = vmatprep.subr.mxu0 0.0
        %1051 = vmatpush1.msra.mxu0 0.0
        %1052 = vmatprep.subr.mxu0 0.0
        %1053 = vmatpush1.msra.mxu0 0.0
        %1054 = vmatprep.subr.mxu0 0.0
        %1055 = vmatpush1.msra.mxu0 0.0
        %1056 = vmatprep.subr.mxu0 0.0
        %1057 = vmatpush1.msra.mxu0 0.0
        %1058 = vmatprep.subr.mxu0 0.0
        %1059 = vmatpush1.msra.mxu0 0.0
        %1060 = vmatprep.subr.mxu0 0.0
        %1061 = vmatpush1.msra.mxu0 0.0
        %1062 = vmatprep.subr.mxu0 0.0
        %1063 = vmatpush1.msra.mxu0 0.0
        %1064 = vmatprep.subr.mxu0 0.0
        %1065 = vmatpush1.msra.mxu0 0.0
        %1066 = vmatprep.subr.mxu0 0.0
        %1067 = vmatpush1.msra.mxu0 0.0
        %1068 = vmatprep.subr.mxu0 0.0
        %1069 = vmatpush1.msra.mxu0 0.0
        %1070 = vmatprep.subr.mxu0 0.0
        %1071 = vmatpush1.msra.mxu0 0.0
        %1072 = vmatprep.subr.mxu0 0.0
        %1073 = vmatpush1.msra.mxu0 0.0
        %1074 = vmatprep.subr.mxu0 0.0
        %1075 = vmatpush1.msra.mxu0 0.0
        %1076 = vmatprep.subr.mxu0 0.0
        %1077 = vmatpush1.msra.mxu0 0.0
        %1078 = vmatprep.subr.mxu0 0.0
        %1079 = vmatpush1.msra.mxu0 0.0
        %1080 = vmatprep.subr.mxu0 0.0
        %1081 = vmatpush1.msra.mxu0 0.0
        %1082 = vmatprep.mubr.f32.mxu0 0.0
        %1083 = vmatmul.mubr.f32.gmra.mrb[0].mxu0 %v953
        %v1084 = vpop.f32.mrb[0].mxu0
        %v1085 = vadd.f32 0.0, %v1084
        %v1086 = vpop.f32.mrb[0].mxu0
        %v1087 = vadd.f32 0.0, %v1086
        %1088 = vdwg.mxu0
        %1089 = vmatprep.subr.mxu0 %v957
        %1090 = vmatpush1.msra.mxu0 %v956
        %1091 = vmatprep.subr.mxu0 %v961
        %1092 = vmatpush1.msra.mxu0 %v960
        %1093 = vmatprep.subr.mxu0 %v965
        %1094 = vmatpush1.msra.mxu0 %v964
        %1095 = vmatprep.subr.mxu0 %v969
        %1096 = vmatpush1.msra.mxu0 %v968
        %1097 = vmatprep.subr.mxu0 %v973
        %1098 = vmatpush1.msra.mxu0 %v972
        %1099 = vmatprep.subr.mxu0 %v977
        %1100 = vmatpush1.msra.mxu0 %v976
        %1101 = vmatprep.subr.mxu0 %v981
        %1102 = vmatpush1.msra.mxu0 %v980
        %1103 = vmatprep.subr.mxu0 %v985
        %1104 = vmatpush1.msra.mxu0 %v984
        %1105 = vmatprep.subr.mxu0 %v989
        %1106 = vmatpush1.msra.mxu0 %v988
        %1107 = vmatprep.subr.mxu0 %v993
        %1108 = vmatpush1.msra.mxu0 %v992
        %1109 = vmatprep.subr.mxu0 %v997
        %1110 = vmatpush1.msra.mxu0 %v996
        %1111 = vmatprep.subr.mxu0 %v1001
        %1112 = vmatpush1.msra.mxu0 %v1000
        %1113 = vmatprep.subr.mxu0 %v1005
        %1114 = vmatpush1.msra.mxu0 %v1004
        %1115 = vmatprep.subr.mxu0 %v1009
        %1116 = vmatpush1.msra.mxu0 %v1008
        %1117 = vmatprep.subr.mxu0 %v1013
        %1118 = vmatpush1.msra.mxu0 %v1012
        %1119 = vmatprep.subr.mxu0 %v1017
        %1120 = vmatpush1.msra.mxu0 %v1016
        %1121 = vmatprep.subr.mxu0 0.0
        %1122 = vmatpush1.msra.mxu0 0.0
        %1123 = vmatprep.subr.mxu0 0.0
        %1124 = vmatpush1.msra.mxu0 0.0
        %1125 = vmatprep.subr.mxu0 0.0
        %1126 = vmatpush1.msra.mxu0 0.0
        %1127 = vmatprep.subr.mxu0 0.0
        %1128 = vmatpush1.msra.mxu0 0.0
        %1129 = vmatprep.subr.mxu0 0.0
        %1130 = vmatpush1.msra.mxu0 0.0
        %1131 = vmatprep.subr.mxu0 0.0
        %1132 = vmatpush1.msra.mxu0 0.0
        %1133 = vmatprep.subr.mxu0 0.0
        %1134 = vmatpush1.msra.mxu0 0.0
        %1135 = vmatprep.subr.mxu0 0.0
        %1136 = vmatpush1.msra.mxu0 0.0
        %1137 = vmatprep.subr.mxu0 0.0
        %1138 = vmatpush1.msra.mxu0 0.0
        %1139 = vmatprep.subr.mxu0 0.0
        %1140 = vmatpush1.msra.mxu0 0.0
        %1141 = vmatprep.subr.mxu0 0.0
        %1142 = vmatpush1.msra.mxu0 0.0
        %1143 = vmatprep.subr.mxu0 0.0
        %1144 = vmatpush1.msra.mxu0 0.0
        %1145 = vmatprep.subr.mxu0 0.0
        %1146 = vmatpush1.msra.mxu0 0.0
        %1147 = vmatprep.subr.mxu0 0.0
        %1148 = vmatpush1.msra.mxu0 0.0
        %1149 = vmatprep.subr.mxu0 0.0
        %1150 = vmatpush1.msra.mxu0 0.0
        %1151 = vmatprep.subr.mxu0 0.0
        %1152 = vmatpush1.msra.mxu0 0.0
        %1153 = vmatprep.mubr.f32.mxu0 0.0
        %1154 = vmatmul.mubr.f32.gmra.mrb[0].mxu0 %v953
        %v1155 = vpop.f32.mrb[0].mxu0
        %v1156 = vadd.f32 0.0, %v1155
        %v1157 = vpop.f32.mrb[0].mxu0
        %v1158 = vadd.f32 0.0, %v1157
        %1159 = vdwg.mxu0
        %v1160 = vadd.f32 %v949, %v1085
        %v1161 = vadd.f32 %v950, %v1087
        %v1162 = vadd.f32 %v951, %v1156
        %v1163 = vadd.f32 %v952, %v1158
        %v1164 = vmul.f32 %v1160, 0.5
        %v1165 = vtanh.pop %v1164
        %v1166 = vmul.f32 %v1165, 0.5
        %v1167 = vadd.f32 %v1166, 0.5
        %v1168 = vmul.f32 %v1161, 0.5
        %v1169 = vtanh.pop %v1168
        %v1170 = vmul.f32 %v1169, 0.5
        %v1171 = vadd.f32 %v1170, 0.5
        %v1172 = vtanh.pop %v1162
        %v1173 = vmul.f32 %v1163, 0.5
        %v1174 = vtanh.pop %v1173
        %v1175 = vmul.f32 %v1174, 0.5
        %v1176 = vadd.f32 %v1175, 0.5
        %v1177 = vld [vmem:[#allocation3] sm:$0xff]
        %v1178 = vmul.f32 %v1171, %v1177
        %v1179 = vmul.f32 %v1167, %v1172
        %v1180 = vadd.f32 %v1178, %v1179
        %v1181 = vtanh.pop %v1180
        %v1182 = vmul.f32 %v1176, %v1181
        %1183 = vst [vmem:[#allocation3] sm:$0xff] %v1180
        %1184 = vst [vmem:[#allocation2] sm:$0xff] %v1182
        %v1185 = vld [vmem:[#allocation9] sm:$0xff]
        %v1186 = vld [vmem:[#allocation9 + $0x8] sm:$0xff]
        %v1187 = vld [vmem:[#allocation9 + $0x10] sm:$0xff]
        %v1188 = vld [vmem:[#allocation9 + $0x18] sm:$0xff]
        %v1189 = vld [vmem:[#allocation9 + $0x20] sm:$0xff]
        %v1190 = vld [vmem:[#allocation9 + $0x28] sm:$0xff]
        %v1191 = vld [vmem:[#allocation9 + $0x30] sm:$0xff]
        %v1192 = vld [vmem:[#allocation9 + $0x38] sm:$0xff]
        %v1193 = vld [vmem:[#allocation9 + $0x40] sm:$0xff]
        %v1194 = vld [vmem:[#allocation9 + $0x48] sm:$0xff]
        %v1195 = vld [vmem:[#allocation9 + $0x50] sm:$0xff]
        %v1196 = vld [vmem:[#allocation9 + $0x58] sm:$0xff]
        %v1197 = vld [vmem:[#allocation9 + $0x60] sm:$0xff]
        %v1198 = vld [vmem:[#allocation9 + $0x68] sm:$0xff]
        %v1199 = vld [vmem:[#allocation9 + $0x70] sm:$0xff]
        %v1200 = vld [vmem:[#allocation9 + $0x78] sm:$0xff]
        %v1201 = vld [vmem:[#allocation10] sm:$0x1]
        %v1203 = vlaneseq
        %v1204 = vshrl.u32 %v1203, 7
        %v1205 = vsub.s32 0, %v1204
        %v1206 = vrot.slane %v1201, %v1205
        %1208 = vmatprep.subr.mxu0 0.0
        %1209 = vmatpush1.msra.mxu0 %v1185
        %1210 = vmatprep.subr.mxu0 0.0
        %1211 = vmatpush1.msra.mxu0 %v1186
        %1212 = vmatprep.subr.mxu0 0.0
        %1213 = vmatpush1.msra.mxu0 %v1187
        %1214 = vmatprep.subr.mxu0 0.0
        %1215 = vmatpush1.msra.mxu0 %v1188
        %1216 = vmatprep.subr.mxu0 0.0
        %1217 = vmatpush1.msra.mxu0 %v1189
        %1218 = vmatprep.subr.mxu0 0.0
        %1219 = vmatpush1.msra.mxu0 %v1190
        %1220 = vmatprep.subr.mxu0 0.0
        %1221 = vmatpush1.msra.mxu0 %v1191
        %1222 = vmatprep.subr.mxu0 0.0
        %1223 = vmatpush1.msra.mxu0 %v1192
        %1224 = vmatprep.subr.mxu0 0.0
        %1225 = vmatpush1.msra.mxu0 %v1193
        %1226 = vmatprep.subr.mxu0 0.0
        %1227 = vmatpush1.msra.mxu0 %v1194
        %1228 = vmatprep.subr.mxu0 0.0
        %1229 = vmatpush1.msra.mxu0 %v1195
        %1230 = vmatprep.subr.mxu0 0.0
        %1231 = vmatpush1.msra.mxu0 %v1196
        %1232 = vmatprep.subr.mxu0 0.0
        %1233 = vmatpush1.msra.mxu0 %v1197
        %1234 = vmatprep.subr.mxu0 0.0
        %1235 = vmatpush1.msra.mxu0 %v1198
        %1236 = vmatprep.subr.mxu0 0.0
        %1237 = vmatpush1.msra.mxu0 %v1199
        %1238 = vmatprep.subr.mxu0 0.0
        %1239 = vmatpush1.msra.mxu0 %v1200
        %1240 = vmatprep.subr.mxu0 0.0
        %1241 = vmatpush1.msra.mxu0 0.0
        %1242 = vmatprep.subr.mxu0 0.0
        %1243 = vmatpush1.msra.mxu0 0.0
        %1244 = vmatprep.subr.mxu0 0.0
        %1245 = vmatpush1.msra.mxu0 0.0
        %1246 = vmatprep.subr.mxu0 0.0
        %1247 = vmatpush1.msra.mxu0 0.0
        %1248 = vmatprep.subr.mxu0 0.0
        %1249 = vmatpush1.msra.mxu0 0.0
        %1250 = vmatprep.subr.mxu0 0.0
        %1251 = vmatpush1.msra.mxu0 0.0
        %1252 = vmatprep.subr.mxu0 0.0
        %1253 = vmatpush1.msra.mxu0 0.0
        %1254 = vmatprep.subr.mxu0 0.0
        %1255 = vmatpush1.msra.mxu0 0.0
        %1256 = vmatprep.subr.mxu0 0.0
        %1257 = vmatpush1.msra.mxu0 0.0
        %1258 = vmatprep.subr.mxu0 0.0
        %1259 = vmatpush1.msra.mxu0 0.0
        %1260 = vmatprep.subr.mxu0 0.0
        %1261 = vmatpush1.msra.mxu0 0.0
        %1262 = vmatprep.subr.mxu0 0.0
        %1263 = vmatpush1.msra.mxu0 0.0
        %1264 = vmatprep.subr.mxu0 0.0
        %1265 = vmatpush1.msra.mxu0 0.0
        %1266 = vmatprep.subr.mxu0 0.0
        %1267 = vmatpush1.msra.mxu0 0.0
        %1268 = vmatprep.subr.mxu0 0.0
        %1269 = vmatpush1.msra.mxu0 0.0
        %1270 = vmatprep.subr.mxu0 0.0
        %1271 = vmatpush1.msra.mxu0 0.0
        %1272 = vmatprep.mubr.f32.mxu0 0.0
        %1273 = vmatmul.mubr.f32.gmra.mrb[0].mxu0 %v1182
        %v1274 = vpop.f32.mrb[0].mxu0
        %v1275 = vadd.f32 %v1206, %v1274
        %v1276 = vpop.f32.mrb[0].mxu0
        %1277 = vdwg.mxu0
        %s1278 = scalar_lea.vmem %s276, 16 [#allocation12]
        %1279 = vst.msk [vmem:[%s1278] sm:$0xff] %vm614, %v1275
        %s1280 = scalar_lea.vmem %s240, 96 [#allocation4]
        %v1281 = vld [vmem:[%s1280] sm:$0xff]
        %v1282 = vld [vmem:[%s1280 + $0x8] sm:$0xff]
        %v1283 = vld [vmem:[%s1280 + $0x10] sm:$0xff]
        %v1284 = vld [vmem:[%s1280 + $0x18] sm:$0xff]
        %v1285 = vld [vmem:[#allocation2] sm:$0xff]
        %v1286 = vld [vmem:[#allocation7] sm:$0xff]
        %v1287 = vld [vmem:[#allocation7 + $0x8] sm:$0xff]
        %v1288 = vld [vmem:[#allocation7 + $0x10] sm:$0xff]
        %v1289 = vld [vmem:[#allocation7 + $0x18] sm:$0xff]
        %v1290 = vld [vmem:[#allocation7 + $0x20] sm:$0xff]
        %v1291 = vld [vmem:[#allocation7 + $0x28] sm:$0xff]
        %v1292 = vld [vmem:[#allocation7 + $0x30] sm:$0xff]
        %v1293 = vld [vmem:[#allocation7 + $0x38] sm:$0xff]
        %v1294 = vld [vmem:[#allocation7 + $0x40] sm:$0xff]
        %v1295 = vld [vmem:[#allocation7 + $0x48] sm:$0xff]
        %v1296 = vld [vmem:[#allocation7 + $0x50] sm:$0xff]
        %v1297 = vld [vmem:[#allocation7 + $0x58] sm:$0xff]
        %v1298 = vld [vmem:[#allocation7 + $0x60] sm:$0xff]
        %v1299 = vld [vmem:[#allocation7 + $0x68] sm:$0xff]
        %v1300 = vld [vmem:[#allocation7 + $0x70] sm:$0xff]
        %v1301 = vld [vmem:[#allocation7 + $0x78] sm:$0xff]
        %v1302 = vld [vmem:[#allocation7 + $0x80] sm:$0xff]
        %v1303 = vld [vmem:[#allocation7 + $0x88] sm:$0xff]
        %v1304 = vld [vmem:[#allocation7 + $0x90] sm:$0xff]
        %v1305 = vld [vmem:[#allocation7 + $0x98] sm:$0xff]
        %v1306 = vld [vmem:[#allocation7 + $0xa0] sm:$0xff]
        %v1307 = vld [vmem:[#allocation7 + $0xa8] sm:$0xff]
        %v1308 = vld [vmem:[#allocation7 + $0xb0] sm:$0xff]
        %v1309 = vld [vmem:[#allocation7 + $0xb8] sm:$0xff]
        %v1310 = vld [vmem:[#allocation7 + $0xc0] sm:$0xff]
        %v1311 = vld [vmem:[#allocation7 + $0xc8] sm:$0xff]
        %v1312 = vld [vmem:[#allocation7 + $0xd0] sm:$0xff]
        %v1313 = vld [vmem:[#allocation7 + $0xd8] sm:$0xff]
        %v1314 = vld [vmem:[#allocation7 + $0xe0] sm:$0xff]
        %v1315 = vld [vmem:[#allocation7 + $0xe8] sm:$0xff]
        %v1316 = vld [vmem:[#allocation7 + $0xf0] sm:$0xff]
        %v1317 = vld [vmem:[#allocation7 + $0xf8] sm:$0xff]
        %v1318 = vld [vmem:[#allocation7 + $0x100] sm:$0xff]
        %v1319 = vld [vmem:[#allocation7 + $0x108] sm:$0xff]
        %v1320 = vld [vmem:[#allocation7 + $0x110] sm:$0xff]
        %v1321 = vld [vmem:[#allocation7 + $0x118] sm:$0xff]
        %v1322 = vld [vmem:[#allocation7 + $0x120] sm:$0xff]
        %v1323 = vld [vmem:[#allocation7 + $0x128] sm:$0xff]
        %v1324 = vld [vmem:[#allocation7 + $0x130] sm:$0xff]
        %v1325 = vld [vmem:[#allocation7 + $0x138] sm:$0xff]
        %v1326 = vld [vmem:[#allocation7 + $0x140] sm:$0xff]
        %v1327 = vld [vmem:[#allocation7 + $0x148] sm:$0xff]
        %v1328 = vld [vmem:[#allocation7 + $0x150] sm:$0xff]
        %v1329 = vld [vmem:[#allocation7 + $0x158] sm:$0xff]
        %v1330 = vld [vmem:[#allocation7 + $0x160] sm:$0xff]
        %v1331 = vld [vmem:[#allocation7 + $0x168] sm:$0xff]
        %v1332 = vld [vmem:[#allocation7 + $0x170] sm:$0xff]
        %v1333 = vld [vmem:[#allocation7 + $0x178] sm:$0xff]
        %v1334 = vld [vmem:[#allocation7 + $0x180] sm:$0xff]
        %v1335 = vld [vmem:[#allocation7 + $0x188] sm:$0xff]
        %v1336 = vld [vmem:[#allocation7 + $0x190] sm:$0xff]
        %v1337 = vld [vmem:[#allocation7 + $0x198] sm:$0xff]
        %v1338 = vld [vmem:[#allocation7 + $0x1a0] sm:$0xff]
        %v1339 = vld [vmem:[#allocation7 + $0x1a8] sm:$0xff]
        %v1340 = vld [vmem:[#allocation7 + $0x1b0] sm:$0xff]
        %v1341 = vld [vmem:[#allocation7 + $0x1b8] sm:$0xff]
        %v1342 = vld [vmem:[#allocation7 + $0x1c0] sm:$0xff]
        %v1343 = vld [vmem:[#allocation7 + $0x1c8] sm:$0xff]
        %v1344 = vld [vmem:[#allocation7 + $0x1d0] sm:$0xff]
        %v1345 = vld [vmem:[#allocation7 + $0x1d8] sm:$0xff]
        %v1346 = vld [vmem:[#allocation7 + $0x1e0] sm:$0xff]
        %v1347 = vld [vmem:[#allocation7 + $0x1e8] sm:$0xff]
        %v1348 = vld [vmem:[#allocation7 + $0x1f0] sm:$0xff]
        %v1349 = vld [vmem:[#allocation7 + $0x1f8] sm:$0xff]
        %1350 = vmatprep.subr.mxu0 %v1287
        %1351 = vmatpush1.msra.mxu0 %v1286
        %1352 = vmatprep.subr.mxu0 %v1291
        %1353 = vmatpush1.msra.mxu0 %v1290
        %1354 = vmatprep.subr.mxu0 %v1295
        %1355 = vmatpush1.msra.mxu0 %v1294
        %1356 = vmatprep.subr.mxu0 %v1299
        %1357 = vmatpush1.msra.mxu0 %v1298
        %1358 = vmatprep.subr.mxu0 %v1303
        %1359 = vmatpush1.msra.mxu0 %v1302
        %1360 = vmatprep.subr.mxu0 %v1307
        %1361 = vmatpush1.msra.mxu0 %v1306
        %1362 = vmatprep.subr.mxu0 %v1311
        %1363 = vmatpush1.msra.mxu0 %v1310
        %1364 = vmatprep.subr.mxu0 %v1315
        %1365 = vmatpush1.msra.mxu0 %v1314
        %1366 = vmatprep.subr.mxu0 %v1319
        %1367 = vmatpush1.msra.mxu0 %v1318
        %1368 = vmatprep.subr.mxu0 %v1323
        %1369 = vmatpush1.msra.mxu0 %v1322
        %1370 = vmatprep.subr.mxu0 %v1327
        %1371 = vmatpush1.msra.mxu0 %v1326
        %1372 = vmatprep.subr.mxu0 %v1331
        %1373 = vmatpush1.msra.mxu0 %v1330
        %1374 = vmatprep.subr.mxu0 %v1335
        %1375 = vmatpush1.msra.mxu0 %v1334
        %1376 = vmatprep.subr.mxu0 %v1339
        %1377 = vmatpush1.msra.mxu0 %v1338
        %1378 = vmatprep.subr.mxu0 %v1343
        %1379 = vmatpush1.msra.mxu0 %v1342
        %1380 = vmatprep.subr.mxu0 %v1347
        %1381 = vmatpush1.msra.mxu0 %v1346
        %1382 = vmatprep.subr.mxu0 0.0
        %1383 = vmatpush1.msra.mxu0 0.0
        %1384 = vmatprep.subr.mxu0 0.0
        %1385 = vmatpush1.msra.mxu0 0.0
        %1386 = vmatprep.subr.mxu0 0.0
        %1387 = vmatpush1.msra.mxu0 0.0
        %1388 = vmatprep.subr.mxu0 0.0
        %1389 = vmatpush1.msra.mxu0 0.0
        %1390 = vmatprep.subr.mxu0 0.0
        %1391 = vmatpush1.msra.mxu0 0.0
        %1392 = vmatprep.subr.mxu0 0.0
        %1393 = vmatpush1.msra.mxu0 0.0
        %1394 = vmatprep.subr.mxu0 0.0
        %1395 = vmatpush1.msra.mxu0 0.0
        %1396 = vmatprep.subr.mxu0 0.0
        %1397 = vmatpush1.msra.mxu0 0.0
        %1398 = vmatprep.subr.mxu0 0.0
        %1399 = vmatpush1.msra.mxu0 0.0
        %1400 = vmatprep.subr.mxu0 0.0
        %1401 = vmatpush1.msra.mxu0 0.0
        %1402 = vmatprep.subr.mxu0 0.0
        %1403 = vmatpush1.msra.mxu0 0.0
        %1404 = vmatprep.subr.mxu0 0.0
        %1405 = vmatpush1.msra.mxu0 0.0
        %1406 = vmatprep.subr.mxu0 0.0
        %1407 = vmatpush1.msra.mxu0 0.0
        %1408 = vmatprep.subr.mxu0 0.0
        %1409 = vmatpush1.msra.mxu0 0.0
        %1410 = vmatprep.subr.mxu0 0.0
        %1411 = vmatpush1.msra.mxu0 0.0
        %1412 = vmatprep.subr.mxu0 0.0
        %1413 = vmatpush1.msra.mxu0 0.0
        %1414 = vmatprep.mubr.f32.mxu0 0.0
        %1415 = vmatmul.mubr.f32.gmra.mrb[0].mxu0 %v1285
        %v1416 = vpop.f32.mrb[0].mxu0
        %v1417 = vadd.f32 0.0, %v1416
        %v1418 = vpop.f32.mrb[0].mxu0
        %v1419 = vadd.f32 0.0, %v1418
        %1420 = vdwg.mxu0
        %1421 = vmatprep.subr.mxu0 %v1289
        %1422 = vmatpush1.msra.mxu0 %v1288
        %1423 = vmatprep.subr.mxu0 %v1293
        %1424 = vmatpush1.msra.mxu0 %v1292
        %1425 = vmatprep.subr.mxu0 %v1297
        %1426 = vmatpush1.msra.mxu0 %v1296
        %1427 = vmatprep.subr.mxu0 %v1301
        %1428 = vmatpush1.msra.mxu0 %v1300
        %1429 = vmatprep.subr.mxu0 %v1305
        %1430 = vmatpush1.msra.mxu0 %v1304
        %1431 = vmatprep.subr.mxu0 %v1309
        %1432 = vmatpush1.msra.mxu0 %v1308
        %1433 = vmatprep.subr.mxu0 %v1313
        %1434 = vmatpush1.msra.mxu0 %v1312
        %1435 = vmatprep.subr.mxu0 %v1317
        %1436 = vmatpush1.msra.mxu0 %v1316
        %1437 = vmatprep.subr.mxu0 %v1321
        %1438 = vmatpush1.msra.mxu0 %v1320
        %1439 = vmatprep.subr.mxu0 %v1325
        %1440 = vmatpush1.msra.mxu0 %v1324
        %1441 = vmatprep.subr.mxu0 %v1329
        %1442 = vmatpush1.msra.mxu0 %v1328
        %1443 = vmatprep.subr.mxu0 %v1333
        %1444 = vmatpush1.msra.mxu0 %v1332
        %1445 = vmatprep.subr.mxu0 %v1337
        %1446 = vmatpush1.msra.mxu0 %v1336
        %1447 = vmatprep.subr.mxu0 %v1341
        %1448 = vmatpush1.msra.mxu0 %v1340
        %1449 = vmatprep.subr.mxu0 %v1345
        %1450 = vmatpush1.msra.mxu0 %v1344
        %1451 = vmatprep.subr.mxu0 %v1349
        %1452 = vmatpush1.msra.mxu0 %v1348
        %1453 = vmatprep.subr.mxu0 0.0
        %1454 = vmatpush1.msra.mxu0 0.0
        %1455 = vmatprep.subr.mxu0 0.0
        %1456 = vmatpush1.msra.mxu0 0.0
        %1457 = vmatprep.subr.mxu0 0.0
        %1458 = vmatpush1.msra.mxu0 0.0
        %1459 = vmatprep.subr.mxu0 0.0
        %1460 = vmatpush1.msra.mxu0 0.0
        %1461 = vmatprep.subr.mxu0 0.0
        %1462 = vmatpush1.msra.mxu0 0.0
        %1463 = vmatprep.subr.mxu0 0.0
        %1464 = vmatpush1.msra.mxu0 0.0
        %1465 = vmatprep.subr.mxu0 0.0
        %1466 = vmatpush1.msra.mxu0 0.0
        %1467 = vmatprep.subr.mxu0 0.0
        %1468 = vmatpush1.msra.mxu0 0.0
        %1469 = vmatprep.subr.mxu0 0.0
        %1470 = vmatpush1.msra.mxu0 0.0
        %1471 = vmatprep.subr.mxu0 0.0
        %1472 = vmatpush1.msra.mxu0 0.0
        %1473 = vmatprep.subr.mxu0 0.0
        %1474 = vmatpush1.msra.mxu0 0.0
        %1475 = vmatprep.subr.mxu0 0.0
        %1476 = vmatpush1.msra.mxu0 0.0
        %1477 = vmatprep.subr.mxu0 0.0
        %1478 = vmatpush1.msra.mxu0 0.0
        %1479 = vmatprep.subr.mxu0 0.0
        %1480 = vmatpush1.msra.mxu0 0.0
        %1481 = vmatprep.subr.mxu0 0.0
        %1482 = vmatpush1.msra.mxu0 0.0
        %1483 = vmatprep.subr.mxu0 0.0
        %1484 = vmatpush1.msra.mxu0 0.0
        %1485 = vmatprep.mubr.f32.mxu0 0.0
        %1486 = vmatmul.mubr.f32.gmra.mrb[0].mxu0 %v1285
        %v1487 = vpop.f32.mrb[0].mxu0
        %v1488 = vadd.f32 0.0, %v1487
        %v1489 = vpop.f32.mrb[0].mxu0
        %v1490 = vadd.f32 0.0, %v1489
        %1491 = vdwg.mxu0
        %v1492 = vadd.f32 %v1281, %v1417
        %v1493 = vadd.f32 %v1282, %v1419
        %v1494 = vadd.f32 %v1283, %v1488
        %v1495 = vadd.f32 %v1284, %v1490
        %v1496 = vmul.f32 %v1492, 0.5
        %v1497 = vtanh.pop %v1496
        %v1498 = vmul.f32 %v1497, 0.5
        %v1499 = vadd.f32 %v1498, 0.5
        %v1500 = vmul.f32 %v1493, 0.5
        %v1501 = vtanh.pop %v1500
        %v1502 = vmul.f32 %v1501, 0.5
        %v1503 = vadd.f32 %v1502, 0.5
        %v1504 = vtanh.pop %v1494
        %v1505 = vmul.f32 %v1495, 0.5
        %v1506 = vtanh.pop %v1505
        %v1507 = vmul.f32 %v1506, 0.5
        %v1508 = vadd.f32 %v1507, 0.5
        %v1509 = vld [vmem:[#allocation3] sm:$0xff]
        %v1510 = vmul.f32 %v1503, %v1509
        %v1511 = vmul.f32 %v1499, %v1504
        %v1512 = vadd.f32 %v1510, %v1511
        %v1513 = vtanh.pop %v1512
        %v1514 = vmul.f32 %v1508, %v1513
        %1515 = vst [vmem:[#allocation3] sm:$0xff] %v1512
        %1516 = vst [vmem:[#allocation2] sm:$0xff] %v1514
        %v1517 = vld [vmem:[#allocation9] sm:$0xff]
        %v1518 = vld [vmem:[#allocation9 + $0x8] sm:$0xff]
        %v1519 = vld [vmem:[#allocation9 + $0x10] sm:$0xff]
        %v1520 = vld [vmem:[#allocation9 + $0x18] sm:$0xff]
        %v1521 = vld [vmem:[#allocation9 + $0x20] sm:$0xff]
        %v1522 = vld [vmem:[#allocation9 + $0x28] sm:$0xff]
        %v1523 = vld [vmem:[#allocation9 + $0x30] sm:$0xff]
        %v1524 = vld [vmem:[#allocation9 + $0x38] sm:$0xff]
        %v1525 = vld [vmem:[#allocation9 + $0x40] sm:$0xff]
        %v1526 = vld [vmem:[#allocation9 + $0x48] sm:$0xff]
        %v1527 = vld [vmem:[#allocation9 + $0x50] sm:$0xff]
        %v1528 = vld [vmem:[#allocation9 + $0x58] sm:$0xff]
        %v1529 = vld [vmem:[#allocation9 + $0x60] sm:$0xff]
        %v1530 = vld [vmem:[#allocation9 + $0x68] sm:$0xff]
        %v1531 = vld [vmem:[#allocation9 + $0x70] sm:$0xff]
        %v1532 = vld [vmem:[#allocation9 + $0x78] sm:$0xff]
        %v1533 = vld [vmem:[#allocation10] sm:$0x1]
        %v1535 = vlaneseq
        %v1536 = vshrl.u32 %v1535, 7
        %v1537 = vsub.s32 0, %v1536
        %v1538 = vrot.slane %v1533, %v1537
        %1540 = vmatprep.subr.mxu0 0.0
        %1541 = vmatpush1.msra.mxu0 %v1517
        %1542 = vmatprep.subr.mxu0 0.0
        %1543 = vmatpush1.msra.mxu0 %v1518
        %1544 = vmatprep.subr.mxu0 0.0
        %1545 = vmatpush1.msra.mxu0 %v1519
        %1546 = vmatprep.subr.mxu0 0.0
        %1547 = vmatpush1.msra.mxu0 %v1520
        %1548 = vmatprep.subr.mxu0 0.0
        %1549 = vmatpush1.msra.mxu0 %v1521
        %1550 = vmatprep.subr.mxu0 0.0
        %1551 = vmatpush1.msra.mxu0 %v1522
        %1552 = vmatprep.subr.mxu0 0.0
        %1553 = vmatpush1.msra.mxu0 %v1523
        %1554 = vmatprep.subr.mxu0 0.0
        %1555 = vmatpush1.msra.mxu0 %v1524
        %1556 = vmatprep.subr.mxu0 0.0
        %1557 = vmatpush1.msra.mxu0 %v1525
        %1558 = vmatprep.subr.mxu0 0.0
        %1559 = vmatpush1.msra.mxu0 %v1526
        %1560 = vmatprep.subr.mxu0 0.0
        %1561 = vmatpush1.msra.mxu0 %v1527
        %1562 = vmatprep.subr.mxu0 0.0
        %1563 = vmatpush1.msra.mxu0 %v1528
        %1564 = vmatprep.subr.mxu0 0.0
        %1565 = vmatpush1.msra.mxu0 %v1529
        %1566 = vmatprep.subr.mxu0 0.0
        %1567 = vmatpush1.msra.mxu0 %v1530
        %1568 = vmatprep.subr.mxu0 0.0
        %1569 = vmatpush1.msra.mxu0 %v1531
        %1570 = vmatprep.subr.mxu0 0.0
        %1571 = vmatpush1.msra.mxu0 %v1532
        %1572 = vmatprep.subr.mxu0 0.0
        %1573 = vmatpush1.msra.mxu0 0.0
        %1574 = vmatprep.subr.mxu0 0.0
        %1575 = vmatpush1.msra.mxu0 0.0
        %1576 = vmatprep.subr.mxu0 0.0
        %1577 = vmatpush1.msra.mxu0 0.0
        %1578 = vmatprep.subr.mxu0 0.0
        %1579 = vmatpush1.msra.mxu0 0.0
        %1580 = vmatprep.subr.mxu0 0.0
        %1581 = vmatpush1.msra.mxu0 0.0
        %1582 = vmatprep.subr.mxu0 0.0
        %1583 = vmatpush1.msra.mxu0 0.0
        %1584 = vmatprep.subr.mxu0 0.0
        %1585 = vmatpush1.msra.mxu0 0.0
        %1586 = vmatprep.subr.mxu0 0.0
        %1587 = vmatpush1.msra.mxu0 0.0
        %1588 = vmatprep.subr.mxu0 0.0
        %1589 = vmatpush1.msra.mxu0 0.0
        %1590 = vmatprep.subr.mxu0 0.0
        %1591 = vmatpush1.msra.mxu0 0.0
        %1592 = vmatprep.subr.mxu0 0.0
        %1593 = vmatpush1.msra.mxu0 0.0
        %1594 = vmatprep.subr.mxu0 0.0
        %1595 = vmatpush1.msra.mxu0 0.0
        %1596 = vmatprep.subr.mxu0 0.0
        %1597 = vmatpush1.msra.mxu0 0.0
        %1598 = vmatprep.subr.mxu0 0.0
        %1599 = vmatpush1.msra.mxu0 0.0
        %1600 = vmatprep.subr.mxu0 0.0
        %1601 = vmatpush1.msra.mxu0 0.0
        %1602 = vmatprep.subr.mxu0 0.0
        %1603 = vmatpush1.msra.mxu0 0.0
        %1604 = vmatprep.mubr.f32.mxu0 0.0
        %1605 = vmatmul.mubr.f32.gmra.mrb[0].mxu0 %v1514
        %v1606 = vpop.f32.mrb[0].mxu0
        %v1607 = vadd.f32 %v1538, %v1606
        %v1608 = vpop.f32.mrb[0].mxu0
        %1609 = vdwg.mxu0
        %s1610 = scalar_lea.vmem %s276, 24 [#allocation12]
        %1611 = vst.msk [vmem:[%s1610] sm:$0xff] %vm614, %v1607
        %s1612 = sand.u32 %s136, 1
        %s1613 = scalar_lea.sflag [#allocation6], %s1612
        %s1614 = sand.u32 %s136, 1
        %s1615 = smul.addr %s1614, 32
        %s1616 = scalar_lea.vmem [#allocation12], %s1615
        // Predicated region
        $region57: #{_lambda_.3} parent=35 // pred_check
          %p1617 = pneg %p146
        $region58: #{_lambda_.3} parent=35 // pred_check_branch
          %1619 = sbr.rel (%p1617) target = $region60
        $region59: #{_lambda_.3} parent=35 // pred_region
          %s1620 = smul.u32 4, %s28
          %s1622 = ssub.s32 512, 512
          %1623 = vsyncadd %s1613, %s1622
          %s1624 = sadd.s32 %s27, %s1620
          %s1625 = smul.addr %s1624, 128
          %s1626 = scalar_lea.hbm %s4, %s1625
          %s1627 = sshll.u32 %s1616, 4
          %s1628 = int_to_ptr.vmem [resolvable:$true] %s1627
          %1633 = dma.vmem_to_hbm [thread:$0]  %s1628, 512, %s1626, %s1613, 128, 128, 8
        $region60: #{_lambda_.3} parent=35 // pred_fallthru
          _
      $region36: #{_lambda_.3} parent=5 // pred_fallthru
        _
      %p1634 = scmp.le.s32.totalorder 2, %s18
      // Predicated region
      $region61: #{_lambda_.3} parent=5 // pred_check
        %p1635 = pneg %p1634
      $region62: #{_lambda_.3} parent=5 // pred_check_branch
        %1637 = sbr.rel (%p1635) target = $region64
      $region63: #{_lambda_.3} parent=5 // pred_region
        %s1638 = ssub.s32 %s18, 2
        // Predicated region
        $region65: #{_lambda_.3} parent=63 // pred_check
          %p1639 = pneg %p152
        $region66: #{_lambda_.3} parent=63 // pred_check_branch
          %1641 = sbr.rel (%p1639) target = $region68
        $region67: #{_lambda_.3} parent=63 // pred_region
          %s1642 = sand.u32 %s137, 1
          %s1643 = scalar_lea.sflag [#allocation6], %s1642
          %s1644 = sand.u32 %s137, 1
          %s1645 = smul.addr %s1644, 32
          %s1646 = scalar_lea.vmem [#allocation12], %s1645
          %1647 = dma.done %s1643, 512
        $region68: #{_lambda_.3} parent=63 // pred_fallthru
          _
      $region64: #{_lambda_.3} parent=5 // pred_fallthru
        _
    $region6: #{_lambda_.3} parent=1 // loop_footer
      %s22 = sadd.s32 1, %s18
    $region7: #{_lambda_.3} parent=1 // loop_footer_branch
      %17 = sbr.rel target = $region3
    $region8: #{_lambda_.3} parent=1 // loop_exit
      _
    %1648 = vsyncpa [#allocation5], 1
    %s1649 = scalar_lea.sflag [#allocation5], 1
    %1650 = vsyncpa %s1649, 1
    %1651 = vsyncpa [#allocation8], 1
    %1652 = vsyncpa [#allocation11], 1
    %1653 = vsyncpa [#allocation6], 1
    %s1654 = scalar_lea.sflag [#allocation6], 1
    %1655 = vsyncpa %s1654, 1

</llo_original>
